<compile_context>
chip_gen: v6e
topology: v6e:2x2x1
jax: 0.10.0
libtpu: 0.0.40
codegen_flags: <defaults>
</compile_context>

<pallas_src>
import jax
import jax.numpy as jnp
from jax.experimental import pallas as pl
from jax.experimental.pallas import tpu as pltpu


# ----------------------------------------------------------------------------
# Fused kernel: conv1+BN1+ReLU -> (VMEM) -> conv2+BN2+ReLU -> +identity -> ReLU
# ----------------------------------------------------------------------------
def _basic_block_kernel(xp_ref, w1_ref, w2_ref, aff_ref, o_ref, h_ref):
    """One batch element per grid step.

    xp_ref : (1, H+2, W+2, Cp)  spatially padded, channel-padded input
    w1_ref : (9*Cp, Cp)         conv1 weights as im2col slab
    w2_ref : (9*Cp, Cp)         conv2 weights as im2col slab
    aff_ref: (4, Cp)            rows: scale1, shift1, scale2, shift2 (folded BN)
    o_ref  : (1, H, W, Cp)      output (f32)
    h_ref  : (H+2, W+2, Cp)     VMEM scratch for intermediate activation (halo=0)
    """
    H, W, Cp = o_ref.shape[1], o_ref.shape[2], o_ref.shape[3]
    xp = xp_ref[0]                                     # (H+2, W+2, Cp)

    def conv3x3(src, w_ref):
        # im2col: one (H*W, 9*Cp) slab, one MXU matmul with K = 9*Cp.
        cols = []
        for ky in range(3):
            for kx in range(3):
                cols.append(src[ky:ky + H, kx:kx + W, :].reshape(H * W, Cp))
        slab = jnp.concatenate(cols, axis=1)           # lane-aligned concat
        return jnp.dot(slab, w_ref[...], preferred_element_type=jnp.float32)

    # ---- conv1 + BN1 + ReLU (f32 epilogue) ----
    h = conv3x3(xp, w1_ref)                            # (H*W, Cp) f32
    h = jnp.maximum(h * aff_ref[0] + aff_ref[1], 0.0)

    # Intermediate stays on-chip: zero-haloed VMEM scratch (no HBM round-trip).
    h_ref[...] = jnp.zeros_like(h_ref)
    h_ref[1:H + 1, 1:W + 1, :] = h.reshape(H, W, Cp).astype(h_ref.dtype)

    # ---- conv2 + BN2 + ReLU (ReLU is inside `longway` in this module) ----
    r = conv3x3(h_ref[...], w2_ref)                    # (H*W, Cp) f32
    r = jnp.maximum(r * aff_ref[2] + aff_ref[3], 0.0)

    # ---- residual add + final ReLU ----
    iden = xp[1:H + 1, 1:W + 1, :].reshape(H * W, Cp).astype(jnp.float32)
    o_ref[0] = jnp.maximum(r + iden, 0.0).reshape(H, W, Cp).astype(o_ref.dtype)


# ----------------------------------------------------------------------------
# Wrapper: layout plumbing, BN folding, channel padding, pallas_call
# ----------------------------------------------------------------------------
def _fold_bn(conv_bias, gamma, beta, mean, var, eps=1e-5):
    scale = gamma / jnp.sqrt(var + eps)
    shift = beta + (conv_bias - mean) * scale
    return scale.astype(jnp.float32), shift.astype(jnp.float32)


def basic_block_forward(x_nchw, params, *, compute_dtype=jnp.float32):
    """BasicBlock forward.  x_nchw: (N, C, H, W) float32 (PyTorch layout).

    compute_dtype=jnp.bfloat16 casts activations/weights for the MXU matmuls
    (accumulation + BN/ReLU epilogue stay in f32) -- recommended on v6e/v7x.
    """
    x = jnp.transpose(x_nchw, (0, 2, 3, 1))            # -> NHWC
    N, H, W, C = x.shape
    Cp = ((C + 127) // 128) * 128                      # lane-dense channel pad

    s1, b1 = _fold_bn(params["b1"], params["g1"], params["beta1"],
                      params["m1"], params["v1"])
    s2, b2 = _fold_bn(params["b2"], params["g2"], params["beta2"],
                      params["m2"], params["v2"])
    aff = jnp.zeros((4, Cp), jnp.float32)
    aff = aff.at[0, :C].set(s1).at[1, :C].set(b1)
    aff = aff.at[2, :C].set(s2).at[3, :C].set(b2)

    def weight_slab(w):
        # (3,3,C,C) -> channel-padded (3,3,Cp,Cp) -> im2col slab (9*Cp, Cp)
        wp = jnp.zeros((3, 3, Cp, Cp), jnp.float32).at[:, :, :C, :C].set(w)
        return wp.reshape(9 * Cp, Cp).astype(compute_dtype)

    w1 = weight_slab(params["w1"])
    w2 = weight_slab(params["w2"])

    # Spatial pad by 1 (conv1 halo) + channel pad; identity is sliced from this
    # same buffer inside the kernel (input read once from HBM).
    xp = jnp.zeros((N, H + 2, W + 2, Cp), compute_dtype)
    xp = xp.at[:, 1:H + 1, 1:W + 1, :C].set(x.astype(compute_dtype))

    out = pl.pallas_call(
        _basic_block_kernel,
        out_shape=jax.ShapeDtypeStruct((N, H, W, Cp), jnp.float32),
        grid_spec=pltpu.PrefetchScalarGridSpec(
            num_scalar_prefetch=0,
            grid=(N,),
            in_specs=[
                pl.BlockSpec((1, H + 2, W + 2, Cp), lambda n: (n, 0, 0, 0)),
                pl.BlockSpec((9 * Cp, Cp), lambda n: (0, 0)),
                pl.BlockSpec((9 * Cp, Cp), lambda n: (0, 0)),
                pl.BlockSpec((4, Cp), lambda n: (0, 0)),
            ],
            out_specs=pl.BlockSpec((1, H, W, Cp), lambda n: (n, 0, 0, 0)),
            scratch_shapes=[pltpu.VMEM((H + 2, W + 2, Cp), compute_dtype)],
        ),
        compiler_params=pltpu.CompilerParams(
            dimension_semantics=("parallel",)),
    )(xp, w1, w2, aff)

    return jnp.transpose(out[:, :, :, :C], (0, 3, 1, 2))   # -> NCHW


# ----------------------------------------------------------------------------
# Pure-JAX reference for validation
# ----------------------------------------------------------------------------
def _ref_forward(x_nchw, params, eps=1e-5):
    def conv_bn_relu(x, w, b, g, beta, m, v):
        w_oihw = jnp.transpose(w, (3, 2, 0, 1))
        y = jax.lax.conv_general_dilated(
            x, w_oihw, window_strides=(1, 1), padding=((1, 1), (1, 1)),
            dimension_numbers=("NCHW", "OIHW", "NCHW"))
        y = y + b[None, :, None, None]
        y = (y - m[None, :, None, None]) / jnp.sqrt(v[None, :, None, None] + eps)
        y = y * g[None, :, None, None] + beta[None, :, None, None]
        return jnp.maximum(y, 0.0)

    h = conv_bn_relu(x_nchw, params["w1"], params["b1"], params["g1"],
                     params["beta1"], params["m1"], params["v1"])
    r = conv_bn_relu(h, params["w2"], params["b2"], params["g2"],
                     params["beta2"], params["m2"], params["v2"])
    return jnp.maximum(r + x_nchw, 0.0)


# ----------------------------------------------------------------------------
if __name__ == "__main__":
    N, C, H, W = 2, 8, 16, 16  # in_channels == out_channels, stride=1
    key = jax.random.PRNGKey(0)
    ks = jax.random.split(key, 12)

    params = {
        "w1": (jax.random.normal(ks[0], (3, 3, C, C), jnp.float32) * 0.1),
        "b1": (jax.random.normal(ks[1], (C,), jnp.float32) * 0.1),
        "g1": (1.0 + 0.1 * jax.random.normal(ks[2], (C,), jnp.float32)),
        "beta1": (0.05 * jax.random.normal(ks[3], (C,), jnp.float32)),
        "m1": (0.1 * jax.random.normal(ks[4], (C,), jnp.float32)),
        "v1": (0.5 + jax.random.uniform(ks[5], (C,), jnp.float32)),
        "w2": (jax.random.normal(ks[6], (3, 3, C, C), jnp.float32) * 0.1),
        "b2": (jax.random.normal(ks[7], (C,), jnp.float32) * 0.1),
        "g2": (1.0 + 0.1 * jax.random.normal(ks[8], (C,), jnp.float32)),
        "beta2": (0.05 * jax.random.normal(ks[9], (C,), jnp.float32)),
        "m2": jnp.zeros((C,), jnp.float32),
        "v2": (0.5 + jax.random.uniform(ks[10], (C,), jnp.float32)),
    }

    x = jax.random.normal(ks[11], (N, C, H, W), jnp.float32)

    ref = _ref_forward(x, params)

    # f32 path: strict validation.
    out = jax.block_until_ready(basic_block_forward(x, params))
    assert out.shape == (N, C, H, W)
    assert jnp.allclose(out, ref, rtol=1e-4, atol=1e-4), \
        float(jnp.max(jnp.abs(out - ref)))

    # bf16 compute path (v6e/v7x): loose tolerance vs f32 reference.
    out_bf16 = jax.block_until_ready(
        basic_block_forward(x, params, compute_dtype=jnp.bfloat16))
    assert jnp.allclose(out_bf16, ref, rtol=1e-1, atol=2e-1), \
        float(jnp.max(jnp.abs(out_bf16 - ref)))

    print("KERNEL_OK")
</pallas_src>

<mosaic_0001>
module attributes {stable_mosaic.version = 11 : i64} {
  func.func @_basic_block_kernel(%arg0: i32, %arg1: memref<1x18x18x128xf32, #tpu.memory_space<vmem>>, %arg2: memref<1152x128xf32, #tpu.memory_space<vmem>>, %arg3: memref<1152x128xf32, #tpu.memory_space<vmem>>, %arg4: memref<4x128xf32, #tpu.memory_space<vmem>>, %arg5: memref<1x16x16x128xf32, #tpu.memory_space<vmem>>, %arg6: memref<18x18x128xf32, #tpu.memory_space<vmem>>) attributes {dimension_semantics = [#tpu.dimension_semantics<parallel>], iteration_bounds = array<i64: 2>, scalar_prefetch = 0 : i64, scratch_operands = 1 : i64, tpu.core_type = #tpu.core_type<tc>, window_params = [{transform_indices = @transform_0, window_bounds = array<i64: 1, 18, 18, 128>}, {pipeline_mode = #tpu.pipeline_mode<synchronous>, transform_indices = @transform_1, window_bounds = array<i64: 1152, 128>}, {pipeline_mode = #tpu.pipeline_mode<synchronous>, transform_indices = @transform_2, window_bounds = array<i64: 1152, 128>}, {pipeline_mode = #tpu.pipeline_mode<synchronous>, transform_indices = @transform_3, window_bounds = array<i64: 4, 128>}, {transform_indices = @transform_4, window_bounds = array<i64: 1, 16, 16, 128>}]} {
    %c0 = arith.constant 0 : index
    %c0_0 = arith.constant 0 : index
    %c0_1 = arith.constant 0 : index
    %c0_2 = arith.constant 0 : index
    %0 = vector.load %arg1[%c0, %c0_0, %c0_1, %c0_2] : memref<1x18x18x128xf32, #tpu.memory_space<vmem>>, vector<1x18x18x128xf32>
    %1 = vector.shape_cast %0 : vector<1x18x18x128xf32> to vector<18x18x128xf32>
    %2 = vector.extract_strided_slice %1 {offsets = [0, 0, 0], sizes = [16, 16, 128], strides = [1, 1, 1]} : vector<18x18x128xf32> to vector<16x16x128xf32>
    %3 = vector.shape_cast %2 : vector<16x16x128xf32> to vector<256x128xf32>
    %4 = vector.extract_strided_slice %1 {offsets = [0, 1, 0], sizes = [16, 16, 128], strides = [1, 1, 1]} : vector<18x18x128xf32> to vector<16x16x128xf32>
    %5 = vector.shape_cast %4 : vector<16x16x128xf32> to vector<256x128xf32>
    %6 = vector.extract_strided_slice %1 {offsets = [0, 2, 0], sizes = [16, 16, 128], strides = [1, 1, 1]} : vector<18x18x128xf32> to vector<16x16x128xf32>
    %7 = vector.shape_cast %6 : vector<16x16x128xf32> to vector<256x128xf32>
    %8 = vector.extract_strided_slice %1 {offsets = [1, 0, 0], sizes = [16, 16, 128], strides = [1, 1, 1]} : vector<18x18x128xf32> to vector<16x16x128xf32>
    %9 = vector.shape_cast %8 : vector<16x16x128xf32> to vector<256x128xf32>
    %10 = vector.extract_strided_slice %1 {offsets = [1, 1, 0], sizes = [16, 16, 128], strides = [1, 1, 1]} : vector<18x18x128xf32> to vector<16x16x128xf32>
    %11 = vector.shape_cast %10 : vector<16x16x128xf32> to vector<256x128xf32>
    %12 = vector.extract_strided_slice %1 {offsets = [1, 2, 0], sizes = [16, 16, 128], strides = [1, 1, 1]} : vector<18x18x128xf32> to vector<16x16x128xf32>
    %13 = vector.shape_cast %12 : vector<16x16x128xf32> to vector<256x128xf32>
    %14 = vector.extract_strided_slice %1 {offsets = [2, 0, 0], sizes = [16, 16, 128], strides = [1, 1, 1]} : vector<18x18x128xf32> to vector<16x16x128xf32>
    %15 = vector.shape_cast %14 : vector<16x16x128xf32> to vector<256x128xf32>
    %16 = vector.extract_strided_slice %1 {offsets = [2, 1, 0], sizes = [16, 16, 128], strides = [1, 1, 1]} : vector<18x18x128xf32> to vector<16x16x128xf32>
    %17 = vector.shape_cast %16 : vector<16x16x128xf32> to vector<256x128xf32>
    %18 = vector.extract_strided_slice %1 {offsets = [2, 2, 0], sizes = [16, 16, 128], strides = [1, 1, 1]} : vector<18x18x128xf32> to vector<16x16x128xf32>
    %19 = vector.shape_cast %18 : vector<16x16x128xf32> to vector<256x128xf32>
    %20 = tpu.concatenate %3, %5, %7, %9, %11, %13, %15, %17, %19 in 1 : vector<256x128xf32>, vector<256x128xf32>, vector<256x128xf32>, vector<256x128xf32>, vector<256x128xf32>, vector<256x128xf32>, vector<256x128xf32>, vector<256x128xf32>, vector<256x128xf32> -> vector<256x1152xf32>
    %c0_3 = arith.constant 0 : index
    %c0_4 = arith.constant 0 : index
    %21 = vector.load %arg2[%c0_3, %c0_4] : memref<1152x128xf32, #tpu.memory_space<vmem>>, vector<1152x128xf32>
    %cst = arith.constant dense<0.000000e+00> : vector<256x128xf32>
    %22 = tpu.matmul %20, %21, %cst {dimension_numbers = #tpu.dot_dimension_numbers<[1], [0], [0], [1], [0, 0, 1, 1], [], []>} : vector<256x1152xf32>, vector<1152x128xf32>, vector<256x128xf32> -> vector<256x128xf32>
    %c0_5 = arith.constant 0 : index
    %c0_6 = arith.constant 0 : index
    %23 = vector.load %arg4[%c0_5, %c0_6] : memref<4x128xf32, #tpu.memory_space<vmem>>, vector<1x128xf32>
    %24 = vector.shape_cast %23 : vector<1x128xf32> to vector<128xf32>
    %25 = vector.shape_cast %24 : vector<128xf32> to vector<1x128xf32>
    %26 = vector.broadcast %25 : vector<1x128xf32> to vector<256x128xf32>
    %27 = arith.mulf %22, %26 : vector<256x128xf32>
    %c1 = arith.constant 1 : index
    %c0_7 = arith.constant 0 : index
    %28 = vector.load %arg4[%c1, %c0_7] : memref<4x128xf32, #tpu.memory_space<vmem>>, vector<1x128xf32>
    %29 = vector.shape_cast %28 : vector<1x128xf32> to vector<128xf32>
    %30 = vector.shape_cast %29 : vector<128xf32> to vector<1x128xf32>
    %31 = vector.broadcast %30 : vector<1x128xf32> to vector<256x128xf32>
    %32 = arith.addf %27, %31 : vector<256x128xf32>
    %cst_8 = arith.constant 0.000000e+00 : f32
    %33 = vector.broadcast %cst_8 : f32 to vector<256x128xf32>
    %34 = arith.maximumf %32, %33 : vector<256x128xf32>
    %cst_9 = arith.constant 0.000000e+00 : f32
    %35 = vector.broadcast %cst_9 : f32 to vector<18x18x128xf32>
    %c0_10 = arith.constant 0 : index
    %c0_11 = arith.constant 0 : index
    %c0_12 = arith.constant 0 : index
    %36 = vector.load %arg6[%c0_10, %c0_11, %c0_12] : memref<18x18x128xf32, #tpu.memory_space<vmem>>, vector<18x18x128xf32>
    tpu.vector_store %arg6[%c0_10, %c0_11, %c0_12], %35 {strides = array<i32>} : memref<18x18x128xf32, #tpu.memory_space<vmem>>, vector<18x18x128xf32>,
    %37 = vector.shape_cast %34 : vector<256x128xf32> to vector<16x16x128xf32>
    %c1_13 = arith.constant 1 : index
    %c1_14 = arith.constant 1 : index
    %c0_15 = arith.constant 0 : index
    %38 = vector.load %arg6[%c1_13, %c1_14, %c0_15] : memref<18x18x128xf32, #tpu.memory_space<vmem>>, vector<16x16x128xf32>
    tpu.vector_store %arg6[%c1_13, %c1_14, %c0_15], %37 {strides = array<i32>} : memref<18x18x128xf32, #tpu.memory_space<vmem>>, vector<16x16x128xf32>,
    %c0_16 = arith.constant 0 : index
    %c0_17 = arith.constant 0 : index
    %c0_18 = arith.constant 0 : index
    %39 = vector.load %arg6[%c0_16, %c0_17, %c0_18] : memref<18x18x128xf32, #tpu.memory_space<vmem>>, vector<18x18x128xf32>
    %40 = vector.extract_strided_slice %39 {offsets = [0, 0, 0], sizes = [16, 16, 128], strides = [1, 1, 1]} : vector<18x18x128xf32> to vector<16x16x128xf32>
    %41 = vector.shape_cast %40 : vector<16x16x128xf32> to vector<256x128xf32>
    %42 = vector.extract_strided_slice %39 {offsets = [0, 1, 0], sizes = [16, 16, 128], strides = [1, 1, 1]} : vector<18x18x128xf32> to vector<16x16x128xf32>
    %43 = vector.shape_cast %42 : vector<16x16x128xf32> to vector<256x128xf32>
    %44 = vector.extract_strided_slice %39 {offsets = [0, 2, 0], sizes = [16, 16, 128], strides = [1, 1, 1]} : vector<18x18x128xf32> to vector<16x16x128xf32>
    %45 = vector.shape_cast %44 : vector<16x16x128xf32> to vector<256x128xf32>
    %46 = vector.extract_strided_slice %39 {offsets = [1, 0, 0], sizes = [16, 16, 128], strides = [1, 1, 1]} : vector<18x18x128xf32> to vector<16x16x128xf32>
    %47 = vector.shape_cast %46 : vector<16x16x128xf32> to vector<256x128xf32>
    %48 = vector.extract_strided_slice %39 {offsets = [1, 1, 0], sizes = [16, 16, 128], strides = [1, 1, 1]} : vector<18x18x128xf32> to vector<16x16x128xf32>
    %49 = vector.shape_cast %48 : vector<16x16x128xf32> to vector<256x128xf32>
    %50 = vector.extract_strided_slice %39 {offsets = [1, 2, 0], sizes = [16, 16, 128], strides = [1, 1, 1]} : vector<18x18x128xf32> to vector<16x16x128xf32>
    %51 = vector.shape_cast %50 : vector<16x16x128xf32> to vector<256x128xf32>
    %52 = vector.extract_strided_slice %39 {offsets = [2, 0, 0], sizes = [16, 16, 128], strides = [1, 1, 1]} : vector<18x18x128xf32> to vector<16x16x128xf32>
    %53 = vector.shape_cast %52 : vector<16x16x128xf32> to vector<256x128xf32>
    %54 = vector.extract_strided_slice %39 {offsets = [2, 1, 0], sizes = [16, 16, 128], strides = [1, 1, 1]} : vector<18x18x128xf32> to vector<16x16x128xf32>
    %55 = vector.shape_cast %54 : vector<16x16x128xf32> to vector<256x128xf32>
    %56 = vector.extract_strided_slice %39 {offsets = [2, 2, 0], sizes = [16, 16, 128], strides = [1, 1, 1]} : vector<18x18x128xf32> to vector<16x16x128xf32>
    %57 = vector.shape_cast %56 : vector<16x16x128xf32> to vector<256x128xf32>
    %58 = tpu.concatenate %41, %43, %45, %47, %49, %51, %53, %55, %57 in 1 : vector<256x128xf32>, vector<256x128xf32>, vector<256x128xf32>, vector<256x128xf32>, vector<256x128xf32>, vector<256x128xf32>, vector<256x128xf32>, vector<256x128xf32>, vector<256x128xf32> -> vector<256x1152xf32>
    %c0_19 = arith.constant 0 : index
    %c0_20 = arith.constant 0 : index
    %59 = vector.load %arg3[%c0_19, %c0_20] : memref<1152x128xf32, #tpu.memory_space<vmem>>, vector<1152x128xf32>
    %cst_21 = arith.constant dense<0.000000e+00> : vector<256x128xf32>
    %60 = tpu.matmul %58, %59, %cst_21 {dimension_numbers = #tpu.dot_dimension_numbers<[1], [0], [0], [1], [0, 0, 1, 1], [], []>} : vector<256x1152xf32>, vector<1152x128xf32>, vector<256x128xf32> -> vector<256x128xf32>
    %c2 = arith.constant 2 : index
    %c0_22 = arith.constant 0 : index
    %61 = vector.load %arg4[%c2, %c0_22] : memref<4x128xf32, #tpu.memory_space<vmem>>, vector<1x128xf32>
    %62 = vector.shape_cast %61 : vector<1x128xf32> to vector<128xf32>
    %63 = vector.shape_cast %62 : vector<128xf32> to vector<1x128xf32>
    %64 = vector.broadcast %63 : vector<1x128xf32> to vector<256x128xf32>
    %65 = arith.mulf %60, %64 : vector<256x128xf32>
    %c3 = arith.constant 3 : index
    %c0_23 = arith.constant 0 : index
    %66 = vector.load %arg4[%c3, %c0_23] : memref<4x128xf32, #tpu.memory_space<vmem>>, vector<1x128xf32>
    %67 = vector.shape_cast %66 : vector<1x128xf32> to vector<128xf32>
    %68 = vector.shape_cast %67 : vector<128xf32> to vector<1x128xf32>
    %69 = vector.broadcast %68 : vector<1x128xf32> to vector<256x128xf32>
    %70 = arith.addf %65, %69 : vector<256x128xf32>
    %cst_24 = arith.constant 0.000000e+00 : f32
    %71 = vector.broadcast %cst_24 : f32 to vector<256x128xf32>
    %72 = arith.maximumf %70, %71 : vector<256x128xf32>
    %73 = vector.extract_strided_slice %1 {offsets = [1, 1, 0], sizes = [16, 16, 128], strides = [1, 1, 1]} : vector<18x18x128xf32> to vector<16x16x128xf32>
    %74 = vector.shape_cast %73 : vector<16x16x128xf32> to vector<256x128xf32>
    %75 = arith.addf %72, %74 : vector<256x128xf32>
    %cst_25 = arith.constant 0.000000e+00 : f32
    %76 = vector.broadcast %cst_25 : f32 to vector<256x128xf32>
    %77 = arith.maximumf %75, %76 : vector<256x128xf32>
    %78 = vector.shape_cast %77 : vector<256x128xf32> to vector<16x16x128xf32>
    %c0_26 = arith.constant 0 : index
    %c0_27 = arith.constant 0 : index
    %c0_28 = arith.constant 0 : index
    %c0_29 = arith.constant 0 : index
    %79 = vector.load %arg5[%c0_26, %c0_27, %c0_28, %c0_29] : memref<1x16x16x128xf32, #tpu.memory_space<vmem>>, vector<1x16x16x128xf32>
    %80 = vector.shape_cast %79 : vector<1x16x16x128xf32> to vector<16x16x128xf32>
    %81 = vector.shape_cast %78 : vector<16x16x128xf32> to vector<1x16x16x128xf32>
    tpu.vector_store %arg5[%c0_26, %c0_27, %c0_28, %c0_29], %81 {strides = array<i32>} : memref<1x16x16x128xf32, #tpu.memory_space<vmem>>, vector<1x16x16x128xf32>,
    return
  }
  func.func @transform_0(%arg0: i32) -> (i32, i32, i32, i32) {
    %c0_i32 = arith.constant 0 : i32
    %c0_i32_0 = arith.constant 0 : i32
    %c0_i32_1 = arith.constant 0 : i32
    %c0_i32_2 = arith.constant 0 : i32
    return %arg0, %c0_i32, %c0_i32_0, %c0_i32_1 : i32, i32, i32, i32
  }
  func.func @transform_1(%arg0: i32) -> (i32, i32) {
    %c0_i32 = arith.constant 0 : i32
    %c0_i32_0 = arith.constant 0 : i32
    %c0_i32_1 = arith.constant 0 : i32
    return %c0_i32, %c0_i32_0 : i32, i32
  }
  func.func @transform_2(%arg0: i32) -> (i32, i32) {
    %c0_i32 = arith.constant 0 : i32
    %c0_i32_0 = arith.constant 0 : i32
    %c0_i32_1 = arith.constant 0 : i32
    return %c0_i32, %c0_i32_0 : i32, i32
  }
  func.func @transform_3(%arg0: i32) -> (i32, i32) {
    %c0_i32 = arith.constant 0 : i32
    %c0_i32_0 = arith.constant 0 : i32
    %c0_i32_1 = arith.constant 0 : i32
    return %c0_i32, %c0_i32_0 : i32, i32
  }
  func.func @transform_4(%arg0: i32) -> (i32, i32, i32, i32) {
    %c0_i32 = arith.constant 0 : i32
    %c0_i32_0 = arith.constant 0 : i32
    %c0_i32_1 = arith.constant 0 : i32
    %c0_i32_2 = arith.constant 0 : i32
    return %arg0, %c0_i32, %c0_i32_0, %c0_i32_1 : i32, i32, i32, i32
  }
}

</mosaic_0001>

<llo_original>
// kernel: tpu_custom_call.1
$region0: #{tpu_custom_call.1}
  #allocation0 [shape = 'u32[]', space=smem, size = 0x4, offset = 0x4, fixed_abs, tag = 'smem constant byte address 0x4 - core index']
  #allocation1 [shape = 'u32[144,128]{1,0:T(1,128)}', space=vmem, size = 0x12000, scoped, tag = 'internal scratch']
  #allocation2 [shape = 'f32[18,18,128]{2,1,0:T(8,128)}', space=vmem, size = 0x36000, scoped, tag = 'scratch operand']
  %s0 = inlined_call_operand.vmem [shape: f32[2,18,18,128], index: 0, kind: input, shape index: {}]
  %s1 = inlined_call_operand.vmem [shape: f32[1152,128], index: 1, kind: input, shape index: {}]
  %s2 = inlined_call_operand.hbm [shape: f32[1152,128], index: 2, kind: input, shape index: {}]
  %s3 = inlined_call_operand.vmem [shape: f32[4,128], index: 3, kind: input, shape index: {}]
  %s4 = inlined_call_operand.hbm [shape: f32[2,16,16,128], index: 4, kind: output, shape index: {}]
  %s5 = sld [smem:[#allocation0]]
  $region53: #{tpu_custom_call.1} parent=0
    _
  %s7 = ssub.s32 1, %s5
  %s8 = scalar_select 0, %s7, %s5
  $region1: #{tpu_custom_call.1} parent=0
    #allocation3 [shape = 'u8[589824]{0}', space=vmem, size = 0x90000, scoped, tag = 'input window, operand 2, single buffered']
    #allocation4 [shape = 's32[2]{0}', space=sflag, size = 0x8, scoped, tag = 'scoped memory for tpu_custom_call.1']
    #allocation5 [shape = 's32[2]{0}', space=sflag, size = 0x8, scoped, tag = 'scoped memory for tpu_custom_call.1']
    #allocation6 [shape = 'u8[262144]{0}', space=vmem, size = 0x40000, scoped, tag = 'output window, operand 0']
    %9 = vsyncpa [#allocation4], 0
    %10 = vsyncpa [#allocation5], 0
    %s11 = scalar_lea.sflag [#allocation5], 1
    %12 = vsyncpa %s11, 0
    loop: start=0, step=1, limit=4
    $region2: #{tpu_custom_call.1} parent=1 // loop_pre_header
      _
    $region3: #{tpu_custom_call.1} parent=1 // loop_header
      %s14 = sphi 0, %s18
      %p15 = scmp.ge.s32.totalorder %s14, 4
      %s24 = sphi 0, %s26
      %s27 = sphi 0, %s24
      %s28 = sphi 0, %s27
      %s44 = sphi 0, %s28
      %s48 = sphi 0, %s48
      %s50 = sphi 0, %s48
      %s51 = sphi 0, %s50
      %s65 = sphi 0, %s51
      %s69 = sphi 0, %s69
      %s71 = sphi 0, %s69
      %s72 = sphi 0, %s71
      %s86 = sphi 0, %s72
      %s90 = sphi 0, %s90
      %s92 = sphi 0, %s90
      %s93 = sphi 0, %s92
      %s107 = sphi 0, %s93
      %s113 = sphi 0, %s115
      %s116 = sphi 0, %s113
      %s117 = sphi 0, %s116
      %s133 = sphi 0, %s117
    $region4: #{tpu_custom_call.1} parent=1 // loop_header_branch
      %17 = sbr.rel (%p15) target = $region8
    $region5: #{tpu_custom_call.1} parent=1 // loop_body
      %s19 = ssub.s32 %s14, 1
      %s20 = ssub.s32 %s14, 2
      %s21 = sadd.s32 %s14, 1
      %s22 = ssub.s32 %s14, %s21
      %p23 = scmp.eq.s32.totalorder %s22, 0
      %s25 = sadd.s32 %s24, 1
      %s26 = scalar_select %p23, %s24, %s25
      %p29 = pneg %p23
      %p30 = scmp.eq.s32.totalorder %s14, 1
      %p31 = por %p29, %p30
      %p32 = scmp.ne.s32.totalorder %s24, %s27
      %p33 = scmp.eq.s32.totalorder %s14, 0
      %p34 = por %p32, %p33
      %p35 = scmp.ne.s32.totalorder %s24, %s27
      %p36 = scmp.eq.s32.totalorder %s19, 1
      %p37 = por %p35, %p36
      %p38 = scmp.ne.s32.totalorder %s27, %s28
      %p39 = scmp.eq.s32.totalorder %s19, 0
      %p40 = por %p38, %p39
      %p41 = scmp.ne.s32.totalorder %s27, %s28
      %p42 = scmp.eq.s32.totalorder %s20, 1
      %p43 = por %p41, %p42
      %p45 = scmp.ne.s32.totalorder %s28, %s44
      %p46 = scmp.eq.s32.totalorder %s20, 0
      %p47 = por %p45, %p46
      %s49 = sadd.s32 %s48, 1
      %p52 = scmp.eq.s32.totalorder %s14, 1
      %p53 = scmp.ne.s32.totalorder %s48, %s50
      %p54 = scmp.eq.s32.totalorder %s14, 0
      %p55 = por %p53, %p54
      %p56 = scmp.ne.s32.totalorder %s48, %s50
      %p57 = scmp.eq.s32.totalorder %s19, 1
      %p58 = por %p56, %p57
      %p59 = scmp.ne.s32.totalorder %s50, %s51
      %p60 = scmp.eq.s32.totalorder %s19, 0
      %p61 = por %p59, %p60
      %p62 = scmp.ne.s32.totalorder %s50, %s51
      %p63 = scmp.eq.s32.totalorder %s20, 1
      %p64 = por %p62, %p63
      %p66 = scmp.ne.s32.totalorder %s51, %s65
      %p67 = scmp.eq.s32.totalorder %s20, 0
      %p68 = por %p66, %p67
      %s70 = sadd.s32 %s69, 1
      %p73 = scmp.eq.s32.totalorder %s14, 1
      %p74 = scmp.ne.s32.totalorder %s69, %s71
      %p75 = scmp.eq.s32.totalorder %s14, 0
      %p76 = por %p74, %p75
      %p77 = scmp.ne.s32.totalorder %s69, %s71
      %p78 = scmp.eq.s32.totalorder %s19, 1
      %p79 = por %p77, %p78
      %p80 = scmp.ne.s32.totalorder %s71, %s72
      %p81 = scmp.eq.s32.totalorder %s19, 0
      %p82 = por %p80, %p81
      %p83 = scmp.ne.s32.totalorder %s71, %s72
      %p84 = scmp.eq.s32.totalorder %s20, 1
      %p85 = por %p83, %p84
      %p87 = scmp.ne.s32.totalorder %s72, %s86
      %p88 = scmp.eq.s32.totalorder %s20, 0
      %p89 = por %p87, %p88
      %s91 = sadd.s32 %s90, 1
      %p94 = scmp.eq.s32.totalorder %s14, 1
      %p95 = scmp.ne.s32.totalorder %s90, %s92
      %p96 = scmp.eq.s32.totalorder %s14, 0
      %p97 = por %p95, %p96
      %p98 = scmp.ne.s32.totalorder %s90, %s92
      %p99 = scmp.eq.s32.totalorder %s19, 1
      %p100 = por %p98, %p99
      %p101 = scmp.ne.s32.totalorder %s92, %s93
      %p102 = scmp.eq.s32.totalorder %s19, 0
      %p103 = por %p101, %p102
      %p104 = scmp.ne.s32.totalorder %s92, %s93
      %p105 = scmp.eq.s32.totalorder %s20, 1
      %p106 = por %p104, %p105
      %p108 = scmp.ne.s32.totalorder %s93, %s107
      %p109 = scmp.eq.s32.totalorder %s20, 0
      %p110 = por %p108, %p109
      %s111 = ssub.s32 %s14, %s21
      %p112 = scmp.eq.s32.totalorder %s111, 0
      %s114 = sadd.s32 %s113, 1
      %s115 = scalar_select %p112, %s113, %s114
      %p118 = pneg %p112
      %p119 = scmp.eq.s32.totalorder %s14, 1
      %p120 = por %p118, %p119
      %p121 = scmp.ne.s32.totalorder %s113, %s116
      %p122 = scmp.eq.s32.totalorder %s14, 0
      %p123 = por %p121, %p122
      %p124 = scmp.ne.s32.totalorder %s113, %s116
      %p125 = scmp.eq.s32.totalorder %s19, 1
      %p126 = por %p124, %p125
      %p127 = scmp.ne.s32.totalorder %s116, %s117
      %p128 = scmp.eq.s32.totalorder %s19, 0
      %p129 = por %p127, %p128
      %p130 = scmp.ne.s32.totalorder %s116, %s117
      %p131 = scmp.eq.s32.totalorder %s20, 1
      %p132 = por %p130, %p131
      %p134 = scmp.ne.s32.totalorder %s117, %s133
      %p135 = scmp.eq.s32.totalorder %s20, 0
      %p136 = por %p134, %p135
      %p137 = scmp.le.s32.totalorder 1, %s14
      %p138 = scmp.lt.s32.totalorder %s14, 3
      %p139 = pnand %p137, %p138
      %p140 = pneg %p139
      // Predicated region
      $region9: #{tpu_custom_call.1} parent=5 // pred_check
        _
      $region10: #{tpu_custom_call.1} parent=5 // pred_check_branch
        %142 = sbr.rel (%p139) target = $region12
      $region11: #{tpu_custom_call.1} parent=5 // pred_region
        %s143 = ssub.s32 %s14, 1
        // Predicated region
        $region13: #{tpu_custom_call.1} parent=11 // pred_check
          %p144 = pneg %p61
        $region14: #{tpu_custom_call.1} parent=11 // pred_check_branch
          %146 = sbr.rel (%p144) target = $region16
        $region15: #{tpu_custom_call.1} parent=11 // pred_region
          _
        $region16: #{tpu_custom_call.1} parent=11 // pred_fallthru
          _
        // Predicated region
        $region17: #{tpu_custom_call.1} parent=11 // pred_check
          %p147 = pneg %p82
        $region18: #{tpu_custom_call.1} parent=11 // pred_check_branch
          %149 = sbr.rel (%p147) target = $region20
        $region19: #{tpu_custom_call.1} parent=11 // pred_region
          %s151 = ssub.s32 18432, 18432
          %152 = vsyncadd [#allocation4], %s151
          %s153 = sshll.u32 [#allocation3], 4
          %s154 = int_to_ptr.vmem [resolvable:$true] %s153
          %159 = dma.hbm_to_vmem [thread:$0]  %s2, 18432, %s154, [#allocation4], 128, 128, 8
        $region20: #{tpu_custom_call.1} parent=11 // pred_fallthru
          _
        // Predicated region
        $region21: #{tpu_custom_call.1} parent=11 // pred_check
          %p160 = pneg %p103
        $region22: #{tpu_custom_call.1} parent=11 // pred_check_branch
          %162 = sbr.rel (%p160) target = $region24
        $region23: #{tpu_custom_call.1} parent=11 // pred_region
          _
        $region24: #{tpu_custom_call.1} parent=11 // pred_fallthru
          _
      $region12: #{tpu_custom_call.1} parent=5 // pred_fallthru
        _
      %p163 = scmp.lt.s32.totalorder %s14, 2
      // Predicated region
      $region25: #{tpu_custom_call.1} parent=5 // pred_check
        %p164 = pneg %p163
      $region26: #{tpu_custom_call.1} parent=5 // pred_check_branch
        %166 = sbr.rel (%p164) target = $region28
      $region27: #{tpu_custom_call.1} parent=5 // pred_region
        // Predicated region
        $region29: #{tpu_custom_call.1} parent=27 // pred_check
          %p167 = pneg %p34
        $region30: #{tpu_custom_call.1} parent=27 // pred_check_branch
          %169 = sbr.rel (%p167) target = $region32
        $region31: #{tpu_custom_call.1} parent=27 // pred_region
          %p170 = scmp.lt.s32.totalorder %s14, 1
          %s171 = scalar_select %p170, %s14, 1
          %s172 = smul.addr %s171, 54
          %s173 = smul.addr %s172, 8
          %s174 = scalar_lea.vmem %s0, %s173
        $region32: #{tpu_custom_call.1} parent=27 // pred_fallthru
          _
      $region28: #{tpu_custom_call.1} parent=5 // pred_fallthru
        _
      %p175 = scmp.le.s32.totalorder 1, %s14
      %p176 = scmp.lt.s32.totalorder %s14, 3
      %p177 = pnand %p175, %p176
      %p178 = pneg %p177
      // Predicated region
      $region33: #{tpu_custom_call.1} parent=5 // pred_check
        _
      $region34: #{tpu_custom_call.1} parent=5 // pred_check_branch
        %180 = sbr.rel (%p177) target = $region36
      $region35: #{tpu_custom_call.1} parent=5 // pred_region
        %s181 = ssub.s32 %s14, 1
        // Predicated region
        $region37: #{tpu_custom_call.1} parent=35 // pred_check
          %p182 = pneg %p82
        $region38: #{tpu_custom_call.1} parent=35 // pred_check_branch
          %184 = sbr.rel (%p182) target = $region40
        $region39: #{tpu_custom_call.1} parent=35 // pred_region
          %185 = dma.done [#allocation4], 18432
        $region40: #{tpu_custom_call.1} parent=35 // pred_fallthru
          _
        %p186 = scmp.lt.s32.totalorder %s19, 1
        %s187 = scalar_select %p186, %s19, 1
        %s188 = smul.addr %s187, 54
        %s189 = smul.addr %s188, 8
        %s190 = scalar_lea.vmem %s0, %s189
        %p191 = pneg %p40
        %p192 = pneg %p37
        %p193 = pneg %p61
        %p194 = pneg %p58
        %p195 = pneg %p82
        %p196 = pneg %p79
        %p197 = pneg %p103
        %p198 = pneg %p100
        %p199 = pneg %p129
        %p200 = pneg %p126
        %s201 = sand.u32 %s116, 1
        %s202 = scalar_lea.sflag [#allocation5], %s201
        %s203 = sand.u32 %s116, 1
        %s204 = smul.addr %s203, 256
        %s205 = scalar_lea.vmem [#allocation6], %s204
        %p206 = scmp.lt.s32.totalorder %s19, 1
        %s207 = scalar_select %p206, %s19, 1
        %s208 = smul.addr %s207, 54
        %s209 = smul.addr %s208, 8
        %s210 = scalar_lea.vmem %s0, %s209
        %v211 = vld [vmem:[%s210] sm:$0xff]
        %v212 = vld [vmem:[%s210 + $0x8] sm:$0xff]
        %v213 = vld [vmem:[%s210 + $0x10] sm:$0x3]
        %v214 = vld [vmem:[%s210 + $0x18] sm:$0xff]
        %v215 = vld [vmem:[%s210 + $0x20] sm:$0xff]
        %v216 = vld [vmem:[%s210 + $0x28] sm:$0x3]
        %v217 = vld [vmem:[%s210 + $0x30] sm:$0xff]
        %v218 = vld [vmem:[%s210 + $0x38] sm:$0xff]
        %v219 = vld [vmem:[%s210 + $0x40] sm:$0x3]
        %v220 = vld [vmem:[%s210 + $0x48] sm:$0xff]
        %v221 = vld [vmem:[%s210 + $0x50] sm:$0xff]
        %v222 = vld [vmem:[%s210 + $0x58] sm:$0x3]
        %v223 = vld [vmem:[%s210 + $0x60] sm:$0xff]
        %v224 = vld [vmem:[%s210 + $0x68] sm:$0xff]
        %v225 = vld [vmem:[%s210 + $0x70] sm:$0x3]
        %v226 = vld [vmem:[%s210 + $0x78] sm:$0xff]
        %v227 = vld [vmem:[%s210 + $0x80] sm:$0xff]
        %v228 = vld [vmem:[%s210 + $0x88] sm:$0x3]
        %v229 = vld [vmem:[%s210 + $0x90] sm:$0xff]
        %v230 = vld [vmem:[%s210 + $0x98] sm:$0xff]
        %v231 = vld [vmem:[%s210 + $0xa0] sm:$0x3]
        %v232 = vld [vmem:[%s210 + $0xa8] sm:$0xff]
        %v233 = vld [vmem:[%s210 + $0xb0] sm:$0xff]
        %v234 = vld [vmem:[%s210 + $0xb8] sm:$0x3]
        %v235 = vld [vmem:[%s210 + $0xc0] sm:$0xff]
        %v236 = vld [vmem:[%s210 + $0xc8] sm:$0xff]
        %v237 = vld [vmem:[%s210 + $0xd0] sm:$0x3]
        %v238 = vld [vmem:[%s210 + $0xd8] sm:$0xff]
        %v239 = vld [vmem:[%s210 + $0xe0] sm:$0xff]
        %v240 = vld [vmem:[%s210 + $0xe8] sm:$0x3]
        %v241 = vld [vmem:[%s210 + $0xf0] sm:$0xff]
        %v242 = vld [vmem:[%s210 + $0xf8] sm:$0xff]
        %v243 = vld [vmem:[%s210 + $0x100] sm:$0x3]
        %v244 = vld [vmem:[%s210 + $0x108] sm:$0xff]
        %v245 = vld [vmem:[%s210 + $0x110] sm:$0xff]
        %v246 = vld [vmem:[%s210 + $0x118] sm:$0x3]
        %v247 = vld [vmem:[%s210 + $0x120] sm:$0xff]
        %v248 = vld [vmem:[%s210 + $0x128] sm:$0xff]
        %v249 = vld [vmem:[%s210 + $0x130] sm:$0x3]
        %v250 = vld [vmem:[%s210 + $0x138] sm:$0xff]
        %v251 = vld [vmem:[%s210 + $0x140] sm:$0xff]
        %v252 = vld [vmem:[%s210 + $0x148] sm:$0x3]
        %v253 = vld [vmem:[%s210 + $0x150] sm:$0xff]
        %v254 = vld [vmem:[%s210 + $0x158] sm:$0xff]
        %v255 = vld [vmem:[%s210 + $0x160] sm:$0x3]
        %v256 = vld [vmem:[%s210 + $0x168] sm:$0xff]
        %v257 = vld [vmem:[%s210 + $0x170] sm:$0xff]
        %v258 = vld [vmem:[%s210 + $0x178] sm:$0x3]
        %v259 = vld [vmem:[%s210 + $0x180] sm:$0xff]
        %v260 = vld [vmem:[%s210 + $0x188] sm:$0xff]
        %v261 = vld [vmem:[%s210 + $0x190] sm:$0x3]
        %v262 = vld [vmem:[%s210 + $0x198] sm:$0xff]
        %v263 = vld [vmem:[%s210 + $0x1a0] sm:$0xff]
        %v264 = vld [vmem:[%s210 + $0x1a8] sm:$0x3]
        %vm313 = vcmask 1046528
        %v314 = vrot.slane %v211, 1
        %v315 = vrot.slane %v212, 1
        %v316 = vsel %vm313, %v314, %v315
        %v317 = vrot.slane %v213, 1
        %v318 = vsel %vm313, %v315, %v317
        %v319 = vrot.slane %v214, 1
        %v320 = vrot.slane %v215, 1
        %v321 = vsel %vm313, %v319, %v320
        %v322 = vrot.slane %v216, 1
        %v323 = vsel %vm313, %v320, %v322
        %v324 = vrot.slane %v217, 1
        %v325 = vrot.slane %v218, 1
        %v326 = vsel %vm313, %v324, %v325
        %v327 = vrot.slane %v219, 1
        %v328 = vsel %vm313, %v325, %v327
        %v329 = vrot.slane %v220, 1
        %v330 = vrot.slane %v221, 1
        %v331 = vsel %vm313, %v329, %v330
        %v332 = vrot.slane %v222, 1
        %v333 = vsel %vm313, %v330, %v332
        %v334 = vrot.slane %v223, 1
        %v335 = vrot.slane %v224, 1
        %v336 = vsel %vm313, %v334, %v335
        %v337 = vrot.slane %v225, 1
        %v338 = vsel %vm313, %v335, %v337
        %v339 = vrot.slane %v226, 1
        %v340 = vrot.slane %v227, 1
        %v341 = vsel %vm313, %v339, %v340
        %v342 = vrot.slane %v228, 1
        %v343 = vsel %vm313, %v340, %v342
        %v344 = vrot.slane %v229, 1
        %v345 = vrot.slane %v230, 1
        %v346 = vsel %vm313, %v344, %v345
        %v347 = vrot.slane %v231, 1
        %v348 = vsel %vm313, %v345, %v347
        %v349 = vrot.slane %v232, 1
        %v350 = vrot.slane %v233, 1
        %v351 = vsel %vm313, %v349, %v350
        %v352 = vrot.slane %v234, 1
        %v353 = vsel %vm313, %v350, %v352
        %v354 = vrot.slane %v235, 1
        %v355 = vrot.slane %v236, 1
        %v356 = vsel %vm313, %v354, %v355
        %v357 = vrot.slane %v237, 1
        %v358 = vsel %vm313, %v355, %v357
        %v359 = vrot.slane %v238, 1
        %v360 = vrot.slane %v239, 1
        %v361 = vsel %vm313, %v359, %v360
        %v362 = vrot.slane %v240, 1
        %v363 = vsel %vm313, %v360, %v362
        %v364 = vrot.slane %v241, 1
        %v365 = vrot.slane %v242, 1
        %v366 = vsel %vm313, %v364, %v365
        %v367 = vrot.slane %v243, 1
        %v368 = vsel %vm313, %v365, %v367
        %v369 = vrot.slane %v244, 1
        %v370 = vrot.slane %v245, 1
        %v371 = vsel %vm313, %v369, %v370
        %v372 = vrot.slane %v246, 1
        %v373 = vsel %vm313, %v370, %v372
        %v374 = vrot.slane %v247, 1
        %v375 = vrot.slane %v248, 1
        %v376 = vsel %vm313, %v374, %v375
        %v377 = vrot.slane %v249, 1
        %v378 = vsel %vm313, %v375, %v377
        %v379 = vrot.slane %v250, 1
        %v380 = vrot.slane %v251, 1
        %v381 = vsel %vm313, %v379, %v380
        %v382 = vrot.slane %v252, 1
        %v383 = vsel %vm313, %v380, %v382
        %v384 = vrot.slane %v253, 1
        %v385 = vrot.slane %v254, 1
        %v386 = vsel %vm313, %v384, %v385
        %v387 = vrot.slane %v255, 1
        %v388 = vsel %vm313, %v385, %v387
        %v389 = vrot.slane %v256, 1
        %v390 = vrot.slane %v257, 1
        %v391 = vsel %vm313, %v389, %v390
        %v392 = vrot.slane %v258, 1
        %v393 = vsel %vm313, %v390, %v392
        %vm426 = vcmask 1045504
        %v427 = vrot.slane %v211, 2
        %v428 = vrot.slane %v212, 2
        %v429 = vsel %vm426, %v427, %v428
        %v430 = vrot.slane %v213, 2
        %v431 = vsel %vm426, %v428, %v430
        %v432 = vrot.slane %v214, 2
        %v433 = vrot.slane %v215, 2
        %v434 = vsel %vm426, %v432, %v433
        %v435 = vrot.slane %v216, 2
        %v436 = vsel %vm426, %v433, %v435
        %v437 = vrot.slane %v217, 2
        %v438 = vrot.slane %v218, 2
        %v439 = vsel %vm426, %v437, %v438
        %v440 = vrot.slane %v219, 2
        %v441 = vsel %vm426, %v438, %v440
        %v442 = vrot.slane %v220, 2
        %v443 = vrot.slane %v221, 2
        %v444 = vsel %vm426, %v442, %v443
        %v445 = vrot.slane %v222, 2
        %v446 = vsel %vm426, %v443, %v445
        %v447 = vrot.slane %v223, 2
        %v448 = vrot.slane %v224, 2
        %v449 = vsel %vm426, %v447, %v448
        %v450 = vrot.slane %v225, 2
        %v451 = vsel %vm426, %v448, %v450
        %v452 = vrot.slane %v226, 2
        %v453 = vrot.slane %v227, 2
        %v454 = vsel %vm426, %v452, %v453
        %v455 = vrot.slane %v228, 2
        %v456 = vsel %vm426, %v453, %v455
        %v457 = vrot.slane %v229, 2
        %v458 = vrot.slane %v230, 2
        %v459 = vsel %vm426, %v457, %v458
        %v460 = vrot.slane %v231, 2
        %v461 = vsel %vm426, %v458, %v460
        %v462 = vrot.slane %v232, 2
        %v463 = vrot.slane %v233, 2
        %v464 = vsel %vm426, %v462, %v463
        %v465 = vrot.slane %v234, 2
        %v466 = vsel %vm426, %v463, %v465
        %v467 = vrot.slane %v235, 2
        %v468 = vrot.slane %v236, 2
        %v469 = vsel %vm426, %v467, %v468
        %v470 = vrot.slane %v237, 2
        %v471 = vsel %vm426, %v468, %v470
        %v472 = vrot.slane %v238, 2
        %v473 = vrot.slane %v239, 2
        %v474 = vsel %vm426, %v472, %v473
        %v475 = vrot.slane %v240, 2
        %v476 = vsel %vm426, %v473, %v475
        %v477 = vrot.slane %v241, 2
        %v478 = vrot.slane %v242, 2
        %v479 = vsel %vm426, %v477, %v478
        %v480 = vrot.slane %v243, 2
        %v481 = vsel %vm426, %v478, %v480
        %v482 = vrot.slane %v244, 2
        %v483 = vrot.slane %v245, 2
        %v484 = vsel %vm426, %v482, %v483
        %v485 = vrot.slane %v246, 2
        %v486 = vsel %vm426, %v483, %v485
        %v487 = vrot.slane %v247, 2
        %v488 = vrot.slane %v248, 2
        %v489 = vsel %vm426, %v487, %v488
        %v490 = vrot.slane %v249, 2
        %v491 = vsel %vm426, %v488, %v490
        %v492 = vrot.slane %v250, 2
        %v493 = vrot.slane %v251, 2
        %v494 = vsel %vm426, %v492, %v493
        %v495 = vrot.slane %v252, 2
        %v496 = vsel %vm426, %v493, %v495
        %v497 = vrot.slane %v253, 2
        %v498 = vrot.slane %v254, 2
        %v499 = vsel %vm426, %v497, %v498
        %v500 = vrot.slane %v255, 2
        %v501 = vsel %vm426, %v498, %v500
        %v502 = vrot.slane %v256, 2
        %v503 = vrot.slane %v257, 2
        %v504 = vsel %vm426, %v502, %v503
        %v505 = vrot.slane %v258, 2
        %v506 = vsel %vm426, %v503, %v505
        %v542 = vrot.slane %v259, 1
        %v543 = vrot.slane %v260, 1
        %v544 = vsel %vm313, %v542, %v543
        %v545 = vrot.slane %v261, 1
        %v546 = vsel %vm313, %v543, %v545
        %v549 = vrot.slane %v259, 2
        %v550 = vrot.slane %v260, 2
        %v551 = vsel %vm426, %v549, %v550
        %v552 = vrot.slane %v261, 2
        %v553 = vsel %vm426, %v550, %v552
        %v559 = vrot.slane %v262, 1
        %v560 = vrot.slane %v263, 1
        %v561 = vsel %vm313, %v559, %v560
        %v562 = vrot.slane %v264, 1
        %v563 = vsel %vm313, %v560, %v562
        %v566 = vrot.slane %v262, 2
        %v567 = vrot.slane %v263, 2
        %v568 = vsel %vm426, %v566, %v567
        %v569 = vrot.slane %v264, 2
        %v570 = vsel %vm426, %v567, %v569
        %v573 = vld [vmem:[%s1] sm:$0xff]
        %v574 = vld [vmem:[%s1 + $0x8] sm:$0xff]
        %v575 = vld [vmem:[%s1 + $0x10] sm:$0xff]
        %v576 = vld [vmem:[%s1 + $0x18] sm:$0xff]
        %v577 = vld [vmem:[%s1 + $0x20] sm:$0xff]
        %v578 = vld [vmem:[%s1 + $0x28] sm:$0xff]
        %v579 = vld [vmem:[%s1 + $0x30] sm:$0xff]
        %v580 = vld [vmem:[%s1 + $0x38] sm:$0xff]
        %v581 = vld [vmem:[%s1 + $0x40] sm:$0xff]
        %v582 = vld [vmem:[%s1 + $0x48] sm:$0xff]
        %v583 = vld [vmem:[%s1 + $0x50] sm:$0xff]
        %v584 = vld [vmem:[%s1 + $0x58] sm:$0xff]
        %v585 = vld [vmem:[%s1 + $0x60] sm:$0xff]
        %v586 = vld [vmem:[%s1 + $0x68] sm:$0xff]
        %v587 = vld [vmem:[%s1 + $0x70] sm:$0xff]
        %v588 = vld [vmem:[%s1 + $0x78] sm:$0xff]
        %v589 = vld [vmem:[%s1 + $0x80] sm:$0xff]
        %v590 = vld [vmem:[%s1 + $0x88] sm:$0xff]
        %v591 = vld [vmem:[%s1 + $0x90] sm:$0xff]
        %v592 = vld [vmem:[%s1 + $0x98] sm:$0xff]
        %v593 = vld [vmem:[%s1 + $0xa0] sm:$0xff]
        %v594 = vld [vmem:[%s1 + $0xa8] sm:$0xff]
        %v595 = vld [vmem:[%s1 + $0xb0] sm:$0xff]
        %v596 = vld [vmem:[%s1 + $0xb8] sm:$0xff]
        %v597 = vld [vmem:[%s1 + $0xc0] sm:$0xff]
        %v598 = vld [vmem:[%s1 + $0xc8] sm:$0xff]
        %v599 = vld [vmem:[%s1 + $0xd0] sm:$0xff]
        %v600 = vld [vmem:[%s1 + $0xd8] sm:$0xff]
        %v601 = vld [vmem:[%s1 + $0xe0] sm:$0xff]
        %v602 = vld [vmem:[%s1 + $0xe8] sm:$0xff]
        %v603 = vld [vmem:[%s1 + $0xf0] sm:$0xff]
        %v604 = vld [vmem:[%s1 + $0xf8] sm:$0xff]
        %v605 = vld [vmem:[%s1 + $0x100] sm:$0xff]
        %v606 = vld [vmem:[%s1 + $0x108] sm:$0xff]
        %v607 = vld [vmem:[%s1 + $0x110] sm:$0xff]
        %v608 = vld [vmem:[%s1 + $0x118] sm:$0xff]
        %v609 = vld [vmem:[%s1 + $0x120] sm:$0xff]
        %v610 = vld [vmem:[%s1 + $0x128] sm:$0xff]
        %v611 = vld [vmem:[%s1 + $0x130] sm:$0xff]
        %v612 = vld [vmem:[%s1 + $0x138] sm:$0xff]
        %v613 = vld [vmem:[%s1 + $0x140] sm:$0xff]
        %v614 = vld [vmem:[%s1 + $0x148] sm:$0xff]
        %v615 = vld [vmem:[%s1 + $0x150] sm:$0xff]
        %v616 = vld [vmem:[%s1 + $0x158] sm:$0xff]
        %v617 = vld [vmem:[%s1 + $0x160] sm:$0xff]
        %v618 = vld [vmem:[%s1 + $0x168] sm:$0xff]
        %v619 = vld [vmem:[%s1 + $0x170] sm:$0xff]
        %v620 = vld [vmem:[%s1 + $0x178] sm:$0xff]
        %v621 = vld [vmem:[%s1 + $0x180] sm:$0xff]
        %v622 = vld [vmem:[%s1 + $0x188] sm:$0xff]
        %v623 = vld [vmem:[%s1 + $0x190] sm:$0xff]
        %v624 = vld [vmem:[%s1 + $0x198] sm:$0xff]
        %v625 = vld [vmem:[%s1 + $0x1a0] sm:$0xff]
        %v626 = vld [vmem:[%s1 + $0x1a8] sm:$0xff]
        %v627 = vld [vmem:[%s1 + $0x1b0] sm:$0xff]
        %v628 = vld [vmem:[%s1 + $0x1b8] sm:$0xff]
        %v629 = vld [vmem:[%s1 + $0x1c0] sm:$0xff]
        %v630 = vld [vmem:[%s1 + $0x1c8] sm:$0xff]
        %v631 = vld [vmem:[%s1 + $0x1d0] sm:$0xff]
        %v632 = vld [vmem:[%s1 + $0x1d8] sm:$0xff]
        %v633 = vld [vmem:[%s1 + $0x1e0] sm:$0xff]
        %v634 = vld [vmem:[%s1 + $0x1e8] sm:$0xff]
        %v635 = vld [vmem:[%s1 + $0x1f0] sm:$0xff]
        %v636 = vld [vmem:[%s1 + $0x1f8] sm:$0xff]
        %v637 = vld [vmem:[%s1 + $0x200] sm:$0xff]
        %v638 = vld [vmem:[%s1 + $0x208] sm:$0xff]
        %v639 = vld [vmem:[%s1 + $0x210] sm:$0xff]
        %v640 = vld [vmem:[%s1 + $0x218] sm:$0xff]
        %v641 = vld [vmem:[%s1 + $0x220] sm:$0xff]
        %v642 = vld [vmem:[%s1 + $0x228] sm:$0xff]
        %v643 = vld [vmem:[%s1 + $0x230] sm:$0xff]
        %v644 = vld [vmem:[%s1 + $0x238] sm:$0xff]
        %v645 = vld [vmem:[%s1 + $0x240] sm:$0xff]
        %v646 = vld [vmem:[%s1 + $0x248] sm:$0xff]
        %v647 = vld [vmem:[%s1 + $0x250] sm:$0xff]
        %v648 = vld [vmem:[%s1 + $0x258] sm:$0xff]
        %v649 = vld [vmem:[%s1 + $0x260] sm:$0xff]
        %v650 = vld [vmem:[%s1 + $0x268] sm:$0xff]
        %v651 = vld [vmem:[%s1 + $0x270] sm:$0xff]
        %v652 = vld [vmem:[%s1 + $0x278] sm:$0xff]
        %v653 = vld [vmem:[%s1 + $0x280] sm:$0xff]
        %v654 = vld [vmem:[%s1 + $0x288] sm:$0xff]
        %v655 = vld [vmem:[%s1 + $0x290] sm:$0xff]
        %v656 = vld [vmem:[%s1 + $0x298] sm:$0xff]
        %v657 = vld [vmem:[%s1 + $0x2a0] sm:$0xff]
        %v658 = vld [vmem:[%s1 + $0x2a8] sm:$0xff]
        %v659 = vld [vmem:[%s1 + $0x2b0] sm:$0xff]
        %v660 = vld [vmem:[%s1 + $0x2b8] sm:$0xff]
        %v661 = vld [vmem:[%s1 + $0x2c0] sm:$0xff]
        %v662 = vld [vmem:[%s1 + $0x2c8] sm:$0xff]
        %v663 = vld [vmem:[%s1 + $0x2d0] sm:$0xff]
        %v664 = vld [vmem:[%s1 + $0x2d8] sm:$0xff]
        %v665 = vld [vmem:[%s1 + $0x2e0] sm:$0xff]
        %v666 = vld [vmem:[%s1 + $0x2e8] sm:$0xff]
        %v667 = vld [vmem:[%s1 + $0x2f0] sm:$0xff]
        %v668 = vld [vmem:[%s1 + $0x2f8] sm:$0xff]
        %v669 = vld [vmem:[%s1 + $0x300] sm:$0xff]
        %v670 = vld [vmem:[%s1 + $0x308] sm:$0xff]
        %v671 = vld [vmem:[%s1 + $0x310] sm:$0xff]
        %v672 = vld [vmem:[%s1 + $0x318] sm:$0xff]
        %v673 = vld [vmem:[%s1 + $0x320] sm:$0xff]
        %v674 = vld [vmem:[%s1 + $0x328] sm:$0xff]
        %v675 = vld [vmem:[%s1 + $0x330] sm:$0xff]
        %v676 = vld [vmem:[%s1 + $0x338] sm:$0xff]
        %v677 = vld [vmem:[%s1 + $0x340] sm:$0xff]
        %v678 = vld [vmem:[%s1 + $0x348] sm:$0xff]
        %v679 = vld [vmem:[%s1 + $0x350] sm:$0xff]
        %v680 = vld [vmem:[%s1 + $0x358] sm:$0xff]
        %v681 = vld [vmem:[%s1 + $0x360] sm:$0xff]
        %v682 = vld [vmem:[%s1 + $0x368] sm:$0xff]
        %v683 = vld [vmem:[%s1 + $0x370] sm:$0xff]
        %v684 = vld [vmem:[%s1 + $0x378] sm:$0xff]
        %v685 = vld [vmem:[%s1 + $0x380] sm:$0xff]
        %v686 = vld [vmem:[%s1 + $0x388] sm:$0xff]
        %v687 = vld [vmem:[%s1 + $0x390] sm:$0xff]
        %v688 = vld [vmem:[%s1 + $0x398] sm:$0xff]
        %v689 = vld [vmem:[%s1 + $0x3a0] sm:$0xff]
        %v690 = vld [vmem:[%s1 + $0x3a8] sm:$0xff]
        %v691 = vld [vmem:[%s1 + $0x3b0] sm:$0xff]
        %v692 = vld [vmem:[%s1 + $0x3b8] sm:$0xff]
        %v693 = vld [vmem:[%s1 + $0x3c0] sm:$0xff]
        %v694 = vld [vmem:[%s1 + $0x3c8] sm:$0xff]
        %v695 = vld [vmem:[%s1 + $0x3d0] sm:$0xff]
        %v696 = vld [vmem:[%s1 + $0x3d8] sm:$0xff]
        %v697 = vld [vmem:[%s1 + $0x3e0] sm:$0xff]
        %v698 = vld [vmem:[%s1 + $0x3e8] sm:$0xff]
        %v699 = vld [vmem:[%s1 + $0x3f0] sm:$0xff]
        %v700 = vld [vmem:[%s1 + $0x3f8] sm:$0xff]
        %v701 = vld [vmem:[%s1 + $0x400] sm:$0xff]
        %v702 = vld [vmem:[%s1 + $0x408] sm:$0xff]
        %v703 = vld [vmem:[%s1 + $0x410] sm:$0xff]
        %v704 = vld [vmem:[%s1 + $0x418] sm:$0xff]
        %v705 = vld [vmem:[%s1 + $0x420] sm:$0xff]
        %v706 = vld [vmem:[%s1 + $0x428] sm:$0xff]
        %v707 = vld [vmem:[%s1 + $0x430] sm:$0xff]
        %v708 = vld [vmem:[%s1 + $0x438] sm:$0xff]
        %v709 = vld [vmem:[%s1 + $0x440] sm:$0xff]
        %v710 = vld [vmem:[%s1 + $0x448] sm:$0xff]
        %v711 = vld [vmem:[%s1 + $0x450] sm:$0xff]
        %v712 = vld [vmem:[%s1 + $0x458] sm:$0xff]
        %v713 = vld [vmem:[%s1 + $0x460] sm:$0xff]
        %v714 = vld [vmem:[%s1 + $0x468] sm:$0xff]
        %v715 = vld [vmem:[%s1 + $0x470] sm:$0xff]
        %v716 = vld [vmem:[%s1 + $0x478] sm:$0xff]
        %717 = vmatprep.subr.mxu0 0.0
        %718 = vmatpush1.msra.mxu0 %v588
        %719 = vmatprep.subr.mxu0 0.0
        %720 = vmatpush1.msra.mxu0 %v587
        %721 = vmatprep.subr.mxu0 0.0
        %722 = vmatpush1.msra.mxu0 %v586
        %723 = vmatprep.subr.mxu0 0.0
        %724 = vmatpush1.msra.mxu0 %v585
        %725 = vmatprep.subr.mxu0 0.0
        %726 = vmatpush1.msra.mxu0 %v584
        %727 = vmatprep.subr.mxu0 0.0
        %728 = vmatpush1.msra.mxu0 %v583
        %729 = vmatprep.subr.mxu0 0.0
        %730 = vmatpush1.msra.mxu0 %v582
        %731 = vmatprep.subr.mxu0 0.0
        %732 = vmatpush1.msra.mxu0 %v581
        %733 = vmatprep.subr.mxu0 0.0
        %734 = vmatpush1.msra.mxu0 %v580
        %735 = vmatprep.subr.mxu0 0.0
        %736 = vmatpush1.msra.mxu0 %v579
        %737 = vmatprep.subr.mxu0 0.0
        %738 = vmatpush1.msra.mxu0 %v578
        %739 = vmatprep.subr.mxu0 0.0
        %740 = vmatpush1.msra.mxu0 %v577
        %741 = vmatprep.subr.mxu0 0.0
        %742 = vmatpush1.msra.mxu0 %v576
        %743 = vmatprep.subr.mxu0 0.0
        %744 = vmatpush1.msra.mxu0 %v575
        %745 = vmatprep.subr.mxu0 0.0
        %746 = vmatpush1.msra.mxu0 %v574
        %747 = vmatprep.subr.mxu0 0.0
        %748 = vmatpush1.msra.mxu0 %v573
        %749 = vmatprep.subr.mxu0 0.0
        %750 = vmatpush2.msra.mxu0 %v604
        %751 = vmatprep.subr.mxu0 0.0
        %752 = vmatpush2.msra.mxu0 %v603
        %753 = vmatprep.subr.mxu0 0.0
        %754 = vmatpush2.msra.mxu0 %v602
        %755 = vmatprep.subr.mxu0 0.0
        %756 = vmatpush2.msra.mxu0 %v601
        %757 = vmatprep.subr.mxu0 0.0
        %758 = vmatpush2.msra.mxu0 %v600
        %759 = vmatprep.subr.mxu0 0.0
        %760 = vmatpush2.msra.mxu0 %v599
        %761 = vmatprep.subr.mxu0 0.0
        %762 = vmatpush2.msra.mxu0 %v598
        %763 = vmatprep.subr.mxu0 0.0
        %764 = vmatpush2.msra.mxu0 %v597
        %765 = vmatprep.subr.mxu0 0.0
        %766 = vmatpush2.msra.mxu0 %v596
        %767 = vmatprep.subr.mxu0 0.0
        %768 = vmatpush2.msra.mxu0 %v595
        %769 = vmatprep.subr.mxu0 0.0
        %770 = vmatpush2.msra.mxu0 %v594
        %771 = vmatprep.subr.mxu0 0.0
        %772 = vmatpush2.msra.mxu0 %v593
        %773 = vmatprep.subr.mxu0 0.0
        %774 = vmatpush2.msra.mxu0 %v592
        %775 = vmatprep.subr.mxu0 0.0
        %776 = vmatpush2.msra.mxu0 %v591
        %777 = vmatprep.subr.mxu0 0.0
        %778 = vmatpush2.msra.mxu0 %v590
        %779 = vmatprep.subr.mxu0 0.0
        %780 = vmatpush2.msra.mxu0 %v589
        %781 = vmatprep.mubr.f32.mxu0 %v316
        %782 = vmatmul.mubr.f32.gmra.mxu0 %v211
        %v783 = vpop.f32.mrf.mxu0
        %v784 = vadd.f32 0.0, %v783
        %v785 = vpop.f32.mrf.mxu0
        %786 = vmatprep.mubr.f32.mxu0 %v318
        %787 = vmatmul.mubr.f32.gmra.mxu0 %v212
        %v788 = vpop.f32.mrf.mxu0
        %v789 = vadd.f32 0.0, %v788
        %v790 = vpop.f32.mrf.mxu0
        %791 = vmatprep.mubr.f32.mxu0 %v321
        %792 = vmatmul.mubr.f32.gmra.mxu0 %v214
        %v793 = vpop.f32.mrf.mxu0
        %v794 = vadd.f32 0.0, %v793
        %v795 = vpop.f32.mrf.mxu0
        %796 = vmatprep.mubr.f32.mxu0 %v323
        %797 = vmatmul.mubr.f32.gmra.mxu0 %v215
        %v798 = vpop.f32.mrf.mxu0
        %v799 = vadd.f32 0.0, %v798
        %v800 = vpop.f32.mrf.mxu0
        %801 = vmatprep.mubr.f32.mxu0 %v326
        %802 = vmatmul.mubr.f32.gmra.mxu0 %v217
        %v803 = vpop.f32.mrf.mxu0
        %v804 = vadd.f32 0.0, %v803
        %v805 = vpop.f32.mrf.mxu0
        %806 = vmatprep.mubr.f32.mxu0 %v328
        %807 = vmatmul.mubr.f32.gmra.mxu0 %v218
        %v808 = vpop.f32.mrf.mxu0
        %v809 = vadd.f32 0.0, %v808
        %v810 = vpop.f32.mrf.mxu0
        %811 = vmatprep.mubr.f32.mxu0 %v331
        %812 = vmatmul.mubr.f32.gmra.mxu0 %v220
        %v813 = vpop.f32.mrf.mxu0
        %v814 = vadd.f32 0.0, %v813
        %v815 = vpop.f32.mrf.mxu0
        %816 = vmatprep.mubr.f32.mxu0 %v333
        %817 = vmatmul.mubr.f32.gmra.mxu0 %v221
        %v818 = vpop.f32.mrf.mxu0
        %v819 = vadd.f32 0.0, %v818
        %v820 = vpop.f32.mrf.mxu0
        %821 = vmatprep.mubr.f32.mxu0 %v336
        %822 = vmatmul.mubr.f32.gmra.mxu0 %v223
        %v823 = vpop.f32.mrf.mxu0
        %v824 = vadd.f32 0.0, %v823
        %v825 = vpop.f32.mrf.mxu0
        %826 = vmatprep.mubr.f32.mxu0 %v338
        %827 = vmatmul.mubr.f32.gmra.mxu0 %v224
        %v828 = vpop.f32.mrf.mxu0
        %v829 = vadd.f32 0.0, %v828
        %v830 = vpop.f32.mrf.mxu0
        %831 = vmatprep.mubr.f32.mxu0 %v341
        %832 = vmatmul.mubr.f32.gmra.mxu0 %v226
        %v833 = vpop.f32.mrf.mxu0
        %v834 = vadd.f32 0.0, %v833
        %v835 = vpop.f32.mrf.mxu0
        %836 = vmatprep.mubr.f32.mxu0 %v343
        %837 = vmatmul.mubr.f32.gmra.mxu0 %v227
        %v838 = vpop.f32.mrf.mxu0
        %v839 = vadd.f32 0.0, %v838
        %v840 = vpop.f32.mrf.mxu0
        %841 = vmatprep.mubr.f32.mxu0 %v346
        %842 = vmatmul.mubr.f32.gmra.mxu0 %v229
        %v843 = vpop.f32.mrf.mxu0
        %v844 = vadd.f32 0.0, %v843
        %v845 = vpop.f32.mrf.mxu0
        %846 = vmatprep.mubr.f32.mxu0 %v348
        %847 = vmatmul.mubr.f32.gmra.mxu0 %v230
        %v848 = vpop.f32.mrf.mxu0
        %v849 = vadd.f32 0.0, %v848
        %v850 = vpop.f32.mrf.mxu0
        %851 = vmatprep.mubr.f32.mxu0 %v351
        %852 = vmatmul.mubr.f32.gmra.mxu0 %v232
        %v853 = vpop.f32.mrf.mxu0
        %v854 = vadd.f32 0.0, %v853
        %v855 = vpop.f32.mrf.mxu0
        %856 = vmatprep.mubr.f32.mxu0 %v353
        %857 = vmatmul.mubr.f32.gmra.mxu0 %v233
        %v858 = vpop.f32.mrf.mxu0
        %v859 = vadd.f32 0.0, %v858
        %v860 = vpop.f32.mrf.mxu0
        %861 = vmatprep.mubr.f32.mxu0 %v356
        %862 = vmatmul.mubr.f32.gmra.mxu0 %v235
        %v863 = vpop.f32.mrf.mxu0
        %v864 = vadd.f32 0.0, %v863
        %v865 = vpop.f32.mrf.mxu0
        %866 = vmatprep.mubr.f32.mxu0 %v358
        %867 = vmatmul.mubr.f32.gmra.mxu0 %v236
        %v868 = vpop.f32.mrf.mxu0
        %v869 = vadd.f32 0.0, %v868
        %v870 = vpop.f32.mrf.mxu0
        %871 = vmatprep.mubr.f32.mxu0 %v361
        %872 = vmatmul.mubr.f32.gmra.mxu0 %v238
        %v873 = vpop.f32.mrf.mxu0
        %v874 = vadd.f32 0.0, %v873
        %v875 = vpop.f32.mrf.mxu0
        %876 = vmatprep.mubr.f32.mxu0 %v363
        %877 = vmatmul.mubr.f32.gmra.mxu0 %v239
        %v878 = vpop.f32.mrf.mxu0
        %v879 = vadd.f32 0.0, %v878
        %v880 = vpop.f32.mrf.mxu0
        %881 = vmatprep.mubr.f32.mxu0 %v366
        %882 = vmatmul.mubr.f32.gmra.mxu0 %v241
        %v883 = vpop.f32.mrf.mxu0
        %v884 = vadd.f32 0.0, %v883
        %v885 = vpop.f32.mrf.mxu0
        %886 = vmatprep.mubr.f32.mxu0 %v368
        %887 = vmatmul.mubr.f32.gmra.mxu0 %v242
        %v888 = vpop.f32.mrf.mxu0
        %v889 = vadd.f32 0.0, %v888
        %v890 = vpop.f32.mrf.mxu0
        %891 = vmatprep.mubr.f32.mxu0 %v371
        %892 = vmatmul.mubr.f32.gmra.mxu0 %v244
        %v893 = vpop.f32.mrf.mxu0
        %v894 = vadd.f32 0.0, %v893
        %v895 = vpop.f32.mrf.mxu0
        %896 = vmatprep.mubr.f32.mxu0 %v373
        %897 = vmatmul.mubr.f32.gmra.mxu0 %v245
        %v898 = vpop.f32.mrf.mxu0
        %v899 = vadd.f32 0.0, %v898
        %v900 = vpop.f32.mrf.mxu0
        %901 = vmatprep.mubr.f32.mxu0 %v376
        %902 = vmatmul.mubr.f32.gmra.mxu0 %v247
        %v903 = vpop.f32.mrf.mxu0
        %v904 = vadd.f32 0.0, %v903
        %v905 = vpop.f32.mrf.mxu0
        %906 = vmatprep.mubr.f32.mxu0 %v378
        %907 = vmatmul.mubr.f32.gmra.mxu0 %v248
        %v908 = vpop.f32.mrf.mxu0
        %v909 = vadd.f32 0.0, %v908
        %v910 = vpop.f32.mrf.mxu0
        %911 = vmatprep.mubr.f32.mxu0 %v381
        %912 = vmatmul.mubr.f32.gmra.mxu0 %v250
        %v913 = vpop.f32.mrf.mxu0
        %v914 = vadd.f32 0.0, %v913
        %v915 = vpop.f32.mrf.mxu0
        %916 = vmatprep.mubr.f32.mxu0 %v383
        %917 = vmatmul.mubr.f32.gmra.mxu0 %v251
        %v918 = vpop.f32.mrf.mxu0
        %v919 = vadd.f32 0.0, %v918
        %v920 = vpop.f32.mrf.mxu0
        %921 = vmatprep.mubr.f32.mxu0 %v386
        %922 = vmatmul.mubr.f32.gmra.mxu0 %v253
        %v923 = vpop.f32.mrf.mxu0
        %v924 = vadd.f32 0.0, %v923
        %v925 = vpop.f32.mrf.mxu0
        %926 = vmatprep.mubr.f32.mxu0 %v388
        %927 = vmatmul.mubr.f32.gmra.mxu0 %v254
        %v928 = vpop.f32.mrf.mxu0
        %v929 = vadd.f32 0.0, %v928
        %v930 = vpop.f32.mrf.mxu0
        %931 = vmatprep.mubr.f32.mxu0 %v391
        %932 = vmatmul.mubr.f32.gmra.mxu0 %v256
        %v933 = vpop.f32.mrf.mxu0
        %v934 = vadd.f32 0.0, %v933
        %v935 = vpop.f32.mrf.mxu0
        %936 = vmatprep.mubr.f32.mxu0 %v393
        %937 = vmatmul.mubr.f32.gmra.mxu0 %v257
        %v938 = vpop.f32.mrf.mxu0
        %v939 = vadd.f32 0.0, %v938
        %v940 = vpop.f32.mrf.mxu0
        %941 = vdwg.mxu0
        %942 = vmatprep.subr.mxu0 0.0
        %943 = vmatpush1.msra.mxu0 %v620
        %944 = vmatprep.subr.mxu0 0.0
        %945 = vmatpush1.msra.mxu0 %v619
        %946 = vmatprep.subr.mxu0 0.0
        %947 = vmatpush1.msra.mxu0 %v618
        %948 = vmatprep.subr.mxu0 0.0
        %949 = vmatpush1.msra.mxu0 %v617
        %950 = vmatprep.subr.mxu0 0.0
        %951 = vmatpush1.msra.mxu0 %v616
        %952 = vmatprep.subr.mxu0 0.0
        %953 = vmatpush1.msra.mxu0 %v615
        %954 = vmatprep.subr.mxu0 0.0
        %955 = vmatpush1.msra.mxu0 %v614
        %956 = vmatprep.subr.mxu0 0.0
        %957 = vmatpush1.msra.mxu0 %v613
        %958 = vmatprep.subr.mxu0 0.0
        %959 = vmatpush1.msra.mxu0 %v612
        %960 = vmatprep.subr.mxu0 0.0
        %961 = vmatpush1.msra.mxu0 %v611
        %962 = vmatprep.subr.mxu0 0.0
        %963 = vmatpush1.msra.mxu0 %v610
        %964 = vmatprep.subr.mxu0 0.0
        %965 = vmatpush1.msra.mxu0 %v609
        %966 = vmatprep.subr.mxu0 0.0
        %967 = vmatpush1.msra.mxu0 %v608
        %968 = vmatprep.subr.mxu0 0.0
        %969 = vmatpush1.msra.mxu0 %v607
        %970 = vmatprep.subr.mxu0 0.0
        %971 = vmatpush1.msra.mxu0 %v606
        %972 = vmatprep.subr.mxu0 0.0
        %973 = vmatpush1.msra.mxu0 %v605
        %974 = vmatprep.subr.mxu0 0.0
        %975 = vmatpush2.msra.mxu0 %v636
        %976 = vmatprep.subr.mxu0 0.0
        %977 = vmatpush2.msra.mxu0 %v635
        %978 = vmatprep.subr.mxu0 0.0
        %979 = vmatpush2.msra.mxu0 %v634
        %980 = vmatprep.subr.mxu0 0.0
        %981 = vmatpush2.msra.mxu0 %v633
        %982 = vmatprep.subr.mxu0 0.0
        %983 = vmatpush2.msra.mxu0 %v632
        %984 = vmatprep.subr.mxu0 0.0
        %985 = vmatpush2.msra.mxu0 %v631
        %986 = vmatprep.subr.mxu0 0.0
        %987 = vmatpush2.msra.mxu0 %v630
        %988 = vmatprep.subr.mxu0 0.0
        %989 = vmatpush2.msra.mxu0 %v629
        %990 = vmatprep.subr.mxu0 0.0
        %991 = vmatpush2.msra.mxu0 %v628
        %992 = vmatprep.subr.mxu0 0.0
        %993 = vmatpush2.msra.mxu0 %v627
        %994 = vmatprep.subr.mxu0 0.0
        %995 = vmatpush2.msra.mxu0 %v626
        %996 = vmatprep.subr.mxu0 0.0
        %997 = vmatpush2.msra.mxu0 %v625
        %998 = vmatprep.subr.mxu0 0.0
        %999 = vmatpush2.msra.mxu0 %v624
        %1000 = vmatprep.subr.mxu0 0.0
        %1001 = vmatpush2.msra.mxu0 %v623
        %1002 = vmatprep.subr.mxu0 0.0
        %1003 = vmatpush2.msra.mxu0 %v622
        %1004 = vmatprep.subr.mxu0 0.0
        %1005 = vmatpush2.msra.mxu0 %v621
        %1006 = vmatprep.mubr.f32.mxu0 %v214
        %1007 = vmatmul.mubr.f32.gmra.mxu0 %v429
        %v1008 = vpop.f32.mrf.mxu0
        %v1009 = vadd.f32 %v784, %v1008
        %v1010 = vpop.f32.mrf.mxu0
        %1011 = vmatprep.mubr.f32.mxu0 %v215
        %1012 = vmatmul.mubr.f32.gmra.mxu0 %v431
        %v1013 = vpop.f32.mrf.mxu0
        %v1014 = vadd.f32 %v789, %v1013
        %v1015 = vpop.f32.mrf.mxu0
        %1016 = vmatprep.mubr.f32.mxu0 %v217
        %1017 = vmatmul.mubr.f32.gmra.mxu0 %v434
        %v1018 = vpop.f32.mrf.mxu0
        %v1019 = vadd.f32 %v794, %v1018
        %v1020 = vpop.f32.mrf.mxu0
        %1021 = vmatprep.mubr.f32.mxu0 %v218
        %1022 = vmatmul.mubr.f32.gmra.mxu0 %v436
        %v1023 = vpop.f32.mrf.mxu0
        %v1024 = vadd.f32 %v799, %v1023
        %v1025 = vpop.f32.mrf.mxu0
        %1026 = vmatprep.mubr.f32.mxu0 %v220
        %1027 = vmatmul.mubr.f32.gmra.mxu0 %v439
        %v1028 = vpop.f32.mrf.mxu0
        %v1029 = vadd.f32 %v804, %v1028
        %v1030 = vpop.f32.mrf.mxu0
        %1031 = vmatprep.mubr.f32.mxu0 %v221
        %1032 = vmatmul.mubr.f32.gmra.mxu0 %v441
        %v1033 = vpop.f32.mrf.mxu0
        %v1034 = vadd.f32 %v809, %v1033
        %v1035 = vpop.f32.mrf.mxu0
        %1036 = vmatprep.mubr.f32.mxu0 %v223
        %1037 = vmatmul.mubr.f32.gmra.mxu0 %v444
        %v1038 = vpop.f32.mrf.mxu0
        %v1039 = vadd.f32 %v814, %v1038
        %v1040 = vpop.f32.mrf.mxu0
        %1041 = vmatprep.mubr.f32.mxu0 %v224
        %1042 = vmatmul.mubr.f32.gmra.mxu0 %v446
        %v1043 = vpop.f32.mrf.mxu0
        %v1044 = vadd.f32 %v819, %v1043
        %v1045 = vpop.f32.mrf.mxu0
        %1046 = vmatprep.mubr.f32.mxu0 %v226
        %1047 = vmatmul.mubr.f32.gmra.mxu0 %v449
        %v1048 = vpop.f32.mrf.mxu0
        %v1049 = vadd.f32 %v824, %v1048
        %v1050 = vpop.f32.mrf.mxu0
        %1051 = vmatprep.mubr.f32.mxu0 %v227
        %1052 = vmatmul.mubr.f32.gmra.mxu0 %v451
        %v1053 = vpop.f32.mrf.mxu0
        %v1054 = vadd.f32 %v829, %v1053
        %v1055 = vpop.f32.mrf.mxu0
        %1056 = vmatprep.mubr.f32.mxu0 %v229
        %1057 = vmatmul.mubr.f32.gmra.mxu0 %v454
        %v1058 = vpop.f32.mrf.mxu0
        %v1059 = vadd.f32 %v834, %v1058
        %v1060 = vpop.f32.mrf.mxu0
        %1061 = vmatprep.mubr.f32.mxu0 %v230
        %1062 = vmatmul.mubr.f32.gmra.mxu0 %v456
        %v1063 = vpop.f32.mrf.mxu0
        %v1064 = vadd.f32 %v839, %v1063
        %v1065 = vpop.f32.mrf.mxu0
        %1066 = vmatprep.mubr.f32.mxu0 %v232
        %1067 = vmatmul.mubr.f32.gmra.mxu0 %v459
        %v1068 = vpop.f32.mrf.mxu0
        %v1069 = vadd.f32 %v844, %v1068
        %v1070 = vpop.f32.mrf.mxu0
        %1071 = vmatprep.mubr.f32.mxu0 %v233
        %1072 = vmatmul.mubr.f32.gmra.mxu0 %v461
        %v1073 = vpop.f32.mrf.mxu0
        %v1074 = vadd.f32 %v849, %v1073
        %v1075 = vpop.f32.mrf.mxu0
        %1076 = vmatprep.mubr.f32.mxu0 %v235
        %1077 = vmatmul.mubr.f32.gmra.mxu0 %v464
        %v1078 = vpop.f32.mrf.mxu0
        %v1079 = vadd.f32 %v854, %v1078
        %v1080 = vpop.f32.mrf.mxu0
        %1081 = vmatprep.mubr.f32.mxu0 %v236
        %1082 = vmatmul.mubr.f32.gmra.mxu0 %v466
        %v1083 = vpop.f32.mrf.mxu0
        %v1084 = vadd.f32 %v859, %v1083
        %v1085 = vpop.f32.mrf.mxu0
        %1086 = vmatprep.mubr.f32.mxu0 %v238
        %1087 = vmatmul.mubr.f32.gmra.mxu0 %v469
        %v1088 = vpop.f32.mrf.mxu0
        %v1089 = vadd.f32 %v864, %v1088
        %v1090 = vpop.f32.mrf.mxu0
        %1091 = vmatprep.mubr.f32.mxu0 %v239
        %1092 = vmatmul.mubr.f32.gmra.mxu0 %v471
        %v1093 = vpop.f32.mrf.mxu0
        %v1094 = vadd.f32 %v869, %v1093
        %v1095 = vpop.f32.mrf.mxu0
        %1096 = vmatprep.mubr.f32.mxu0 %v241
        %1097 = vmatmul.mubr.f32.gmra.mxu0 %v474
        %v1098 = vpop.f32.mrf.mxu0
        %v1099 = vadd.f32 %v874, %v1098
        %v1100 = vpop.f32.mrf.mxu0
        %1101 = vmatprep.mubr.f32.mxu0 %v242
        %1102 = vmatmul.mubr.f32.gmra.mxu0 %v476
        %v1103 = vpop.f32.mrf.mxu0
        %v1104 = vadd.f32 %v879, %v1103
        %v1105 = vpop.f32.mrf.mxu0
        %1106 = vmatprep.mubr.f32.mxu0 %v244
        %1107 = vmatmul.mubr.f32.gmra.mxu0 %v479
        %v1108 = vpop.f32.mrf.mxu0
        %v1109 = vadd.f32 %v884, %v1108
        %v1110 = vpop.f32.mrf.mxu0
        %1111 = vmatprep.mubr.f32.mxu0 %v245
        %1112 = vmatmul.mubr.f32.gmra.mxu0 %v481
        %v1113 = vpop.f32.mrf.mxu0
        %v1114 = vadd.f32 %v889, %v1113
        %v1115 = vpop.f32.mrf.mxu0
        %1116 = vmatprep.mubr.f32.mxu0 %v247
        %1117 = vmatmul.mubr.f32.gmra.mxu0 %v484
        %v1118 = vpop.f32.mrf.mxu0
        %v1119 = vadd.f32 %v894, %v1118
        %v1120 = vpop.f32.mrf.mxu0
        %1121 = vmatprep.mubr.f32.mxu0 %v248
        %1122 = vmatmul.mubr.f32.gmra.mxu0 %v486
        %v1123 = vpop.f32.mrf.mxu0
        %v1124 = vadd.f32 %v899, %v1123
        %v1125 = vpop.f32.mrf.mxu0
        %1126 = vmatprep.mubr.f32.mxu0 %v250
        %1127 = vmatmul.mubr.f32.gmra.mxu0 %v489
        %v1128 = vpop.f32.mrf.mxu0
        %v1129 = vadd.f32 %v904, %v1128
        %v1130 = vpop.f32.mrf.mxu0
        %1131 = vmatprep.mubr.f32.mxu0 %v251
        %1132 = vmatmul.mubr.f32.gmra.mxu0 %v491
        %v1133 = vpop.f32.mrf.mxu0
        %v1134 = vadd.f32 %v909, %v1133
        %v1135 = vpop.f32.mrf.mxu0
        %1136 = vmatprep.mubr.f32.mxu0 %v253
        %1137 = vmatmul.mubr.f32.gmra.mxu0 %v494
        %v1138 = vpop.f32.mrf.mxu0
        %v1139 = vadd.f32 %v914, %v1138
        %v1140 = vpop.f32.mrf.mxu0
        %1141 = vmatprep.mubr.f32.mxu0 %v254
        %1142 = vmatmul.mubr.f32.gmra.mxu0 %v496
        %v1143 = vpop.f32.mrf.mxu0
        %v1144 = vadd.f32 %v919, %v1143
        %v1145 = vpop.f32.mrf.mxu0
        %1146 = vmatprep.mubr.f32.mxu0 %v256
        %1147 = vmatmul.mubr.f32.gmra.mxu0 %v499
        %v1148 = vpop.f32.mrf.mxu0
        %v1149 = vadd.f32 %v924, %v1148
        %v1150 = vpop.f32.mrf.mxu0
        %1151 = vmatprep.mubr.f32.mxu0 %v257
        %1152 = vmatmul.mubr.f32.gmra.mxu0 %v501
        %v1153 = vpop.f32.mrf.mxu0
        %v1154 = vadd.f32 %v929, %v1153
        %v1155 = vpop.f32.mrf.mxu0
        %1156 = vmatprep.mubr.f32.mxu0 %v259
        %1157 = vmatmul.mubr.f32.gmra.mxu0 %v504
        %v1158 = vpop.f32.mrf.mxu0
        %v1159 = vadd.f32 %v934, %v1158
        %v1160 = vpop.f32.mrf.mxu0
        %1161 = vmatprep.mubr.f32.mxu0 %v260
        %1162 = vmatmul.mubr.f32.gmra.mxu0 %v506
        %v1163 = vpop.f32.mrf.mxu0
        %v1164 = vadd.f32 %v939, %v1163
        %v1165 = vpop.f32.mrf.mxu0
        %1166 = vdwg.mxu0
        %1167 = vmatprep.subr.mxu0 0.0
        %1168 = vmatpush1.msra.mxu0 %v652
        %1169 = vmatprep.subr.mxu0 0.0
        %1170 = vmatpush1.msra.mxu0 %v651
        %1171 = vmatprep.subr.mxu0 0.0
        %1172 = vmatpush1.msra.mxu0 %v650
        %1173 = vmatprep.subr.mxu0 0.0
        %1174 = vmatpush1.msra.mxu0 %v649
        %1175 = vmatprep.subr.mxu0 0.0
        %1176 = vmatpush1.msra.mxu0 %v648
        %1177 = vmatprep.subr.mxu0 0.0
        %1178 = vmatpush1.msra.mxu0 %v647
        %1179 = vmatprep.subr.mxu0 0.0
        %1180 = vmatpush1.msra.mxu0 %v646
        %1181 = vmatprep.subr.mxu0 0.0
        %1182 = vmatpush1.msra.mxu0 %v645
        %1183 = vmatprep.subr.mxu0 0.0
        %1184 = vmatpush1.msra.mxu0 %v644
        %1185 = vmatprep.subr.mxu0 0.0
        %1186 = vmatpush1.msra.mxu0 %v643
        %1187 = vmatprep.subr.mxu0 0.0
        %1188 = vmatpush1.msra.mxu0 %v642
        %1189 = vmatprep.subr.mxu0 0.0
        %1190 = vmatpush1.msra.mxu0 %v641
        %1191 = vmatprep.subr.mxu0 0.0
        %1192 = vmatpush1.msra.mxu0 %v640
        %1193 = vmatprep.subr.mxu0 0.0
        %1194 = vmatpush1.msra.mxu0 %v639
        %1195 = vmatprep.subr.mxu0 0.0
        %1196 = vmatpush1.msra.mxu0 %v638
        %1197 = vmatprep.subr.mxu0 0.0
        %1198 = vmatpush1.msra.mxu0 %v637
        %1199 = vmatprep.subr.mxu0 0.0
        %1200 = vmatpush2.msra.mxu0 %v668
        %1201 = vmatprep.subr.mxu0 0.0
        %1202 = vmatpush2.msra.mxu0 %v667
        %1203 = vmatprep.subr.mxu0 0.0
        %1204 = vmatpush2.msra.mxu0 %v666
        %1205 = vmatprep.subr.mxu0 0.0
        %1206 = vmatpush2.msra.mxu0 %v665
        %1207 = vmatprep.subr.mxu0 0.0
        %1208 = vmatpush2.msra.mxu0 %v664
        %1209 = vmatprep.subr.mxu0 0.0
        %1210 = vmatpush2.msra.mxu0 %v663
        %1211 = vmatprep.subr.mxu0 0.0
        %1212 = vmatpush2.msra.mxu0 %v662
        %1213 = vmatprep.subr.mxu0 0.0
        %1214 = vmatpush2.msra.mxu0 %v661
        %1215 = vmatprep.subr.mxu0 0.0
        %1216 = vmatpush2.msra.mxu0 %v660
        %1217 = vmatprep.subr.mxu0 0.0
        %1218 = vmatpush2.msra.mxu0 %v659
        %1219 = vmatprep.subr.mxu0 0.0
        %1220 = vmatpush2.msra.mxu0 %v658
        %1221 = vmatprep.subr.mxu0 0.0
        %1222 = vmatpush2.msra.mxu0 %v657
        %1223 = vmatprep.subr.mxu0 0.0
        %1224 = vmatpush2.msra.mxu0 %v656
        %1225 = vmatprep.subr.mxu0 0.0
        %1226 = vmatpush2.msra.mxu0 %v655
        %1227 = vmatprep.subr.mxu0 0.0
        %1228 = vmatpush2.msra.mxu0 %v654
        %1229 = vmatprep.subr.mxu0 0.0
        %1230 = vmatpush2.msra.mxu0 %v653
        %1231 = vmatprep.mubr.f32.mxu0 %v434
        %1232 = vmatmul.mubr.f32.gmra.mxu0 %v321
        %v1233 = vpop.f32.mrf.mxu0
        %v1234 = vadd.f32 %v1009, %v1233
        %v1235 = vpop.f32.mrf.mxu0
        %1236 = vmatprep.mubr.f32.mxu0 %v436
        %1237 = vmatmul.mubr.f32.gmra.mxu0 %v323
        %v1238 = vpop.f32.mrf.mxu0
        %v1239 = vadd.f32 %v1014, %v1238
        %v1240 = vpop.f32.mrf.mxu0
        %1241 = vmatprep.mubr.f32.mxu0 %v439
        %1242 = vmatmul.mubr.f32.gmra.mxu0 %v326
        %v1243 = vpop.f32.mrf.mxu0
        %v1244 = vadd.f32 %v1019, %v1243
        %v1245 = vpop.f32.mrf.mxu0
        %1246 = vmatprep.mubr.f32.mxu0 %v441
        %1247 = vmatmul.mubr.f32.gmra.mxu0 %v328
        %v1248 = vpop.f32.mrf.mxu0
        %v1249 = vadd.f32 %v1024, %v1248
        %v1250 = vpop.f32.mrf.mxu0
        %1251 = vmatprep.mubr.f32.mxu0 %v444
        %1252 = vmatmul.mubr.f32.gmra.mxu0 %v331
        %v1253 = vpop.f32.mrf.mxu0
        %v1254 = vadd.f32 %v1029, %v1253
        %v1255 = vpop.f32.mrf.mxu0
        %1256 = vmatprep.mubr.f32.mxu0 %v446
        %1257 = vmatmul.mubr.f32.gmra.mxu0 %v333
        %v1258 = vpop.f32.mrf.mxu0
        %v1259 = vadd.f32 %v1034, %v1258
        %v1260 = vpop.f32.mrf.mxu0
        %1261 = vmatprep.mubr.f32.mxu0 %v449
        %1262 = vmatmul.mubr.f32.gmra.mxu0 %v336
        %v1263 = vpop.f32.mrf.mxu0
        %v1264 = vadd.f32 %v1039, %v1263
        %v1265 = vpop.f32.mrf.mxu0
        %1266 = vmatprep.mubr.f32.mxu0 %v451
        %1267 = vmatmul.mubr.f32.gmra.mxu0 %v338
        %v1268 = vpop.f32.mrf.mxu0
        %v1269 = vadd.f32 %v1044, %v1268
        %v1270 = vpop.f32.mrf.mxu0
        %1271 = vmatprep.mubr.f32.mxu0 %v454
        %1272 = vmatmul.mubr.f32.gmra.mxu0 %v341
        %v1273 = vpop.f32.mrf.mxu0
        %v1274 = vadd.f32 %v1049, %v1273
        %v1275 = vpop.f32.mrf.mxu0
        %1276 = vmatprep.mubr.f32.mxu0 %v456
        %1277 = vmatmul.mubr.f32.gmra.mxu0 %v343
        %v1278 = vpop.f32.mrf.mxu0
        %v1279 = vadd.f32 %v1054, %v1278
        %v1280 = vpop.f32.mrf.mxu0
        %1281 = vmatprep.mubr.f32.mxu0 %v459
        %1282 = vmatmul.mubr.f32.gmra.mxu0 %v346
        %v1283 = vpop.f32.mrf.mxu0
        %v1284 = vadd.f32 %v1059, %v1283
        %v1285 = vpop.f32.mrf.mxu0
        %1286 = vmatprep.mubr.f32.mxu0 %v461
        %1287 = vmatmul.mubr.f32.gmra.mxu0 %v348
        %v1288 = vpop.f32.mrf.mxu0
        %v1289 = vadd.f32 %v1064, %v1288
        %v1290 = vpop.f32.mrf.mxu0
        %1291 = vmatprep.mubr.f32.mxu0 %v464
        %1292 = vmatmul.mubr.f32.gmra.mxu0 %v351
        %v1293 = vpop.f32.mrf.mxu0
        %v1294 = vadd.f32 %v1069, %v1293
        %v1295 = vpop.f32.mrf.mxu0
        %1296 = vmatprep.mubr.f32.mxu0 %v466
        %1297 = vmatmul.mubr.f32.gmra.mxu0 %v353
        %v1298 = vpop.f32.mrf.mxu0
        %v1299 = vadd.f32 %v1074, %v1298
        %v1300 = vpop.f32.mrf.mxu0
        %1301 = vmatprep.mubr.f32.mxu0 %v469
        %1302 = vmatmul.mubr.f32.gmra.mxu0 %v356
        %v1303 = vpop.f32.mrf.mxu0
        %v1304 = vadd.f32 %v1079, %v1303
        %v1305 = vpop.f32.mrf.mxu0
        %1306 = vmatprep.mubr.f32.mxu0 %v471
        %1307 = vmatmul.mubr.f32.gmra.mxu0 %v358
        %v1308 = vpop.f32.mrf.mxu0
        %v1309 = vadd.f32 %v1084, %v1308
        %v1310 = vpop.f32.mrf.mxu0
        %1311 = vmatprep.mubr.f32.mxu0 %v474
        %1312 = vmatmul.mubr.f32.gmra.mxu0 %v361
        %v1313 = vpop.f32.mrf.mxu0
        %v1314 = vadd.f32 %v1089, %v1313
        %v1315 = vpop.f32.mrf.mxu0
        %1316 = vmatprep.mubr.f32.mxu0 %v476
        %1317 = vmatmul.mubr.f32.gmra.mxu0 %v363
        %v1318 = vpop.f32.mrf.mxu0
        %v1319 = vadd.f32 %v1094, %v1318
        %v1320 = vpop.f32.mrf.mxu0
        %1321 = vmatprep.mubr.f32.mxu0 %v479
        %1322 = vmatmul.mubr.f32.gmra.mxu0 %v366
        %v1323 = vpop.f32.mrf.mxu0
        %v1324 = vadd.f32 %v1099, %v1323
        %v1325 = vpop.f32.mrf.mxu0
        %1326 = vmatprep.mubr.f32.mxu0 %v481
        %1327 = vmatmul.mubr.f32.gmra.mxu0 %v368
        %v1328 = vpop.f32.mrf.mxu0
        %v1329 = vadd.f32 %v1104, %v1328
        %v1330 = vpop.f32.mrf.mxu0
        %1331 = vmatprep.mubr.f32.mxu0 %v484
        %1332 = vmatmul.mubr.f32.gmra.mxu0 %v371
        %v1333 = vpop.f32.mrf.mxu0
        %v1334 = vadd.f32 %v1109, %v1333
        %v1335 = vpop.f32.mrf.mxu0
        %1336 = vmatprep.mubr.f32.mxu0 %v486
        %1337 = vmatmul.mubr.f32.gmra.mxu0 %v373
        %v1338 = vpop.f32.mrf.mxu0
        %v1339 = vadd.f32 %v1114, %v1338
        %v1340 = vpop.f32.mrf.mxu0
        %1341 = vmatprep.mubr.f32.mxu0 %v489
        %1342 = vmatmul.mubr.f32.gmra.mxu0 %v376
        %v1343 = vpop.f32.mrf.mxu0
        %v1344 = vadd.f32 %v1119, %v1343
        %v1345 = vpop.f32.mrf.mxu0
        %1346 = vmatprep.mubr.f32.mxu0 %v491
        %1347 = vmatmul.mubr.f32.gmra.mxu0 %v378
        %v1348 = vpop.f32.mrf.mxu0
        %v1349 = vadd.f32 %v1124, %v1348
        %v1350 = vpop.f32.mrf.mxu0
        %1351 = vmatprep.mubr.f32.mxu0 %v494
        %1352 = vmatmul.mubr.f32.gmra.mxu0 %v381
        %v1353 = vpop.f32.mrf.mxu0
        %v1354 = vadd.f32 %v1129, %v1353
        %v1355 = vpop.f32.mrf.mxu0
        %1356 = vmatprep.mubr.f32.mxu0 %v496
        %1357 = vmatmul.mubr.f32.gmra.mxu0 %v383
        %v1358 = vpop.f32.mrf.mxu0
        %v1359 = vadd.f32 %v1134, %v1358
        %v1360 = vpop.f32.mrf.mxu0
        %1361 = vmatprep.mubr.f32.mxu0 %v499
        %1362 = vmatmul.mubr.f32.gmra.mxu0 %v386
        %v1363 = vpop.f32.mrf.mxu0
        %v1364 = vadd.f32 %v1139, %v1363
        %v1365 = vpop.f32.mrf.mxu0
        %1366 = vmatprep.mubr.f32.mxu0 %v501
        %1367 = vmatmul.mubr.f32.gmra.mxu0 %v388
        %v1368 = vpop.f32.mrf.mxu0
        %v1369 = vadd.f32 %v1144, %v1368
        %v1370 = vpop.f32.mrf.mxu0
        %1371 = vmatprep.mubr.f32.mxu0 %v504
        %1372 = vmatmul.mubr.f32.gmra.mxu0 %v391
        %v1373 = vpop.f32.mrf.mxu0
        %v1374 = vadd.f32 %v1149, %v1373
        %v1375 = vpop.f32.mrf.mxu0
        %1376 = vmatprep.mubr.f32.mxu0 %v506
        %1377 = vmatmul.mubr.f32.gmra.mxu0 %v393
        %v1378 = vpop.f32.mrf.mxu0
        %v1379 = vadd.f32 %v1154, %v1378
        %v1380 = vpop.f32.mrf.mxu0
        %1381 = vmatprep.mubr.f32.mxu0 %v551
        %1382 = vmatmul.mubr.f32.gmra.mxu0 %v544
        %v1383 = vpop.f32.mrf.mxu0
        %v1384 = vadd.f32 %v1159, %v1383
        %v1385 = vpop.f32.mrf.mxu0
        %1386 = vmatprep.mubr.f32.mxu0 %v553
        %1387 = vmatmul.mubr.f32.gmra.mxu0 %v546
        %v1388 = vpop.f32.mrf.mxu0
        %v1389 = vadd.f32 %v1164, %v1388
        %v1390 = vpop.f32.mrf.mxu0
        %1391 = vdwg.mxu0
        %1392 = vmatprep.subr.mxu0 0.0
        %1393 = vmatpush1.msra.mxu0 %v684
        %1394 = vmatprep.subr.mxu0 0.0
        %1395 = vmatpush1.msra.mxu0 %v683
        %1396 = vmatprep.subr.mxu0 0.0
        %1397 = vmatpush1.msra.mxu0 %v682
        %1398 = vmatprep.subr.mxu0 0.0
        %1399 = vmatpush1.msra.mxu0 %v681
        %1400 = vmatprep.subr.mxu0 0.0
        %1401 = vmatpush1.msra.mxu0 %v680
        %1402 = vmatprep.subr.mxu0 0.0
        %1403 = vmatpush1.msra.mxu0 %v679
        %1404 = vmatprep.subr.mxu0 0.0
        %1405 = vmatpush1.msra.mxu0 %v678
        %1406 = vmatprep.subr.mxu0 0.0
        %1407 = vmatpush1.msra.mxu0 %v677
        %1408 = vmatprep.subr.mxu0 0.0
        %1409 = vmatpush1.msra.mxu0 %v676
        %1410 = vmatprep.subr.mxu0 0.0
        %1411 = vmatpush1.msra.mxu0 %v675
        %1412 = vmatprep.subr.mxu0 0.0
        %1413 = vmatpush1.msra.mxu0 %v674
        %1414 = vmatprep.subr.mxu0 0.0
        %1415 = vmatpush1.msra.mxu0 %v673
        %1416 = vmatprep.subr.mxu0 0.0
        %1417 = vmatpush1.msra.mxu0 %v672
        %1418 = vmatprep.subr.mxu0 0.0
        %1419 = vmatpush1.msra.mxu0 %v671
        %1420 = vmatprep.subr.mxu0 0.0
        %1421 = vmatpush1.msra.mxu0 %v670
        %1422 = vmatprep.subr.mxu0 0.0
        %1423 = vmatpush1.msra.mxu0 %v669
        %1424 = vmatprep.subr.mxu0 0.0
        %1425 = vmatpush2.msra.mxu0 %v700
        %1426 = vmatprep.subr.mxu0 0.0
        %1427 = vmatpush2.msra.mxu0 %v699
        %1428 = vmatprep.subr.mxu0 0.0
        %1429 = vmatpush2.msra.mxu0 %v698
        %1430 = vmatprep.subr.mxu0 0.0
        %1431 = vmatpush2.msra.mxu0 %v697
        %1432 = vmatprep.subr.mxu0 0.0
        %1433 = vmatpush2.msra.mxu0 %v696
        %1434 = vmatprep.subr.mxu0 0.0
        %1435 = vmatpush2.msra.mxu0 %v695
        %1436 = vmatprep.subr.mxu0 0.0
        %1437 = vmatpush2.msra.mxu0 %v694
        %1438 = vmatprep.subr.mxu0 0.0
        %1439 = vmatpush2.msra.mxu0 %v693
        %1440 = vmatprep.subr.mxu0 0.0
        %1441 = vmatpush2.msra.mxu0 %v692
        %1442 = vmatprep.subr.mxu0 0.0
        %1443 = vmatpush2.msra.mxu0 %v691
        %1444 = vmatprep.subr.mxu0 0.0
        %1445 = vmatpush2.msra.mxu0 %v690
        %1446 = vmatprep.subr.mxu0 0.0
        %1447 = vmatpush2.msra.mxu0 %v689
        %1448 = vmatprep.subr.mxu0 0.0
        %1449 = vmatpush2.msra.mxu0 %v688
        %1450 = vmatprep.subr.mxu0 0.0
        %1451 = vmatpush2.msra.mxu0 %v687
        %1452 = vmatprep.subr.mxu0 0.0
        %1453 = vmatpush2.msra.mxu0 %v686
        %1454 = vmatprep.subr.mxu0 0.0
        %1455 = vmatpush2.msra.mxu0 %v685
        %1456 = vmatprep.mubr.f32.mxu0 %v326
        %1457 = vmatmul.mubr.f32.gmra.mxu0 %v217
        %v1458 = vpop.f32.mrf.mxu0
        %v1459 = vadd.f32 %v1234, %v1458
        %v1460 = vpop.f32.mrf.mxu0
        %1461 = vmatprep.mubr.f32.mxu0 %v328
        %1462 = vmatmul.mubr.f32.gmra.mxu0 %v218
        %v1463 = vpop.f32.mrf.mxu0
        %v1464 = vadd.f32 %v1239, %v1463
        %v1465 = vpop.f32.mrf.mxu0
        %1466 = vmatprep.mubr.f32.mxu0 %v331
        %1467 = vmatmul.mubr.f32.gmra.mxu0 %v220
        %v1468 = vpop.f32.mrf.mxu0
        %v1469 = vadd.f32 %v1244, %v1468
        %v1470 = vpop.f32.mrf.mxu0
        %1471 = vmatprep.mubr.f32.mxu0 %v333
        %1472 = vmatmul.mubr.f32.gmra.mxu0 %v221
        %v1473 = vpop.f32.mrf.mxu0
        %v1474 = vadd.f32 %v1249, %v1473
        %v1475 = vpop.f32.mrf.mxu0
        %1476 = vmatprep.mubr.f32.mxu0 %v336
        %1477 = vmatmul.mubr.f32.gmra.mxu0 %v223
        %v1478 = vpop.f32.mrf.mxu0
        %v1479 = vadd.f32 %v1254, %v1478
        %v1480 = vpop.f32.mrf.mxu0
        %1481 = vmatprep.mubr.f32.mxu0 %v338
        %1482 = vmatmul.mubr.f32.gmra.mxu0 %v224
        %v1483 = vpop.f32.mrf.mxu0
        %v1484 = vadd.f32 %v1259, %v1483
        %v1485 = vpop.f32.mrf.mxu0
        %1486 = vmatprep.mubr.f32.mxu0 %v341
        %1487 = vmatmul.mubr.f32.gmra.mxu0 %v226
        %v1488 = vpop.f32.mrf.mxu0
        %v1489 = vadd.f32 %v1264, %v1488
        %v1490 = vpop.f32.mrf.mxu0
        %1491 = vmatprep.mubr.f32.mxu0 %v343
        %1492 = vmatmul.mubr.f32.gmra.mxu0 %v227
        %v1493 = vpop.f32.mrf.mxu0
        %v1494 = vadd.f32 %v1269, %v1493
        %v1495 = vpop.f32.mrf.mxu0
        %1496 = vmatprep.mubr.f32.mxu0 %v346
        %1497 = vmatmul.mubr.f32.gmra.mxu0 %v229
        %v1498 = vpop.f32.mrf.mxu0
        %v1499 = vadd.f32 %v1274, %v1498
        %v1500 = vpop.f32.mrf.mxu0
        %1501 = vmatprep.mubr.f32.mxu0 %v348
        %1502 = vmatmul.mubr.f32.gmra.mxu0 %v230
        %v1503 = vpop.f32.mrf.mxu0
        %v1504 = vadd.f32 %v1279, %v1503
        %v1505 = vpop.f32.mrf.mxu0
        %1506 = vmatprep.mubr.f32.mxu0 %v351
        %1507 = vmatmul.mubr.f32.gmra.mxu0 %v232
        %v1508 = vpop.f32.mrf.mxu0
        %v1509 = vadd.f32 %v1284, %v1508
        %v1510 = vpop.f32.mrf.mxu0
        %1511 = vmatprep.mubr.f32.mxu0 %v353
        %1512 = vmatmul.mubr.f32.gmra.mxu0 %v233
        %v1513 = vpop.f32.mrf.mxu0
        %v1514 = vadd.f32 %v1289, %v1513
        %v1515 = vpop.f32.mrf.mxu0
        %1516 = vmatprep.mubr.f32.mxu0 %v356
        %1517 = vmatmul.mubr.f32.gmra.mxu0 %v235
        %v1518 = vpop.f32.mrf.mxu0
        %v1519 = vadd.f32 %v1294, %v1518
        %v1520 = vpop.f32.mrf.mxu0
        %1521 = vmatprep.mubr.f32.mxu0 %v358
        %1522 = vmatmul.mubr.f32.gmra.mxu0 %v236
        %v1523 = vpop.f32.mrf.mxu0
        %v1524 = vadd.f32 %v1299, %v1523
        %v1525 = vpop.f32.mrf.mxu0
        %1526 = vmatprep.mubr.f32.mxu0 %v361
        %1527 = vmatmul.mubr.f32.gmra.mxu0 %v238
        %v1528 = vpop.f32.mrf.mxu0
        %v1529 = vadd.f32 %v1304, %v1528
        %v1530 = vpop.f32.mrf.mxu0
        %1531 = vmatprep.mubr.f32.mxu0 %v363
        %1532 = vmatmul.mubr.f32.gmra.mxu0 %v239
        %v1533 = vpop.f32.mrf.mxu0
        %v1534 = vadd.f32 %v1309, %v1533
        %v1535 = vpop.f32.mrf.mxu0
        %1536 = vmatprep.mubr.f32.mxu0 %v366
        %1537 = vmatmul.mubr.f32.gmra.mxu0 %v241
        %v1538 = vpop.f32.mrf.mxu0
        %v1539 = vadd.f32 %v1314, %v1538
        %v1540 = vpop.f32.mrf.mxu0
        %1541 = vmatprep.mubr.f32.mxu0 %v368
        %1542 = vmatmul.mubr.f32.gmra.mxu0 %v242
        %v1543 = vpop.f32.mrf.mxu0
        %v1544 = vadd.f32 %v1319, %v1543
        %v1545 = vpop.f32.mrf.mxu0
        %1546 = vmatprep.mubr.f32.mxu0 %v371
        %1547 = vmatmul.mubr.f32.gmra.mxu0 %v244
        %v1548 = vpop.f32.mrf.mxu0
        %v1549 = vadd.f32 %v1324, %v1548
        %v1550 = vpop.f32.mrf.mxu0
        %1551 = vmatprep.mubr.f32.mxu0 %v373
        %1552 = vmatmul.mubr.f32.gmra.mxu0 %v245
        %v1553 = vpop.f32.mrf.mxu0
        %v1554 = vadd.f32 %v1329, %v1553
        %v1555 = vpop.f32.mrf.mxu0
        %1556 = vmatprep.mubr.f32.mxu0 %v376
        %1557 = vmatmul.mubr.f32.gmra.mxu0 %v247
        %v1558 = vpop.f32.mrf.mxu0
        %v1559 = vadd.f32 %v1334, %v1558
        %v1560 = vpop.f32.mrf.mxu0
        %1561 = vmatprep.mubr.f32.mxu0 %v378
        %1562 = vmatmul.mubr.f32.gmra.mxu0 %v248
        %v1563 = vpop.f32.mrf.mxu0
        %v1564 = vadd.f32 %v1339, %v1563
        %v1565 = vpop.f32.mrf.mxu0
        %1566 = vmatprep.mubr.f32.mxu0 %v381
        %1567 = vmatmul.mubr.f32.gmra.mxu0 %v250
        %v1568 = vpop.f32.mrf.mxu0
        %v1569 = vadd.f32 %v1344, %v1568
        %v1570 = vpop.f32.mrf.mxu0
        %1571 = vmatprep.mubr.f32.mxu0 %v383
        %1572 = vmatmul.mubr.f32.gmra.mxu0 %v251
        %v1573 = vpop.f32.mrf.mxu0
        %v1574 = vadd.f32 %v1349, %v1573
        %v1575 = vpop.f32.mrf.mxu0
        %1576 = vmatprep.mubr.f32.mxu0 %v386
        %1577 = vmatmul.mubr.f32.gmra.mxu0 %v253
        %v1578 = vpop.f32.mrf.mxu0
        %v1579 = vadd.f32 %v1354, %v1578
        %v1580 = vpop.f32.mrf.mxu0
        %1581 = vmatprep.mubr.f32.mxu0 %v388
        %1582 = vmatmul.mubr.f32.gmra.mxu0 %v254
        %v1583 = vpop.f32.mrf.mxu0
        %v1584 = vadd.f32 %v1359, %v1583
        %v1585 = vpop.f32.mrf.mxu0
        %1586 = vmatprep.mubr.f32.mxu0 %v391
        %1587 = vmatmul.mubr.f32.gmra.mxu0 %v256
        %v1588 = vpop.f32.mrf.mxu0
        %v1589 = vadd.f32 %v1364, %v1588
        %v1590 = vpop.f32.mrf.mxu0
        %1591 = vmatprep.mubr.f32.mxu0 %v393
        %1592 = vmatmul.mubr.f32.gmra.mxu0 %v257
        %v1593 = vpop.f32.mrf.mxu0
        %v1594 = vadd.f32 %v1369, %v1593
        %v1595 = vpop.f32.mrf.mxu0
        %1596 = vmatprep.mubr.f32.mxu0 %v544
        %1597 = vmatmul.mubr.f32.gmra.mxu0 %v259
        %v1598 = vpop.f32.mrf.mxu0
        %v1599 = vadd.f32 %v1374, %v1598
        %v1600 = vpop.f32.mrf.mxu0
        %1601 = vmatprep.mubr.f32.mxu0 %v546
        %1602 = vmatmul.mubr.f32.gmra.mxu0 %v260
        %v1603 = vpop.f32.mrf.mxu0
        %v1604 = vadd.f32 %v1379, %v1603
        %v1605 = vpop.f32.mrf.mxu0
        %1606 = vmatprep.mubr.f32.mxu0 %v561
        %1607 = vmatmul.mubr.f32.gmra.mxu0 %v262
        %v1608 = vpop.f32.mrf.mxu0
        %v1609 = vadd.f32 %v1384, %v1608
        %v1610 = vpop.f32.mrf.mxu0
        %1611 = vmatprep.mubr.f32.mxu0 %v563
        %1612 = vmatmul.mubr.f32.gmra.mxu0 %v263
        %v1613 = vpop.f32.mrf.mxu0
        %v1614 = vadd.f32 %v1389, %v1613
        %v1615 = vpop.f32.mrf.mxu0
        %1616 = vdwg.mxu0
        %1617 = vmatprep.subr.mxu0 0.0
        %1618 = vmatpush1.msra.mxu0 %v716
        %1619 = vmatprep.subr.mxu0 0.0
        %1620 = vmatpush1.msra.mxu0 %v715
        %1621 = vmatprep.subr.mxu0 0.0
        %1622 = vmatpush1.msra.mxu0 %v714
        %1623 = vmatprep.subr.mxu0 0.0
        %1624 = vmatpush1.msra.mxu0 %v713
        %1625 = vmatprep.subr.mxu0 0.0
        %1626 = vmatpush1.msra.mxu0 %v712
        %1627 = vmatprep.subr.mxu0 0.0
        %1628 = vmatpush1.msra.mxu0 %v711
        %1629 = vmatprep.subr.mxu0 0.0
        %1630 = vmatpush1.msra.mxu0 %v710
        %1631 = vmatprep.subr.mxu0 0.0
        %1632 = vmatpush1.msra.mxu0 %v709
        %1633 = vmatprep.subr.mxu0 0.0
        %1634 = vmatpush1.msra.mxu0 %v708
        %1635 = vmatprep.subr.mxu0 0.0
        %1636 = vmatpush1.msra.mxu0 %v707
        %1637 = vmatprep.subr.mxu0 0.0
        %1638 = vmatpush1.msra.mxu0 %v706
        %1639 = vmatprep.subr.mxu0 0.0
        %1640 = vmatpush1.msra.mxu0 %v705
        %1641 = vmatprep.subr.mxu0 0.0
        %1642 = vmatpush1.msra.mxu0 %v704
        %1643 = vmatprep.subr.mxu0 0.0
        %1644 = vmatpush1.msra.mxu0 %v703
        %1645 = vmatprep.subr.mxu0 0.0
        %1646 = vmatpush1.msra.mxu0 %v702
        %1647 = vmatprep.subr.mxu0 0.0
        %1648 = vmatpush1.msra.mxu0 %v701
        %1649 = vmatprep.subr.mxu0 0.0
        %1650 = vmatpush2.msra.mxu0 0.0
        %1651 = vmatprep.subr.mxu0 0.0
        %1652 = vmatpush2.msra.mxu0 0.0
        %1653 = vmatprep.subr.mxu0 0.0
        %1654 = vmatpush2.msra.mxu0 0.0
        %1655 = vmatprep.subr.mxu0 0.0
        %1656 = vmatpush2.msra.mxu0 0.0
        %1657 = vmatprep.subr.mxu0 0.0
        %1658 = vmatpush2.msra.mxu0 0.0
        %1659 = vmatprep.subr.mxu0 0.0
        %1660 = vmatpush2.msra.mxu0 0.0
        %1661 = vmatprep.subr.mxu0 0.0
        %1662 = vmatpush2.msra.mxu0 0.0
        %1663 = vmatprep.subr.mxu0 0.0
        %1664 = vmatpush2.msra.mxu0 0.0
        %1665 = vmatprep.subr.mxu0 0.0
        %1666 = vmatpush2.msra.mxu0 0.0
        %1667 = vmatprep.subr.mxu0 0.0
        %1668 = vmatpush2.msra.mxu0 0.0
        %1669 = vmatprep.subr.mxu0 0.0
        %1670 = vmatpush2.msra.mxu0 0.0
        %1671 = vmatprep.subr.mxu0 0.0
        %1672 = vmatpush2.msra.mxu0 0.0
        %1673 = vmatprep.subr.mxu0 0.0
        %1674 = vmatpush2.msra.mxu0 0.0
        %1675 = vmatprep.subr.mxu0 0.0
        %1676 = vmatpush2.msra.mxu0 0.0
        %1677 = vmatprep.subr.mxu0 0.0
        %1678 = vmatpush2.msra.mxu0 0.0
        %1679 = vmatprep.subr.mxu0 0.0
        %1680 = vmatpush2.msra.mxu0 0.0
        %1681 = vmatprep.mubr.f32.mxu0 0.0
        %1682 = vmatmul.mubr.f32.gmra.mxu0 %v439
        %v1683 = vpop.f32.mrf.mxu0
        %v1684 = vadd.f32 %v1459, %v1683
        %v1685 = vpop.f32.mrf.mxu0
        %1686 = vmatprep.mubr.f32.mxu0 0.0
        %1687 = vmatmul.mubr.f32.gmra.mxu0 %v441
        %v1688 = vpop.f32.mrf.mxu0
        %v1689 = vadd.f32 %v1464, %v1688
        %v1690 = vpop.f32.mrf.mxu0
        %1691 = vmatprep.mubr.f32.mxu0 0.0
        %1692 = vmatmul.mubr.f32.gmra.mxu0 %v444
        %v1693 = vpop.f32.mrf.mxu0
        %v1694 = vadd.f32 %v1469, %v1693
        %v1695 = vpop.f32.mrf.mxu0
        %1696 = vmatprep.mubr.f32.mxu0 0.0
        %1697 = vmatmul.mubr.f32.gmra.mxu0 %v446
        %v1698 = vpop.f32.mrf.mxu0
        %v1699 = vadd.f32 %v1474, %v1698
        %v1700 = vpop.f32.mrf.mxu0
        %1701 = vmatprep.mubr.f32.mxu0 0.0
        %1702 = vmatmul.mubr.f32.gmra.mxu0 %v449
        %v1703 = vpop.f32.mrf.mxu0
        %v1704 = vadd.f32 %v1479, %v1703
        %v1705 = vpop.f32.mrf.mxu0
        %1706 = vmatprep.mubr.f32.mxu0 0.0
        %1707 = vmatmul.mubr.f32.gmra.mxu0 %v451
        %v1708 = vpop.f32.mrf.mxu0
        %v1709 = vadd.f32 %v1484, %v1708
        %v1710 = vpop.f32.mrf.mxu0
        %1711 = vmatprep.mubr.f32.mxu0 0.0
        %1712 = vmatmul.mubr.f32.gmra.mxu0 %v454
        %v1713 = vpop.f32.mrf.mxu0
        %v1714 = vadd.f32 %v1489, %v1713
        %v1715 = vpop.f32.mrf.mxu0
        %1716 = vmatprep.mubr.f32.mxu0 0.0
        %1717 = vmatmul.mubr.f32.gmra.mxu0 %v456
        %v1718 = vpop.f32.mrf.mxu0
        %v1719 = vadd.f32 %v1494, %v1718
        %v1720 = vpop.f32.mrf.mxu0
        %1721 = vmatprep.mubr.f32.mxu0 0.0
        %1722 = vmatmul.mubr.f32.gmra.mxu0 %v459
        %v1723 = vpop.f32.mrf.mxu0
        %v1724 = vadd.f32 %v1499, %v1723
        %v1725 = vpop.f32.mrf.mxu0
        %1726 = vmatprep.mubr.f32.mxu0 0.0
        %1727 = vmatmul.mubr.f32.gmra.mxu0 %v461
        %v1728 = vpop.f32.mrf.mxu0
        %v1729 = vadd.f32 %v1504, %v1728
        %v1730 = vpop.f32.mrf.mxu0
        %1731 = vmatprep.mubr.f32.mxu0 0.0
        %1732 = vmatmul.mubr.f32.gmra.mxu0 %v464
        %v1733 = vpop.f32.mrf.mxu0
        %v1734 = vadd.f32 %v1509, %v1733
        %v1735 = vpop.f32.mrf.mxu0
        %1736 = vmatprep.mubr.f32.mxu0 0.0
        %1737 = vmatmul.mubr.f32.gmra.mxu0 %v466
        %v1738 = vpop.f32.mrf.mxu0
        %v1739 = vadd.f32 %v1514, %v1738
        %v1740 = vpop.f32.mrf.mxu0
        %1741 = vmatprep.mubr.f32.mxu0 0.0
        %1742 = vmatmul.mubr.f32.gmra.mxu0 %v469
        %v1743 = vpop.f32.mrf.mxu0
        %v1744 = vadd.f32 %v1519, %v1743
        %v1745 = vpop.f32.mrf.mxu0
        %1746 = vmatprep.mubr.f32.mxu0 0.0
        %1747 = vmatmul.mubr.f32.gmra.mxu0 %v471
        %v1748 = vpop.f32.mrf.mxu0
        %v1749 = vadd.f32 %v1524, %v1748
        %v1750 = vpop.f32.mrf.mxu0
        %1751 = vmatprep.mubr.f32.mxu0 0.0
        %1752 = vmatmul.mubr.f32.gmra.mxu0 %v474
        %v1753 = vpop.f32.mrf.mxu0
        %v1754 = vadd.f32 %v1529, %v1753
        %v1755 = vpop.f32.mrf.mxu0
        %1756 = vmatprep.mubr.f32.mxu0 0.0
        %1757 = vmatmul.mubr.f32.gmra.mxu0 %v476
        %v1758 = vpop.f32.mrf.mxu0
        %v1759 = vadd.f32 %v1534, %v1758
        %v1760 = vpop.f32.mrf.mxu0
        %1761 = vmatprep.mubr.f32.mxu0 0.0
        %1762 = vmatmul.mubr.f32.gmra.mxu0 %v479
        %v1763 = vpop.f32.mrf.mxu0
        %v1764 = vadd.f32 %v1539, %v1763
        %v1765 = vpop.f32.mrf.mxu0
        %1766 = vmatprep.mubr.f32.mxu0 0.0
        %1767 = vmatmul.mubr.f32.gmra.mxu0 %v481
        %v1768 = vpop.f32.mrf.mxu0
        %v1769 = vadd.f32 %v1544, %v1768
        %v1770 = vpop.f32.mrf.mxu0
        %1771 = vmatprep.mubr.f32.mxu0 0.0
        %1772 = vmatmul.mubr.f32.gmra.mxu0 %v484
        %v1773 = vpop.f32.mrf.mxu0
        %v1774 = vadd.f32 %v1549, %v1773
        %v1775 = vpop.f32.mrf.mxu0
        %1776 = vmatprep.mubr.f32.mxu0 0.0
        %1777 = vmatmul.mubr.f32.gmra.mxu0 %v486
        %v1778 = vpop.f32.mrf.mxu0
        %v1779 = vadd.f32 %v1554, %v1778
        %v1780 = vpop.f32.mrf.mxu0
        %1781 = vmatprep.mubr.f32.mxu0 0.0
        %1782 = vmatmul.mubr.f32.gmra.mxu0 %v489
        %v1783 = vpop.f32.mrf.mxu0
        %v1784 = vadd.f32 %v1559, %v1783
        %v1785 = vpop.f32.mrf.mxu0
        %1786 = vmatprep.mubr.f32.mxu0 0.0
        %1787 = vmatmul.mubr.f32.gmra.mxu0 %v491
        %v1788 = vpop.f32.mrf.mxu0
        %v1789 = vadd.f32 %v1564, %v1788
        %v1790 = vpop.f32.mrf.mxu0
        %1791 = vmatprep.mubr.f32.mxu0 0.0
        %1792 = vmatmul.mubr.f32.gmra.mxu0 %v494
        %v1793 = vpop.f32.mrf.mxu0
        %v1794 = vadd.f32 %v1569, %v1793
        %v1795 = vpop.f32.mrf.mxu0
        %1796 = vmatprep.mubr.f32.mxu0 0.0
        %1797 = vmatmul.mubr.f32.gmra.mxu0 %v496
        %v1798 = vpop.f32.mrf.mxu0
        %v1799 = vadd.f32 %v1574, %v1798
        %v1800 = vpop.f32.mrf.mxu0
        %1801 = vmatprep.mubr.f32.mxu0 0.0
        %1802 = vmatmul.mubr.f32.gmra.mxu0 %v499
        %v1803 = vpop.f32.mrf.mxu0
        %v1804 = vadd.f32 %v1579, %v1803
        %v1805 = vpop.f32.mrf.mxu0
        %1806 = vmatprep.mubr.f32.mxu0 0.0
        %1807 = vmatmul.mubr.f32.gmra.mxu0 %v501
        %v1808 = vpop.f32.mrf.mxu0
        %v1809 = vadd.f32 %v1584, %v1808
        %v1810 = vpop.f32.mrf.mxu0
        %1811 = vmatprep.mubr.f32.mxu0 0.0
        %1812 = vmatmul.mubr.f32.gmra.mxu0 %v504
        %v1813 = vpop.f32.mrf.mxu0
        %v1814 = vadd.f32 %v1589, %v1813
        %v1815 = vpop.f32.mrf.mxu0
        %1816 = vmatprep.mubr.f32.mxu0 0.0
        %1817 = vmatmul.mubr.f32.gmra.mxu0 %v506
        %v1818 = vpop.f32.mrf.mxu0
        %v1819 = vadd.f32 %v1594, %v1818
        %v1820 = vpop.f32.mrf.mxu0
        %1821 = vmatprep.mubr.f32.mxu0 0.0
        %1822 = vmatmul.mubr.f32.gmra.mxu0 %v551
        %v1823 = vpop.f32.mrf.mxu0
        %v1824 = vadd.f32 %v1599, %v1823
        %v1825 = vpop.f32.mrf.mxu0
        %1826 = vmatprep.mubr.f32.mxu0 0.0
        %1827 = vmatmul.mubr.f32.gmra.mxu0 %v553
        %v1828 = vpop.f32.mrf.mxu0
        %v1829 = vadd.f32 %v1604, %v1828
        %v1830 = vpop.f32.mrf.mxu0
        %1831 = vmatprep.mubr.f32.mxu0 0.0
        %1832 = vmatmul.mubr.f32.gmra.mxu0 %v568
        %v1833 = vpop.f32.mrf.mxu0
        %v1834 = vadd.f32 %v1609, %v1833
        %v1835 = vpop.f32.mrf.mxu0
        %1836 = vmatprep.mubr.f32.mxu0 0.0
        %1837 = vmatmul.mubr.f32.gmra.mxu0 %v570
        %v1838 = vpop.f32.mrf.mxu0
        %v1839 = vadd.f32 %v1614, %v1838
        %v1840 = vpop.f32.mrf.mxu0
        %1841 = vdwg.mxu0
        %v1842 = vld [vmem:[%s3] sm:$0x1]
        %v1843 = vlaneseq
        %v1844 = vshrl.u32 %v1843, 7
        %v1845 = vsub.s32 0, %v1844
        %v1846 = vrot.slane %v1842, %v1845
        %v1847 = vmul.f32 %v1684, %v1846
        %v1848 = vmul.f32 %v1689, %v1846
        %v1849 = vmul.f32 %v1694, %v1846
        %v1850 = vmul.f32 %v1699, %v1846
        %v1851 = vmul.f32 %v1704, %v1846
        %v1852 = vmul.f32 %v1709, %v1846
        %v1853 = vmul.f32 %v1714, %v1846
        %v1854 = vmul.f32 %v1719, %v1846
        %v1855 = vmul.f32 %v1724, %v1846
        %v1856 = vmul.f32 %v1729, %v1846
        %v1857 = vmul.f32 %v1734, %v1846
        %v1858 = vmul.f32 %v1739, %v1846
        %v1859 = vmul.f32 %v1744, %v1846
        %v1860 = vmul.f32 %v1749, %v1846
        %v1861 = vmul.f32 %v1754, %v1846
        %v1862 = vmul.f32 %v1759, %v1846
        %v1863 = vmul.f32 %v1764, %v1846
        %v1864 = vmul.f32 %v1769, %v1846
        %v1865 = vmul.f32 %v1774, %v1846
        %v1866 = vmul.f32 %v1779, %v1846
        %v1867 = vmul.f32 %v1784, %v1846
        %v1868 = vmul.f32 %v1789, %v1846
        %v1869 = vmul.f32 %v1794, %v1846
        %v1870 = vmul.f32 %v1799, %v1846
        %v1871 = vmul.f32 %v1804, %v1846
        %v1872 = vmul.f32 %v1809, %v1846
        %v1873 = vmul.f32 %v1814, %v1846
        %v1874 = vmul.f32 %v1819, %v1846
        %v1875 = vmul.f32 %v1824, %v1846
        %v1876 = vmul.f32 %v1829, %v1846
        %v1877 = vmul.f32 %v1834, %v1846
        %v1878 = vmul.f32 %v1839, %v1846
        %v1879 = vld [vmem:[%s3 + $0x1] sm:$0x1]
        %v1880 = vlaneseq
        %v1881 = vshrl.u32 %v1880, 7
        %v1882 = vsub.s32 0, %v1881
        %v1883 = vrot.slane %v1879, %v1882
        %v1884 = vadd.f32 %v1847, %v1883
        %v1885 = vadd.f32 %v1848, %v1883
        %v1886 = vadd.f32 %v1849, %v1883
        %v1887 = vadd.f32 %v1850, %v1883
        %v1888 = vadd.f32 %v1851, %v1883
        %v1889 = vadd.f32 %v1852, %v1883
        %v1890 = vadd.f32 %v1853, %v1883
        %v1891 = vadd.f32 %v1854, %v1883
        %v1892 = vadd.f32 %v1855, %v1883
        %v1893 = vadd.f32 %v1856, %v1883
        %v1894 = vadd.f32 %v1857, %v1883
        %v1895 = vadd.f32 %v1858, %v1883
        %v1896 = vadd.f32 %v1859, %v1883
        %v1897 = vadd.f32 %v1860, %v1883
        %v1898 = vadd.f32 %v1861, %v1883
        %v1899 = vadd.f32 %v1862, %v1883
        %v1900 = vadd.f32 %v1863, %v1883
        %v1901 = vadd.f32 %v1864, %v1883
        %v1902 = vadd.f32 %v1865, %v1883
        %v1903 = vadd.f32 %v1866, %v1883
        %v1904 = vadd.f32 %v1867, %v1883
        %v1905 = vadd.f32 %v1868, %v1883
        %v1906 = vadd.f32 %v1869, %v1883
        %v1907 = vadd.f32 %v1870, %v1883
        %v1908 = vadd.f32 %v1871, %v1883
        %v1909 = vadd.f32 %v1872, %v1883
        %v1910 = vadd.f32 %v1873, %v1883
        %v1911 = vadd.f32 %v1874, %v1883
        %v1912 = vadd.f32 %v1875, %v1883
        %v1913 = vadd.f32 %v1876, %v1883
        %v1914 = vadd.f32 %v1877, %v1883
        %v1915 = vadd.f32 %v1878, %v1883
        %v1916 = vmax.f32 %v1884, 0.0
        %v1917 = vmax.f32 %v1885, 0.0
        %v1918 = vmax.f32 %v1886, 0.0
        %v1919 = vmax.f32 %v1887, 0.0
        %v1920 = vmax.f32 %v1888, 0.0
        %v1921 = vmax.f32 %v1889, 0.0
        %v1922 = vmax.f32 %v1890, 0.0
        %v1923 = vmax.f32 %v1891, 0.0
        %v1924 = vmax.f32 %v1892, 0.0
        %v1925 = vmax.f32 %v1893, 0.0
        %v1926 = vmax.f32 %v1894, 0.0
        %v1927 = vmax.f32 %v1895, 0.0
        %v1928 = vmax.f32 %v1896, 0.0
        %v1929 = vmax.f32 %v1897, 0.0
        %v1930 = vmax.f32 %v1898, 0.0
        %v1931 = vmax.f32 %v1899, 0.0
        %v1932 = vmax.f32 %v1900, 0.0
        %v1933 = vmax.f32 %v1901, 0.0
        %v1934 = vmax.f32 %v1902, 0.0
        %v1935 = vmax.f32 %v1903, 0.0
        %v1936 = vmax.f32 %v1904, 0.0
        %v1937 = vmax.f32 %v1905, 0.0
        %v1938 = vmax.f32 %v1906, 0.0
        %v1939 = vmax.f32 %v1907, 0.0
        %v1940 = vmax.f32 %v1908, 0.0
        %v1941 = vmax.f32 %v1909, 0.0
        %v1942 = vmax.f32 %v1910, 0.0
        %v1943 = vmax.f32 %v1911, 0.0
        %v1944 = vmax.f32 %v1912, 0.0
        %v1945 = vmax.f32 %v1913, 0.0
        %v1946 = vmax.f32 %v1914, 0.0
        %v1947 = vmax.f32 %v1915, 0.0
        %1948 = vst [vmem:[#allocation2] sm:$0xff] 0.0
        %1949 = vst [vmem:[#allocation2 + $0x8] sm:$0xff] 0.0
        %1950 = vst [vmem:[#allocation2 + $0x10] sm:$0x3] 0.0
        %1951 = vst [vmem:[#allocation2 + $0x18] sm:$0xff] 0.0
        %1952 = vst [vmem:[#allocation2 + $0x20] sm:$0xff] 0.0
        %1953 = vst [vmem:[#allocation2 + $0x28] sm:$0x3] 0.0
        %1954 = vst [vmem:[#allocation2 + $0x30] sm:$0xff] 0.0
        %1955 = vst [vmem:[#allocation2 + $0x38] sm:$0xff] 0.0
        %1956 = vst [vmem:[#allocation2 + $0x40] sm:$0x3] 0.0
        %1957 = vst [vmem:[#allocation2 + $0x48] sm:$0xff] 0.0
        %1958 = vst [vmem:[#allocation2 + $0x50] sm:$0xff] 0.0
        %1959 = vst [vmem:[#allocation2 + $0x58] sm:$0x3] 0.0
        %1960 = vst [vmem:[#allocation2 + $0x60] sm:$0xff] 0.0
        %1961 = vst [vmem:[#allocation2 + $0x68] sm:$0xff] 0.0
        %1962 = vst [vmem:[#allocation2 + $0x70] sm:$0x3] 0.0
        %1963 = vst [vmem:[#allocation2 + $0x78] sm:$0xff] 0.0
        %1964 = vst [vmem:[#allocation2 + $0x80] sm:$0xff] 0.0
        %1965 = vst [vmem:[#allocation2 + $0x88] sm:$0x3] 0.0
        %1966 = vst [vmem:[#allocation2 + $0x90] sm:$0xff] 0.0
        %1967 = vst [vmem:[#allocation2 + $0x98] sm:$0xff] 0.0
        %1968 = vst [vmem:[#allocation2 + $0xa0] sm:$0x3] 0.0
        %1969 = vst [vmem:[#allocation2 + $0xa8] sm:$0xff] 0.0
        %1970 = vst [vmem:[#allocation2 + $0xb0] sm:$0xff] 0.0
        %1971 = vst [vmem:[#allocation2 + $0xb8] sm:$0x3] 0.0
        %1972 = vst [vmem:[#allocation2 + $0xc0] sm:$0xff] 0.0
        %1973 = vst [vmem:[#allocation2 + $0xc8] sm:$0xff] 0.0
        %1974 = vst [vmem:[#allocation2 + $0xd0] sm:$0x3] 0.0
        %1975 = vst [vmem:[#allocation2 + $0xd8] sm:$0xff] 0.0
        %1976 = vst [vmem:[#allocation2 + $0xe0] sm:$0xff] 0.0
        %1977 = vst [vmem:[#allocation2 + $0xe8] sm:$0x3] 0.0
        %1978 = vst [vmem:[#allocation2 + $0xf0] sm:$0xff] 0.0
        %1979 = vst [vmem:[#allocation2 + $0xf8] sm:$0xff] 0.0
        %1980 = vst [vmem:[#allocation2 + $0x100] sm:$0x3] 0.0
        %1981 = vst [vmem:[#allocation2 + $0x108] sm:$0xff] 0.0
        %1982 = vst [vmem:[#allocation2 + $0x110] sm:$0xff] 0.0
        %1983 = vst [vmem:[#allocation2 + $0x118] sm:$0x3] 0.0
        %1984 = vst [vmem:[#allocation2 + $0x120] sm:$0xff] 0.0
        %1985 = vst [vmem:[#allocation2 + $0x128] sm:$0xff] 0.0
        %1986 = vst [vmem:[#allocation2 + $0x130] sm:$0x3] 0.0
        %1987 = vst [vmem:[#allocation2 + $0x138] sm:$0xff] 0.0
        %1988 = vst [vmem:[#allocation2 + $0x140] sm:$0xff] 0.0
        %1989 = vst [vmem:[#allocation2 + $0x148] sm:$0x3] 0.0
        %1990 = vst [vmem:[#allocation2 + $0x150] sm:$0xff] 0.0
        %1991 = vst [vmem:[#allocation2 + $0x158] sm:$0xff] 0.0
        %1992 = vst [vmem:[#allocation2 + $0x160] sm:$0x3] 0.0
        %1993 = vst [vmem:[#allocation2 + $0x168] sm:$0xff] 0.0
        %1994 = vst [vmem:[#allocation2 + $0x170] sm:$0xff] 0.0
        %1995 = vst [vmem:[#allocation2 + $0x178] sm:$0x3] 0.0
        %1996 = vst [vmem:[#allocation2 + $0x180] sm:$0xff] 0.0
        %1997 = vst [vmem:[#allocation2 + $0x188] sm:$0xff] 0.0
        %1998 = vst [vmem:[#allocation2 + $0x190] sm:$0x3] 0.0
        %1999 = vst [vmem:[#allocation2 + $0x198] sm:$0xff] 0.0
        %2000 = vst [vmem:[#allocation2 + $0x1a0] sm:$0xff] 0.0
        %2001 = vst [vmem:[#allocation2 + $0x1a8] sm:$0x3] 0.0
        %s2002 = scalar_lea.vmem [#allocation2], 24
        %2003 = vst [vmem:[%s2002 + $0x1] sm:$0xff] %v1916
        %2004 = vst [vmem:[%s2002 + $0x9] sm:$0xff] %v1917
        %2005 = vst [vmem:[%s2002 + $0x19] sm:$0xff] %v1918
        %2006 = vst [vmem:[%s2002 + $0x21] sm:$0xff] %v1919
        %2007 = vst [vmem:[%s2002 + $0x31] sm:$0xff] %v1920
        %2008 = vst [vmem:[%s2002 + $0x39] sm:$0xff] %v1921
        %2009 = vst [vmem:[%s2002 + $0x49] sm:$0xff] %v1922
        %2010 = vst [vmem:[%s2002 + $0x51] sm:$0xff] %v1923
        %2011 = vst [vmem:[%s2002 + $0x61] sm:$0xff] %v1924
        %2012 = vst [vmem:[%s2002 + $0x69] sm:$0xff] %v1925
        %2013 = vst [vmem:[%s2002 + $0x79] sm:$0xff] %v1926
        %2014 = vst [vmem:[%s2002 + $0x81] sm:$0xff] %v1927
        %2015 = vst [vmem:[%s2002 + $0x91] sm:$0xff] %v1928
        %2016 = vst [vmem:[%s2002 + $0x99] sm:$0xff] %v1929
        %2017 = vst [vmem:[%s2002 + $0xa9] sm:$0xff] %v1930
        %2018 = vst [vmem:[%s2002 + $0xb1] sm:$0xff] %v1931
        %2019 = vst [vmem:[%s2002 + $0xc1] sm:$0xff] %v1932
        %2020 = vst [vmem:[%s2002 + $0xc9] sm:$0xff] %v1933
        %2021 = vst [vmem:[%s2002 + $0xd9] sm:$0xff] %v1934
        %2022 = vst [vmem:[%s2002 + $0xe1] sm:$0xff] %v1935
        %2023 = vst [vmem:[%s2002 + $0xf1] sm:$0xff] %v1936
        %2024 = vst [vmem:[%s2002 + $0xf9] sm:$0xff] %v1937
        %2025 = vst [vmem:[%s2002 + $0x109] sm:$0xff] %v1938
        %2026 = vst [vmem:[%s2002 + $0x111] sm:$0xff] %v1939
        %2027 = vst [vmem:[%s2002 + $0x121] sm:$0xff] %v1940
        %2028 = vst [vmem:[%s2002 + $0x129] sm:$0xff] %v1941
        %2029 = vst [vmem:[%s2002 + $0x139] sm:$0xff] %v1942
        %2030 = vst [vmem:[%s2002 + $0x141] sm:$0xff] %v1943
        %2031 = vst [vmem:[%s2002 + $0x151] sm:$0xff] %v1944
        %2032 = vst [vmem:[%s2002 + $0x159] sm:$0xff] %v1945
        %2033 = vst [vmem:[%s2002 + $0x169] sm:$0xff] %v1946
        %2034 = vst [vmem:[%s2002 + $0x171] sm:$0xff] %v1947
        %v2035 = vld [vmem:[#allocation2] sm:$0xff]
        %v2036 = vld [vmem:[#allocation2 + $0x8] sm:$0xff]
        %v2037 = vld [vmem:[#allocation2 + $0x10] sm:$0x3]
        %v2038 = vld [vmem:[#allocation2 + $0x18] sm:$0xff]
        %v2039 = vld [vmem:[#allocation2 + $0x20] sm:$0xff]
        %v2040 = vld [vmem:[#allocation2 + $0x28] sm:$0x3]
        %v2041 = vld [vmem:[#allocation2 + $0x30] sm:$0xff]
        %v2042 = vld [vmem:[#allocation2 + $0x38] sm:$0xff]
        %v2043 = vld [vmem:[#allocation2 + $0x40] sm:$0x3]
        %v2044 = vld [vmem:[#allocation2 + $0x48] sm:$0xff]
        %v2045 = vld [vmem:[#allocation2 + $0x50] sm:$0xff]
        %v2046 = vld [vmem:[#allocation2 + $0x58] sm:$0x3]
        %v2047 = vld [vmem:[#allocation2 + $0x60] sm:$0xff]
        %v2048 = vld [vmem:[#allocation2 + $0x68] sm:$0xff]
        %v2049 = vld [vmem:[#allocation2 + $0x70] sm:$0x3]
        %v2050 = vld [vmem:[#allocation2 + $0x78] sm:$0xff]
        %v2051 = vld [vmem:[#allocation2 + $0x80] sm:$0xff]
        %v2052 = vld [vmem:[#allocation2 + $0x88] sm:$0x3]
        %v2053 = vld [vmem:[#allocation2 + $0x90] sm:$0xff]
        %v2054 = vld [vmem:[#allocation2 + $0x98] sm:$0xff]
        %v2055 = vld [vmem:[#allocation2 + $0xa0] sm:$0x3]
        %v2056 = vld [vmem:[#allocation2 + $0xa8] sm:$0xff]
        %v2057 = vld [vmem:[#allocation2 + $0xb0] sm:$0xff]
        %v2058 = vld [vmem:[#allocation2 + $0xb8] sm:$0x3]
        %v2059 = vld [vmem:[#allocation2 + $0xc0] sm:$0xff]
        %v2060 = vld [vmem:[#allocation2 + $0xc8] sm:$0xff]
        %v2061 = vld [vmem:[#allocation2 + $0xd0] sm:$0x3]
        %v2062 = vld [vmem:[#allocation2 + $0xd8] sm:$0xff]
        %v2063 = vld [vmem:[#allocation2 + $0xe0] sm:$0xff]
        %v2064 = vld [vmem:[#allocation2 + $0xe8] sm:$0x3]
        %v2065 = vld [vmem:[#allocation2 + $0xf0] sm:$0xff]
        %v2066 = vld [vmem:[#allocation2 + $0xf8] sm:$0xff]
        %v2067 = vld [vmem:[#allocation2 + $0x100] sm:$0x3]
        %v2068 = vld [vmem:[#allocation2 + $0x108] sm:$0xff]
        %v2069 = vld [vmem:[#allocation2 + $0x110] sm:$0xff]
        %v2070 = vld [vmem:[#allocation2 + $0x118] sm:$0x3]
        %v2071 = vld [vmem:[#allocation2 + $0x120] sm:$0xff]
        %v2072 = vld [vmem:[#allocation2 + $0x128] sm:$0xff]
        %v2073 = vld [vmem:[#allocation2 + $0x130] sm:$0x3]
        %v2074 = vld [vmem:[#allocation2 + $0x138] sm:$0xff]
        %v2075 = vld [vmem:[#allocation2 + $0x140] sm:$0xff]
        %v2076 = vld [vmem:[#allocation2 + $0x148] sm:$0x3]
        %v2077 = vld [vmem:[#allocation2 + $0x150] sm:$0xff]
        %v2078 = vld [vmem:[#allocation2 + $0x158] sm:$0xff]
        %v2079 = vld [vmem:[#allocation2 + $0x160] sm:$0x3]
        %v2080 = vld [vmem:[#allocation2 + $0x168] sm:$0xff]
        %v2081 = vld [vmem:[#allocation2 + $0x170] sm:$0xff]
        %v2082 = vld [vmem:[#allocation2 + $0x178] sm:$0x3]
        %v2083 = vld [vmem:[#allocation2 + $0x180] sm:$0xff]
        %v2084 = vld [vmem:[#allocation2 + $0x188] sm:$0xff]
        %v2085 = vld [vmem:[#allocation2 + $0x190] sm:$0x3]
        %v2086 = vld [vmem:[#allocation2 + $0x198] sm:$0xff]
        %v2087 = vld [vmem:[#allocation2 + $0x1a0] sm:$0xff]
        %v2088 = vld [vmem:[#allocation2 + $0x1a8] sm:$0x3]
        %v2137 = vrot.slane %v2035, 1
        %v2138 = vrot.slane %v2036, 1
        %v2139 = vsel %vm313, %v2137, %v2138
        %v2140 = vrot.slane %v2037, 1
        %v2141 = vsel %vm313, %v2138, %v2140
        %v2142 = vrot.slane %v2038, 1
        %v2143 = vrot.slane %v2039, 1
        %v2144 = vsel %vm313, %v2142, %v2143
        %v2145 = vrot.slane %v2040, 1
        %v2146 = vsel %vm313, %v2143, %v2145
        %v2147 = vrot.slane %v2041, 1
        %v2148 = vrot.slane %v2042, 1
        %v2149 = vsel %vm313, %v2147, %v2148
        %v2150 = vrot.slane %v2043, 1
        %v2151 = vsel %vm313, %v2148, %v2150
        %v2152 = vrot.slane %v2044, 1
        %v2153 = vrot.slane %v2045, 1
        %v2154 = vsel %vm313, %v2152, %v2153
        %v2155 = vrot.slane %v2046, 1
        %v2156 = vsel %vm313, %v2153, %v2155
        %v2157 = vrot.slane %v2047, 1
        %v2158 = vrot.slane %v2048, 1
        %v2159 = vsel %vm313, %v2157, %v2158
        %v2160 = vrot.slane %v2049, 1
        %v2161 = vsel %vm313, %v2158, %v2160
        %v2162 = vrot.slane %v2050, 1
        %v2163 = vrot.slane %v2051, 1
        %v2164 = vsel %vm313, %v2162, %v2163
        %v2165 = vrot.slane %v2052, 1
        %v2166 = vsel %vm313, %v2163, %v2165
        %v2167 = vrot.slane %v2053, 1
        %v2168 = vrot.slane %v2054, 1
        %v2169 = vsel %vm313, %v2167, %v2168
        %v2170 = vrot.slane %v2055, 1
        %v2171 = vsel %vm313, %v2168, %v2170
        %v2172 = vrot.slane %v2056, 1
        %v2173 = vrot.slane %v2057, 1
        %v2174 = vsel %vm313, %v2172, %v2173
        %v2175 = vrot.slane %v2058, 1
        %v2176 = vsel %vm313, %v2173, %v2175
        %v2177 = vrot.slane %v2059, 1
        %v2178 = vrot.slane %v2060, 1
        %v2179 = vsel %vm313, %v2177, %v2178
        %v2180 = vrot.slane %v2061, 1
        %v2181 = vsel %vm313, %v2178, %v2180
        %v2182 = vrot.slane %v2062, 1
        %v2183 = vrot.slane %v2063, 1
        %v2184 = vsel %vm313, %v2182, %v2183
        %v2185 = vrot.slane %v2064, 1
        %v2186 = vsel %vm313, %v2183, %v2185
        %v2187 = vrot.slane %v2065, 1
        %v2188 = vrot.slane %v2066, 1
        %v2189 = vsel %vm313, %v2187, %v2188
        %v2190 = vrot.slane %v2067, 1
        %v2191 = vsel %vm313, %v2188, %v2190
        %v2192 = vrot.slane %v2068, 1
        %v2193 = vrot.slane %v2069, 1
        %v2194 = vsel %vm313, %v2192, %v2193
        %v2195 = vrot.slane %v2070, 1
        %v2196 = vsel %vm313, %v2193, %v2195
        %v2197 = vrot.slane %v2071, 1
        %v2198 = vrot.slane %v2072, 1
        %v2199 = vsel %vm313, %v2197, %v2198
        %v2200 = vrot.slane %v2073, 1
        %v2201 = vsel %vm313, %v2198, %v2200
        %v2202 = vrot.slane %v2074, 1
        %v2203 = vrot.slane %v2075, 1
        %v2204 = vsel %vm313, %v2202, %v2203
        %v2205 = vrot.slane %v2076, 1
        %v2206 = vsel %vm313, %v2203, %v2205
        %v2207 = vrot.slane %v2077, 1
        %v2208 = vrot.slane %v2078, 1
        %v2209 = vsel %vm313, %v2207, %v2208
        %v2210 = vrot.slane %v2079, 1
        %v2211 = vsel %vm313, %v2208, %v2210
        %v2212 = vrot.slane %v2080, 1
        %v2213 = vrot.slane %v2081, 1
        %v2214 = vsel %vm313, %v2212, %v2213
        %v2215 = vrot.slane %v2082, 1
        %v2216 = vsel %vm313, %v2213, %v2215
        %v2249 = vrot.slane %v2035, 2
        %v2250 = vrot.slane %v2036, 2
        %v2251 = vsel %vm426, %v2249, %v2250
        %v2252 = vrot.slane %v2037, 2
        %v2253 = vsel %vm426, %v2250, %v2252
        %v2254 = vrot.slane %v2038, 2
        %v2255 = vrot.slane %v2039, 2
        %v2256 = vsel %vm426, %v2254, %v2255
        %v2257 = vrot.slane %v2040, 2
        %v2258 = vsel %vm426, %v2255, %v2257
        %v2259 = vrot.slane %v2041, 2
        %v2260 = vrot.slane %v2042, 2
        %v2261 = vsel %vm426, %v2259, %v2260
        %v2262 = vrot.slane %v2043, 2
        %v2263 = vsel %vm426, %v2260, %v2262
        %v2264 = vrot.slane %v2044, 2
        %v2265 = vrot.slane %v2045, 2
        %v2266 = vsel %vm426, %v2264, %v2265
        %v2267 = vrot.slane %v2046, 2
        %v2268 = vsel %vm426, %v2265, %v2267
        %v2269 = vrot.slane %v2047, 2
        %v2270 = vrot.slane %v2048, 2
        %v2271 = vsel %vm426, %v2269, %v2270
        %v2272 = vrot.slane %v2049, 2
        %v2273 = vsel %vm426, %v2270, %v2272
        %v2274 = vrot.slane %v2050, 2
        %v2275 = vrot.slane %v2051, 2
        %v2276 = vsel %vm426, %v2274, %v2275
        %v2277 = vrot.slane %v2052, 2
        %v2278 = vsel %vm426, %v2275, %v2277
        %v2279 = vrot.slane %v2053, 2
        %v2280 = vrot.slane %v2054, 2
        %v2281 = vsel %vm426, %v2279, %v2280
        %v2282 = vrot.slane %v2055, 2
        %v2283 = vsel %vm426, %v2280, %v2282
        %v2284 = vrot.slane %v2056, 2
        %v2285 = vrot.slane %v2057, 2
        %v2286 = vsel %vm426, %v2284, %v2285
        %v2287 = vrot.slane %v2058, 2
        %v2288 = vsel %vm426, %v2285, %v2287
        %v2289 = vrot.slane %v2059, 2
        %v2290 = vrot.slane %v2060, 2
        %v2291 = vsel %vm426, %v2289, %v2290
        %v2292 = vrot.slane %v2061, 2
        %v2293 = vsel %vm426, %v2290, %v2292
        %v2294 = vrot.slane %v2062, 2
        %v2295 = vrot.slane %v2063, 2
        %v2296 = vsel %vm426, %v2294, %v2295
        %v2297 = vrot.slane %v2064, 2
        %v2298 = vsel %vm426, %v2295, %v2297
        %v2299 = vrot.slane %v2065, 2
        %v2300 = vrot.slane %v2066, 2
        %v2301 = vsel %vm426, %v2299, %v2300
        %v2302 = vrot.slane %v2067, 2
        %v2303 = vsel %vm426, %v2300, %v2302
        %v2304 = vrot.slane %v2068, 2
        %v2305 = vrot.slane %v2069, 2
        %v2306 = vsel %vm426, %v2304, %v2305
        %v2307 = vrot.slane %v2070, 2
        %v2308 = vsel %vm426, %v2305, %v2307
        %v2309 = vrot.slane %v2071, 2
        %v2310 = vrot.slane %v2072, 2
        %v2311 = vsel %vm426, %v2309, %v2310
        %v2312 = vrot.slane %v2073, 2
        %v2313 = vsel %vm426, %v2310, %v2312
        %v2314 = vrot.slane %v2074, 2
        %v2315 = vrot.slane %v2075, 2
        %v2316 = vsel %vm426, %v2314, %v2315
        %v2317 = vrot.slane %v2076, 2
        %v2318 = vsel %vm426, %v2315, %v2317
        %v2319 = vrot.slane %v2077, 2
        %v2320 = vrot.slane %v2078, 2
        %v2321 = vsel %vm426, %v2319, %v2320
        %v2322 = vrot.slane %v2079, 2
        %v2323 = vsel %vm426, %v2320, %v2322
        %v2324 = vrot.slane %v2080, 2
        %v2325 = vrot.slane %v2081, 2
        %v2326 = vsel %vm426, %v2324, %v2325
        %v2327 = vrot.slane %v2082, 2
        %v2328 = vsel %vm426, %v2325, %v2327
        %v2364 = vrot.slane %v2083, 1
        %v2365 = vrot.slane %v2084, 1
        %v2366 = vsel %vm313, %v2364, %v2365
        %v2367 = vrot.slane %v2085, 1
        %v2368 = vsel %vm313, %v2365, %v2367
        %v2371 = vrot.slane %v2083, 2
        %v2372 = vrot.slane %v2084, 2
        %v2373 = vsel %vm426, %v2371, %v2372
        %v2374 = vrot.slane %v2085, 2
        %v2375 = vsel %vm426, %v2372, %v2374
        %v2381 = vrot.slane %v2086, 1
        %v2382 = vrot.slane %v2087, 1
        %v2383 = vsel %vm313, %v2381, %v2382
        %v2384 = vrot.slane %v2088, 1
        %v2385 = vsel %vm313, %v2382, %v2384
        %v2388 = vrot.slane %v2086, 2
        %v2389 = vrot.slane %v2087, 2
        %v2390 = vsel %vm426, %v2388, %v2389
        %v2391 = vrot.slane %v2088, 2
        %v2392 = vsel %vm426, %v2389, %v2391
        %v2395 = vld [vmem:[#allocation3] sm:$0xff]
        %v2396 = vld [vmem:[#allocation3 + $0x8] sm:$0xff]
        %v2397 = vld [vmem:[#allocation3 + $0x10] sm:$0xff]
        %v2398 = vld [vmem:[#allocation3 + $0x18] sm:$0xff]
        %v2399 = vld [vmem:[#allocation3 + $0x20] sm:$0xff]
        %v2400 = vld [vmem:[#allocation3 + $0x28] sm:$0xff]
        %v2401 = vld [vmem:[#allocation3 + $0x30] sm:$0xff]
        %v2402 = vld [vmem:[#allocation3 + $0x38] sm:$0xff]
        %v2403 = vld [vmem:[#allocation3 + $0x40] sm:$0xff]
        %v2404 = vld [vmem:[#allocation3 + $0x48] sm:$0xff]
        %v2405 = vld [vmem:[#allocation3 + $0x50] sm:$0xff]
        %v2406 = vld [vmem:[#allocation3 + $0x58] sm:$0xff]
        %v2407 = vld [vmem:[#allocation3 + $0x60] sm:$0xff]
        %v2408 = vld [vmem:[#allocation3 + $0x68] sm:$0xff]
        %v2409 = vld [vmem:[#allocation3 + $0x70] sm:$0xff]
        %v2410 = vld [vmem:[#allocation3 + $0x78] sm:$0xff]
        %v2411 = vld [vmem:[#allocation3 + $0x80] sm:$0xff]
        %v2412 = vld [vmem:[#allocation3 + $0x88] sm:$0xff]
        %v2413 = vld [vmem:[#allocation3 + $0x90] sm:$0xff]
        %v2414 = vld [vmem:[#allocation3 + $0x98] sm:$0xff]
        %v2415 = vld [vmem:[#allocation3 + $0xa0] sm:$0xff]
        %v2416 = vld [vmem:[#allocation3 + $0xa8] sm:$0xff]
        %v2417 = vld [vmem:[#allocation3 + $0xb0] sm:$0xff]
        %v2418 = vld [vmem:[#allocation3 + $0xb8] sm:$0xff]
        %v2419 = vld [vmem:[#allocation3 + $0xc0] sm:$0xff]
        %v2420 = vld [vmem:[#allocation3 + $0xc8] sm:$0xff]
        %v2421 = vld [vmem:[#allocation3 + $0xd0] sm:$0xff]
        %v2422 = vld [vmem:[#allocation3 + $0xd8] sm:$0xff]
        %v2423 = vld [vmem:[#allocation3 + $0xe0] sm:$0xff]
        %v2424 = vld [vmem:[#allocation3 + $0xe8] sm:$0xff]
        %v2425 = vld [vmem:[#allocation3 + $0xf0] sm:$0xff]
        %v2426 = vld [vmem:[#allocation3 + $0xf8] sm:$0xff]
        %v2427 = vld [vmem:[#allocation3 + $0x100] sm:$0xff]
        %v2428 = vld [vmem:[#allocation3 + $0x108] sm:$0xff]
        %v2429 = vld [vmem:[#allocation3 + $0x110] sm:$0xff]
        %v2430 = vld [vmem:[#allocation3 + $0x118] sm:$0xff]
        %v2431 = vld [vmem:[#allocation3 + $0x120] sm:$0xff]
        %v2432 = vld [vmem:[#allocation3 + $0x128] sm:$0xff]
        %v2433 = vld [vmem:[#allocation3 + $0x130] sm:$0xff]
        %v2434 = vld [vmem:[#allocation3 + $0x138] sm:$0xff]
        %v2435 = vld [vmem:[#allocation3 + $0x140] sm:$0xff]
        %v2436 = vld [vmem:[#allocation3 + $0x148] sm:$0xff]
        %v2437 = vld [vmem:[#allocation3 + $0x150] sm:$0xff]
        %v2438 = vld [vmem:[#allocation3 + $0x158] sm:$0xff]
        %v2439 = vld [vmem:[#allocation3 + $0x160] sm:$0xff]
        %v2440 = vld [vmem:[#allocation3 + $0x168] sm:$0xff]
        %v2441 = vld [vmem:[#allocation3 + $0x170] sm:$0xff]
        %v2442 = vld [vmem:[#allocation3 + $0x178] sm:$0xff]
        %v2443 = vld [vmem:[#allocation3 + $0x180] sm:$0xff]
        %v2444 = vld [vmem:[#allocation3 + $0x188] sm:$0xff]
        %v2445 = vld [vmem:[#allocation3 + $0x190] sm:$0xff]
        %v2446 = vld [vmem:[#allocation3 + $0x198] sm:$0xff]
        %v2447 = vld [vmem:[#allocation3 + $0x1a0] sm:$0xff]
        %v2448 = vld [vmem:[#allocation3 + $0x1a8] sm:$0xff]
        %v2449 = vld [vmem:[#allocation3 + $0x1b0] sm:$0xff]
        %v2450 = vld [vmem:[#allocation3 + $0x1b8] sm:$0xff]
        %v2451 = vld [vmem:[#allocation3 + $0x1c0] sm:$0xff]
        %v2452 = vld [vmem:[#allocation3 + $0x1c8] sm:$0xff]
        %v2453 = vld [vmem:[#allocation3 + $0x1d0] sm:$0xff]
        %v2454 = vld [vmem:[#allocation3 + $0x1d8] sm:$0xff]
        %v2455 = vld [vmem:[#allocation3 + $0x1e0] sm:$0xff]
        %v2456 = vld [vmem:[#allocation3 + $0x1e8] sm:$0xff]
        %v2457 = vld [vmem:[#allocation3 + $0x1f0] sm:$0xff]
        %v2458 = vld [vmem:[#allocation3 + $0x1f8] sm:$0xff]
        %v2459 = vld [vmem:[#allocation3 + $0x200] sm:$0xff]
        %v2460 = vld [vmem:[#allocation3 + $0x208] sm:$0xff]
        %v2461 = vld [vmem:[#allocation3 + $0x210] sm:$0xff]
        %v2462 = vld [vmem:[#allocation3 + $0x218] sm:$0xff]
        %v2463 = vld [vmem:[#allocation3 + $0x220] sm:$0xff]
        %v2464 = vld [vmem:[#allocation3 + $0x228] sm:$0xff]
        %v2465 = vld [vmem:[#allocation3 + $0x230] sm:$0xff]
        %v2466 = vld [vmem:[#allocation3 + $0x238] sm:$0xff]
        %v2467 = vld [vmem:[#allocation3 + $0x240] sm:$0xff]
        %v2468 = vld [vmem:[#allocation3 + $0x248] sm:$0xff]
        %v2469 = vld [vmem:[#allocation3 + $0x250] sm:$0xff]
        %v2470 = vld [vmem:[#allocation3 + $0x258] sm:$0xff]
        %v2471 = vld [vmem:[#allocation3 + $0x260] sm:$0xff]
        %v2472 = vld [vmem:[#allocation3 + $0x268] sm:$0xff]
        %v2473 = vld [vmem:[#allocation3 + $0x270] sm:$0xff]
        %v2474 = vld [vmem:[#allocation3 + $0x278] sm:$0xff]
        %v2475 = vld [vmem:[#allocation3 + $0x280] sm:$0xff]
        %v2476 = vld [vmem:[#allocation3 + $0x288] sm:$0xff]
        %v2477 = vld [vmem:[#allocation3 + $0x290] sm:$0xff]
        %v2478 = vld [vmem:[#allocation3 + $0x298] sm:$0xff]
        %v2479 = vld [vmem:[#allocation3 + $0x2a0] sm:$0xff]
        %v2480 = vld [vmem:[#allocation3 + $0x2a8] sm:$0xff]
        %v2481 = vld [vmem:[#allocation3 + $0x2b0] sm:$0xff]
        %v2482 = vld [vmem:[#allocation3 + $0x2b8] sm:$0xff]
        %v2483 = vld [vmem:[#allocation3 + $0x2c0] sm:$0xff]
        %v2484 = vld [vmem:[#allocation3 + $0x2c8] sm:$0xff]
        %v2485 = vld [vmem:[#allocation3 + $0x2d0] sm:$0xff]
        %v2486 = vld [vmem:[#allocation3 + $0x2d8] sm:$0xff]
        %v2487 = vld [vmem:[#allocation3 + $0x2e0] sm:$0xff]
        %v2488 = vld [vmem:[#allocation3 + $0x2e8] sm:$0xff]
        %v2489 = vld [vmem:[#allocation3 + $0x2f0] sm:$0xff]
        %v2490 = vld [vmem:[#allocation3 + $0x2f8] sm:$0xff]
        %v2491 = vld [vmem:[#allocation3 + $0x300] sm:$0xff]
        %v2492 = vld [vmem:[#allocation3 + $0x308] sm:$0xff]
        %v2493 = vld [vmem:[#allocation3 + $0x310] sm:$0xff]
        %v2494 = vld [vmem:[#allocation3 + $0x318] sm:$0xff]
        %v2495 = vld [vmem:[#allocation3 + $0x320] sm:$0xff]
        %v2496 = vld [vmem:[#allocation3 + $0x328] sm:$0xff]
        %v2497 = vld [vmem:[#allocation3 + $0x330] sm:$0xff]
        %v2498 = vld [vmem:[#allocation3 + $0x338] sm:$0xff]
        %v2499 = vld [vmem:[#allocation3 + $0x340] sm:$0xff]
        %v2500 = vld [vmem:[#allocation3 + $0x348] sm:$0xff]
        %v2501 = vld [vmem:[#allocation3 + $0x350] sm:$0xff]
        %v2502 = vld [vmem:[#allocation3 + $0x358] sm:$0xff]
        %v2503 = vld [vmem:[#allocation3 + $0x360] sm:$0xff]
        %v2504 = vld [vmem:[#allocation3 + $0x368] sm:$0xff]
        %v2505 = vld [vmem:[#allocation3 + $0x370] sm:$0xff]
        %v2506 = vld [vmem:[#allocation3 + $0x378] sm:$0xff]
        %v2507 = vld [vmem:[#allocation3 + $0x380] sm:$0xff]
        %v2508 = vld [vmem:[#allocation3 + $0x388] sm:$0xff]
        %v2509 = vld [vmem:[#allocation3 + $0x390] sm:$0xff]
        %v2510 = vld [vmem:[#allocation3 + $0x398] sm:$0xff]
        %v2511 = vld [vmem:[#allocation3 + $0x3a0] sm:$0xff]
        %v2512 = vld [vmem:[#allocation3 + $0x3a8] sm:$0xff]
        %v2513 = vld [vmem:[#allocation3 + $0x3b0] sm:$0xff]
        %v2514 = vld [vmem:[#allocation3 + $0x3b8] sm:$0xff]
        %v2515 = vld [vmem:[#allocation3 + $0x3c0] sm:$0xff]
        %v2516 = vld [vmem:[#allocation3 + $0x3c8] sm:$0xff]
        %v2517 = vld [vmem:[#allocation3 + $0x3d0] sm:$0xff]
        %v2518 = vld [vmem:[#allocation3 + $0x3d8] sm:$0xff]
        %v2519 = vld [vmem:[#allocation3 + $0x3e0] sm:$0xff]
        %v2520 = vld [vmem:[#allocation3 + $0x3e8] sm:$0xff]
        %v2521 = vld [vmem:[#allocation3 + $0x3f0] sm:$0xff]
        %v2522 = vld [vmem:[#allocation3 + $0x3f8] sm:$0xff]
        %v2523 = vld [vmem:[#allocation3 + $0x400] sm:$0xff]
        %v2524 = vld [vmem:[#allocation3 + $0x408] sm:$0xff]
        %v2525 = vld [vmem:[#allocation3 + $0x410] sm:$0xff]
        %v2526 = vld [vmem:[#allocation3 + $0x418] sm:$0xff]
        %v2527 = vld [vmem:[#allocation3 + $0x420] sm:$0xff]
        %v2528 = vld [vmem:[#allocation3 + $0x428] sm:$0xff]
        %v2529 = vld [vmem:[#allocation3 + $0x430] sm:$0xff]
        %v2530 = vld [vmem:[#allocation3 + $0x438] sm:$0xff]
        %v2531 = vld [vmem:[#allocation3 + $0x440] sm:$0xff]
        %v2532 = vld [vmem:[#allocation3 + $0x448] sm:$0xff]
        %v2533 = vld [vmem:[#allocation3 + $0x450] sm:$0xff]
        %v2534 = vld [vmem:[#allocation3 + $0x458] sm:$0xff]
        %v2535 = vld [vmem:[#allocation3 + $0x460] sm:$0xff]
        %v2536 = vld [vmem:[#allocation3 + $0x468] sm:$0xff]
        %v2537 = vld [vmem:[#allocation3 + $0x470] sm:$0xff]
        %v2538 = vld [vmem:[#allocation3 + $0x478] sm:$0xff]
        %2539 = vmatprep.subr.mxu0 0.0
        %2540 = vmatpush1.msra.mxu0 %v2410
        %2541 = vmatprep.subr.mxu0 0.0
        %2542 = vmatpush1.msra.mxu0 %v2409
        %2543 = vmatprep.subr.mxu0 0.0
        %2544 = vmatpush1.msra.mxu0 %v2408
        %2545 = vmatprep.subr.mxu0 0.0
        %2546 = vmatpush1.msra.mxu0 %v2407
        %2547 = vmatprep.subr.mxu0 0.0
        %2548 = vmatpush1.msra.mxu0 %v2406
        %2549 = vmatprep.subr.mxu0 0.0
        %2550 = vmatpush1.msra.mxu0 %v2405
        %2551 = vmatprep.subr.mxu0 0.0
        %2552 = vmatpush1.msra.mxu0 %v2404
        %2553 = vmatprep.subr.mxu0 0.0
        %2554 = vmatpush1.msra.mxu0 %v2403
        %2555 = vmatprep.subr.mxu0 0.0
        %2556 = vmatpush1.msra.mxu0 %v2402
        %2557 = vmatprep.subr.mxu0 0.0
        %2558 = vmatpush1.msra.mxu0 %v2401
        %2559 = vmatprep.subr.mxu0 0.0
        %2560 = vmatpush1.msra.mxu0 %v2400
        %2561 = vmatprep.subr.mxu0 0.0
        %2562 = vmatpush1.msra.mxu0 %v2399
        %2563 = vmatprep.subr.mxu0 0.0
        %2564 = vmatpush1.msra.mxu0 %v2398
        %2565 = vmatprep.subr.mxu0 0.0
        %2566 = vmatpush1.msra.mxu0 %v2397
        %2567 = vmatprep.subr.mxu0 0.0
        %2568 = vmatpush1.msra.mxu0 %v2396
        %2569 = vmatprep.subr.mxu0 0.0
        %2570 = vmatpush1.msra.mxu0 %v2395
        %2571 = vmatprep.subr.mxu0 0.0
        %2572 = vmatpush2.msra.mxu0 %v2426
        %2573 = vmatprep.subr.mxu0 0.0
        %2574 = vmatpush2.msra.mxu0 %v2425
        %2575 = vmatprep.subr.mxu0 0.0
        %2576 = vmatpush2.msra.mxu0 %v2424
        %2577 = vmatprep.subr.mxu0 0.0
        %2578 = vmatpush2.msra.mxu0 %v2423
        %2579 = vmatprep.subr.mxu0 0.0
        %2580 = vmatpush2.msra.mxu0 %v2422
        %2581 = vmatprep.subr.mxu0 0.0
        %2582 = vmatpush2.msra.mxu0 %v2421
        %2583 = vmatprep.subr.mxu0 0.0
        %2584 = vmatpush2.msra.mxu0 %v2420
        %2585 = vmatprep.subr.mxu0 0.0
        %2586 = vmatpush2.msra.mxu0 %v2419
        %2587 = vmatprep.subr.mxu0 0.0
        %2588 = vmatpush2.msra.mxu0 %v2418
        %2589 = vmatprep.subr.mxu0 0.0
        %2590 = vmatpush2.msra.mxu0 %v2417
        %2591 = vmatprep.subr.mxu0 0.0
        %2592 = vmatpush2.msra.mxu0 %v2416
        %2593 = vmatprep.subr.mxu0 0.0
        %2594 = vmatpush2.msra.mxu0 %v2415
        %2595 = vmatprep.subr.mxu0 0.0
        %2596 = vmatpush2.msra.mxu0 %v2414
        %2597 = vmatprep.subr.mxu0 0.0
        %2598 = vmatpush2.msra.mxu0 %v2413
        %2599 = vmatprep.subr.mxu0 0.0
        %2600 = vmatpush2.msra.mxu0 %v2412
        %2601 = vmatprep.subr.mxu0 0.0
        %2602 = vmatpush2.msra.mxu0 %v2411
        %2603 = vmatprep.mubr.f32.mxu0 %v2139
        %2604 = vmatmul.mubr.f32.gmra.mxu0 %v2035
        %v2605 = vpop.f32.mrf.mxu0
        %v2606 = vadd.f32 0.0, %v2605
        %v2607 = vpop.f32.mrf.mxu0
        %2608 = vmatprep.mubr.f32.mxu0 %v2141
        %2609 = vmatmul.mubr.f32.gmra.mxu0 %v2036
        %v2610 = vpop.f32.mrf.mxu0
        %v2611 = vadd.f32 0.0, %v2610
        %v2612 = vpop.f32.mrf.mxu0
        %2613 = vmatprep.mubr.f32.mxu0 %v2144
        %2614 = vmatmul.mubr.f32.gmra.mxu0 %v2038
        %v2615 = vpop.f32.mrf.mxu0
        %v2616 = vadd.f32 0.0, %v2615
        %v2617 = vpop.f32.mrf.mxu0
        %2618 = vmatprep.mubr.f32.mxu0 %v2146
        %2619 = vmatmul.mubr.f32.gmra.mxu0 %v2039
        %v2620 = vpop.f32.mrf.mxu0
        %v2621 = vadd.f32 0.0, %v2620
        %v2622 = vpop.f32.mrf.mxu0
        %2623 = vmatprep.mubr.f32.mxu0 %v2149
        %2624 = vmatmul.mubr.f32.gmra.mxu0 %v2041
        %v2625 = vpop.f32.mrf.mxu0
        %v2626 = vadd.f32 0.0, %v2625
        %v2627 = vpop.f32.mrf.mxu0
        %2628 = vmatprep.mubr.f32.mxu0 %v2151
        %2629 = vmatmul.mubr.f32.gmra.mxu0 %v2042
        %v2630 = vpop.f32.mrf.mxu0
        %v2631 = vadd.f32 0.0, %v2630
        %v2632 = vpop.f32.mrf.mxu0
        %2633 = vmatprep.mubr.f32.mxu0 %v2154
        %2634 = vmatmul.mubr.f32.gmra.mxu0 %v2044
        %v2635 = vpop.f32.mrf.mxu0
        %v2636 = vadd.f32 0.0, %v2635
        %v2637 = vpop.f32.mrf.mxu0
        %2638 = vmatprep.mubr.f32.mxu0 %v2156
        %2639 = vmatmul.mubr.f32.gmra.mxu0 %v2045
        %v2640 = vpop.f32.mrf.mxu0
        %v2641 = vadd.f32 0.0, %v2640
        %v2642 = vpop.f32.mrf.mxu0
        %2643 = vmatprep.mubr.f32.mxu0 %v2159
        %2644 = vmatmul.mubr.f32.gmra.mxu0 %v2047
        %v2645 = vpop.f32.mrf.mxu0
        %v2646 = vadd.f32 0.0, %v2645
        %v2647 = vpop.f32.mrf.mxu0
        %2648 = vmatprep.mubr.f32.mxu0 %v2161
        %2649 = vmatmul.mubr.f32.gmra.mxu0 %v2048
        %v2650 = vpop.f32.mrf.mxu0
        %v2651 = vadd.f32 0.0, %v2650
        %v2652 = vpop.f32.mrf.mxu0
        %2653 = vmatprep.mubr.f32.mxu0 %v2164
        %2654 = vmatmul.mubr.f32.gmra.mxu0 %v2050
        %v2655 = vpop.f32.mrf.mxu0
        %v2656 = vadd.f32 0.0, %v2655
        %v2657 = vpop.f32.mrf.mxu0
        %2658 = vmatprep.mubr.f32.mxu0 %v2166
        %2659 = vmatmul.mubr.f32.gmra.mxu0 %v2051
        %v2660 = vpop.f32.mrf.mxu0
        %v2661 = vadd.f32 0.0, %v2660
        %v2662 = vpop.f32.mrf.mxu0
        %2663 = vmatprep.mubr.f32.mxu0 %v2169
        %2664 = vmatmul.mubr.f32.gmra.mxu0 %v2053
        %v2665 = vpop.f32.mrf.mxu0
        %v2666 = vadd.f32 0.0, %v2665
        %v2667 = vpop.f32.mrf.mxu0
        %2668 = vmatprep.mubr.f32.mxu0 %v2171
        %2669 = vmatmul.mubr.f32.gmra.mxu0 %v2054
        %v2670 = vpop.f32.mrf.mxu0
        %v2671 = vadd.f32 0.0, %v2670
        %v2672 = vpop.f32.mrf.mxu0
        %2673 = vmatprep.mubr.f32.mxu0 %v2174
        %2674 = vmatmul.mubr.f32.gmra.mxu0 %v2056
        %v2675 = vpop.f32.mrf.mxu0
        %v2676 = vadd.f32 0.0, %v2675
        %v2677 = vpop.f32.mrf.mxu0
        %2678 = vmatprep.mubr.f32.mxu0 %v2176
        %2679 = vmatmul.mubr.f32.gmra.mxu0 %v2057
        %v2680 = vpop.f32.mrf.mxu0
        %v2681 = vadd.f32 0.0, %v2680
        %v2682 = vpop.f32.mrf.mxu0
        %2683 = vmatprep.mubr.f32.mxu0 %v2179
        %2684 = vmatmul.mubr.f32.gmra.mxu0 %v2059
        %v2685 = vpop.f32.mrf.mxu0
        %v2686 = vadd.f32 0.0, %v2685
        %v2687 = vpop.f32.mrf.mxu0
        %2688 = vmatprep.mubr.f32.mxu0 %v2181
        %2689 = vmatmul.mubr.f32.gmra.mxu0 %v2060
        %v2690 = vpop.f32.mrf.mxu0
        %v2691 = vadd.f32 0.0, %v2690
        %v2692 = vpop.f32.mrf.mxu0
        %2693 = vmatprep.mubr.f32.mxu0 %v2184
        %2694 = vmatmul.mubr.f32.gmra.mxu0 %v2062
        %v2695 = vpop.f32.mrf.mxu0
        %v2696 = vadd.f32 0.0, %v2695
        %v2697 = vpop.f32.mrf.mxu0
        %2698 = vmatprep.mubr.f32.mxu0 %v2186
        %2699 = vmatmul.mubr.f32.gmra.mxu0 %v2063
        %v2700 = vpop.f32.mrf.mxu0
        %v2701 = vadd.f32 0.0, %v2700
        %v2702 = vpop.f32.mrf.mxu0
        %2703 = vmatprep.mubr.f32.mxu0 %v2189
        %2704 = vmatmul.mubr.f32.gmra.mxu0 %v2065
        %v2705 = vpop.f32.mrf.mxu0
        %v2706 = vadd.f32 0.0, %v2705
        %v2707 = vpop.f32.mrf.mxu0
        %2708 = vmatprep.mubr.f32.mxu0 %v2191
        %2709 = vmatmul.mubr.f32.gmra.mxu0 %v2066
        %v2710 = vpop.f32.mrf.mxu0
        %v2711 = vadd.f32 0.0, %v2710
        %v2712 = vpop.f32.mrf.mxu0
        %2713 = vmatprep.mubr.f32.mxu0 %v2194
        %2714 = vmatmul.mubr.f32.gmra.mxu0 %v2068
        %v2715 = vpop.f32.mrf.mxu0
        %v2716 = vadd.f32 0.0, %v2715
        %v2717 = vpop.f32.mrf.mxu0
        %2718 = vmatprep.mubr.f32.mxu0 %v2196
        %2719 = vmatmul.mubr.f32.gmra.mxu0 %v2069
        %v2720 = vpop.f32.mrf.mxu0
        %v2721 = vadd.f32 0.0, %v2720
        %v2722 = vpop.f32.mrf.mxu0
        %2723 = vmatprep.mubr.f32.mxu0 %v2199
        %2724 = vmatmul.mubr.f32.gmra.mxu0 %v2071
        %v2725 = vpop.f32.mrf.mxu0
        %v2726 = vadd.f32 0.0, %v2725
        %v2727 = vpop.f32.mrf.mxu0
        %2728 = vmatprep.mubr.f32.mxu0 %v2201
        %2729 = vmatmul.mubr.f32.gmra.mxu0 %v2072
        %v2730 = vpop.f32.mrf.mxu0
        %v2731 = vadd.f32 0.0, %v2730
        %v2732 = vpop.f32.mrf.mxu0
        %2733 = vmatprep.mubr.f32.mxu0 %v2204
        %2734 = vmatmul.mubr.f32.gmra.mxu0 %v2074
        %v2735 = vpop.f32.mrf.mxu0
        %v2736 = vadd.f32 0.0, %v2735
        %v2737 = vpop.f32.mrf.mxu0
        %2738 = vmatprep.mubr.f32.mxu0 %v2206
        %2739 = vmatmul.mubr.f32.gmra.mxu0 %v2075
        %v2740 = vpop.f32.mrf.mxu0
        %v2741 = vadd.f32 0.0, %v2740
        %v2742 = vpop.f32.mrf.mxu0
        %2743 = vmatprep.mubr.f32.mxu0 %v2209
        %2744 = vmatmul.mubr.f32.gmra.mxu0 %v2077
        %v2745 = vpop.f32.mrf.mxu0
        %v2746 = vadd.f32 0.0, %v2745
        %v2747 = vpop.f32.mrf.mxu0
        %2748 = vmatprep.mubr.f32.mxu0 %v2211
        %2749 = vmatmul.mubr.f32.gmra.mxu0 %v2078
        %v2750 = vpop.f32.mrf.mxu0
        %v2751 = vadd.f32 0.0, %v2750
        %v2752 = vpop.f32.mrf.mxu0
        %2753 = vmatprep.mubr.f32.mxu0 %v2214
        %2754 = vmatmul.mubr.f32.gmra.mxu0 %v2080
        %v2755 = vpop.f32.mrf.mxu0
        %v2756 = vadd.f32 0.0, %v2755
        %v2757 = vpop.f32.mrf.mxu0
        %2758 = vmatprep.mubr.f32.mxu0 %v2216
        %2759 = vmatmul.mubr.f32.gmra.mxu0 %v2081
        %v2760 = vpop.f32.mrf.mxu0
        %v2761 = vadd.f32 0.0, %v2760
        %v2762 = vpop.f32.mrf.mxu0
        %2763 = vdwg.mxu0
        %2764 = vmatprep.subr.mxu0 0.0
        %2765 = vmatpush1.msra.mxu0 %v2442
        %2766 = vmatprep.subr.mxu0 0.0
        %2767 = vmatpush1.msra.mxu0 %v2441
        %2768 = vmatprep.subr.mxu0 0.0
        %2769 = vmatpush1.msra.mxu0 %v2440
        %2770 = vmatprep.subr.mxu0 0.0
        %2771 = vmatpush1.msra.mxu0 %v2439
        %2772 = vmatprep.subr.mxu0 0.0
        %2773 = vmatpush1.msra.mxu0 %v2438
        %2774 = vmatprep.subr.mxu0 0.0
        %2775 = vmatpush1.msra.mxu0 %v2437
        %2776 = vmatprep.subr.mxu0 0.0
        %2777 = vmatpush1.msra.mxu0 %v2436
        %2778 = vmatprep.subr.mxu0 0.0
        %2779 = vmatpush1.msra.mxu0 %v2435
        %2780 = vmatprep.subr.mxu0 0.0
        %2781 = vmatpush1.msra.mxu0 %v2434
        %2782 = vmatprep.subr.mxu0 0.0
        %2783 = vmatpush1.msra.mxu0 %v2433
        %2784 = vmatprep.subr.mxu0 0.0
        %2785 = vmatpush1.msra.mxu0 %v2432
        %2786 = vmatprep.subr.mxu0 0.0
        %2787 = vmatpush1.msra.mxu0 %v2431
        %2788 = vmatprep.subr.mxu0 0.0
        %2789 = vmatpush1.msra.mxu0 %v2430
        %2790 = vmatprep.subr.mxu0 0.0
        %2791 = vmatpush1.msra.mxu0 %v2429
        %2792 = vmatprep.subr.mxu0 0.0
        %2793 = vmatpush1.msra.mxu0 %v2428
        %2794 = vmatprep.subr.mxu0 0.0
        %2795 = vmatpush1.msra.mxu0 %v2427
        %2796 = vmatprep.subr.mxu0 0.0
        %2797 = vmatpush2.msra.mxu0 %v2458
        %2798 = vmatprep.subr.mxu0 0.0
        %2799 = vmatpush2.msra.mxu0 %v2457
        %2800 = vmatprep.subr.mxu0 0.0
        %2801 = vmatpush2.msra.mxu0 %v2456
        %2802 = vmatprep.subr.mxu0 0.0
        %2803 = vmatpush2.msra.mxu0 %v2455
        %2804 = vmatprep.subr.mxu0 0.0
        %2805 = vmatpush2.msra.mxu0 %v2454
        %2806 = vmatprep.subr.mxu0 0.0
        %2807 = vmatpush2.msra.mxu0 %v2453
        %2808 = vmatprep.subr.mxu0 0.0
        %2809 = vmatpush2.msra.mxu0 %v2452
        %2810 = vmatprep.subr.mxu0 0.0
        %2811 = vmatpush2.msra.mxu0 %v2451
        %2812 = vmatprep.subr.mxu0 0.0
        %2813 = vmatpush2.msra.mxu0 %v2450
        %2814 = vmatprep.subr.mxu0 0.0
        %2815 = vmatpush2.msra.mxu0 %v2449
        %2816 = vmatprep.subr.mxu0 0.0
        %2817 = vmatpush2.msra.mxu0 %v2448
        %2818 = vmatprep.subr.mxu0 0.0
        %2819 = vmatpush2.msra.mxu0 %v2447
        %2820 = vmatprep.subr.mxu0 0.0
        %2821 = vmatpush2.msra.mxu0 %v2446
        %2822 = vmatprep.subr.mxu0 0.0
        %2823 = vmatpush2.msra.mxu0 %v2445
        %2824 = vmatprep.subr.mxu0 0.0
        %2825 = vmatpush2.msra.mxu0 %v2444
        %2826 = vmatprep.subr.mxu0 0.0
        %2827 = vmatpush2.msra.mxu0 %v2443
        %2828 = vmatprep.mubr.f32.mxu0 %v2038
        %2829 = vmatmul.mubr.f32.gmra.mxu0 %v2251
        %v2830 = vpop.f32.mrf.mxu0
        %v2831 = vadd.f32 %v2606, %v2830
        %v2832 = vpop.f32.mrf.mxu0
        %2833 = vmatprep.mubr.f32.mxu0 %v2039
        %2834 = vmatmul.mubr.f32.gmra.mxu0 %v2253
        %v2835 = vpop.f32.mrf.mxu0
        %v2836 = vadd.f32 %v2611, %v2835
        %v2837 = vpop.f32.mrf.mxu0
        %2838 = vmatprep.mubr.f32.mxu0 %v2041
        %2839 = vmatmul.mubr.f32.gmra.mxu0 %v2256
        %v2840 = vpop.f32.mrf.mxu0
        %v2841 = vadd.f32 %v2616, %v2840
        %v2842 = vpop.f32.mrf.mxu0
        %2843 = vmatprep.mubr.f32.mxu0 %v2042
        %2844 = vmatmul.mubr.f32.gmra.mxu0 %v2258
        %v2845 = vpop.f32.mrf.mxu0
        %v2846 = vadd.f32 %v2621, %v2845
        %v2847 = vpop.f32.mrf.mxu0
        %2848 = vmatprep.mubr.f32.mxu0 %v2044
        %2849 = vmatmul.mubr.f32.gmra.mxu0 %v2261
        %v2850 = vpop.f32.mrf.mxu0
        %v2851 = vadd.f32 %v2626, %v2850
        %v2852 = vpop.f32.mrf.mxu0
        %2853 = vmatprep.mubr.f32.mxu0 %v2045
        %2854 = vmatmul.mubr.f32.gmra.mxu0 %v2263
        %v2855 = vpop.f32.mrf.mxu0
        %v2856 = vadd.f32 %v2631, %v2855
        %v2857 = vpop.f32.mrf.mxu0
        %2858 = vmatprep.mubr.f32.mxu0 %v2047
        %2859 = vmatmul.mubr.f32.gmra.mxu0 %v2266
        %v2860 = vpop.f32.mrf.mxu0
        %v2861 = vadd.f32 %v2636, %v2860
        %v2862 = vpop.f32.mrf.mxu0
        %2863 = vmatprep.mubr.f32.mxu0 %v2048
        %2864 = vmatmul.mubr.f32.gmra.mxu0 %v2268
        %v2865 = vpop.f32.mrf.mxu0
        %v2866 = vadd.f32 %v2641, %v2865
        %v2867 = vpop.f32.mrf.mxu0
        %2868 = vmatprep.mubr.f32.mxu0 %v2050
        %2869 = vmatmul.mubr.f32.gmra.mxu0 %v2271
        %v2870 = vpop.f32.mrf.mxu0
        %v2871 = vadd.f32 %v2646, %v2870
        %v2872 = vpop.f32.mrf.mxu0
        %2873 = vmatprep.mubr.f32.mxu0 %v2051
        %2874 = vmatmul.mubr.f32.gmra.mxu0 %v2273
        %v2875 = vpop.f32.mrf.mxu0
        %v2876 = vadd.f32 %v2651, %v2875
        %v2877 = vpop.f32.mrf.mxu0
        %2878 = vmatprep.mubr.f32.mxu0 %v2053
        %2879 = vmatmul.mubr.f32.gmra.mxu0 %v2276
        %v2880 = vpop.f32.mrf.mxu0
        %v2881 = vadd.f32 %v2656, %v2880
        %v2882 = vpop.f32.mrf.mxu0
        %2883 = vmatprep.mubr.f32.mxu0 %v2054
        %2884 = vmatmul.mubr.f32.gmra.mxu0 %v2278
        %v2885 = vpop.f32.mrf.mxu0
        %v2886 = vadd.f32 %v2661, %v2885
        %v2887 = vpop.f32.mrf.mxu0
        %2888 = vmatprep.mubr.f32.mxu0 %v2056
        %2889 = vmatmul.mubr.f32.gmra.mxu0 %v2281
        %v2890 = vpop.f32.mrf.mxu0
        %v2891 = vadd.f32 %v2666, %v2890
        %v2892 = vpop.f32.mrf.mxu0
        %2893 = vmatprep.mubr.f32.mxu0 %v2057
        %2894 = vmatmul.mubr.f32.gmra.mxu0 %v2283
        %v2895 = vpop.f32.mrf.mxu0
        %v2896 = vadd.f32 %v2671, %v2895
        %v2897 = vpop.f32.mrf.mxu0
        %2898 = vmatprep.mubr.f32.mxu0 %v2059
        %2899 = vmatmul.mubr.f32.gmra.mxu0 %v2286
        %v2900 = vpop.f32.mrf.mxu0
        %v2901 = vadd.f32 %v2676, %v2900
        %v2902 = vpop.f32.mrf.mxu0
        %2903 = vmatprep.mubr.f32.mxu0 %v2060
        %2904 = vmatmul.mubr.f32.gmra.mxu0 %v2288
        %v2905 = vpop.f32.mrf.mxu0
        %v2906 = vadd.f32 %v2681, %v2905
        %v2907 = vpop.f32.mrf.mxu0
        %2908 = vmatprep.mubr.f32.mxu0 %v2062
        %2909 = vmatmul.mubr.f32.gmra.mxu0 %v2291
        %v2910 = vpop.f32.mrf.mxu0
        %v2911 = vadd.f32 %v2686, %v2910
        %v2912 = vpop.f32.mrf.mxu0
        %2913 = vmatprep.mubr.f32.mxu0 %v2063
        %2914 = vmatmul.mubr.f32.gmra.mxu0 %v2293
        %v2915 = vpop.f32.mrf.mxu0
        %v2916 = vadd.f32 %v2691, %v2915
        %v2917 = vpop.f32.mrf.mxu0
        %2918 = vmatprep.mubr.f32.mxu0 %v2065
        %2919 = vmatmul.mubr.f32.gmra.mxu0 %v2296
        %v2920 = vpop.f32.mrf.mxu0
        %v2921 = vadd.f32 %v2696, %v2920
        %v2922 = vpop.f32.mrf.mxu0
        %2923 = vmatprep.mubr.f32.mxu0 %v2066
        %2924 = vmatmul.mubr.f32.gmra.mxu0 %v2298
        %v2925 = vpop.f32.mrf.mxu0
        %v2926 = vadd.f32 %v2701, %v2925
        %v2927 = vpop.f32.mrf.mxu0
        %2928 = vmatprep.mubr.f32.mxu0 %v2068
        %2929 = vmatmul.mubr.f32.gmra.mxu0 %v2301
        %v2930 = vpop.f32.mrf.mxu0
        %v2931 = vadd.f32 %v2706, %v2930
        %v2932 = vpop.f32.mrf.mxu0
        %2933 = vmatprep.mubr.f32.mxu0 %v2069
        %2934 = vmatmul.mubr.f32.gmra.mxu0 %v2303
        %v2935 = vpop.f32.mrf.mxu0
        %v2936 = vadd.f32 %v2711, %v2935
        %v2937 = vpop.f32.mrf.mxu0
        %2938 = vmatprep.mubr.f32.mxu0 %v2071
        %2939 = vmatmul.mubr.f32.gmra.mxu0 %v2306
        %v2940 = vpop.f32.mrf.mxu0
        %v2941 = vadd.f32 %v2716, %v2940
        %v2942 = vpop.f32.mrf.mxu0
        %2943 = vmatprep.mubr.f32.mxu0 %v2072
        %2944 = vmatmul.mubr.f32.gmra.mxu0 %v2308
        %v2945 = vpop.f32.mrf.mxu0
        %v2946 = vadd.f32 %v2721, %v2945
        %v2947 = vpop.f32.mrf.mxu0
        %2948 = vmatprep.mubr.f32.mxu0 %v2074
        %2949 = vmatmul.mubr.f32.gmra.mxu0 %v2311
        %v2950 = vpop.f32.mrf.mxu0
        %v2951 = vadd.f32 %v2726, %v2950
        %v2952 = vpop.f32.mrf.mxu0
        %2953 = vmatprep.mubr.f32.mxu0 %v2075
        %2954 = vmatmul.mubr.f32.gmra.mxu0 %v2313
        %v2955 = vpop.f32.mrf.mxu0
        %v2956 = vadd.f32 %v2731, %v2955
        %v2957 = vpop.f32.mrf.mxu0
        %2958 = vmatprep.mubr.f32.mxu0 %v2077
        %2959 = vmatmul.mubr.f32.gmra.mxu0 %v2316
        %v2960 = vpop.f32.mrf.mxu0
        %v2961 = vadd.f32 %v2736, %v2960
        %v2962 = vpop.f32.mrf.mxu0
        %2963 = vmatprep.mubr.f32.mxu0 %v2078
        %2964 = vmatmul.mubr.f32.gmra.mxu0 %v2318
        %v2965 = vpop.f32.mrf.mxu0
        %v2966 = vadd.f32 %v2741, %v2965
        %v2967 = vpop.f32.mrf.mxu0
        %2968 = vmatprep.mubr.f32.mxu0 %v2080
        %2969 = vmatmul.mubr.f32.gmra.mxu0 %v2321
        %v2970 = vpop.f32.mrf.mxu0
        %v2971 = vadd.f32 %v2746, %v2970
        %v2972 = vpop.f32.mrf.mxu0
        %2973 = vmatprep.mubr.f32.mxu0 %v2081
        %2974 = vmatmul.mubr.f32.gmra.mxu0 %v2323
        %v2975 = vpop.f32.mrf.mxu0
        %v2976 = vadd.f32 %v2751, %v2975
        %v2977 = vpop.f32.mrf.mxu0
        %2978 = vmatprep.mubr.f32.mxu0 %v2083
        %2979 = vmatmul.mubr.f32.gmra.mxu0 %v2326
        %v2980 = vpop.f32.mrf.mxu0
        %v2981 = vadd.f32 %v2756, %v2980
        %v2982 = vpop.f32.mrf.mxu0
        %2983 = vmatprep.mubr.f32.mxu0 %v2084
        %2984 = vmatmul.mubr.f32.gmra.mxu0 %v2328
        %v2985 = vpop.f32.mrf.mxu0
        %v2986 = vadd.f32 %v2761, %v2985
        %v2987 = vpop.f32.mrf.mxu0
        %2988 = vdwg.mxu0
        %2989 = vmatprep.subr.mxu0 0.0
        %2990 = vmatpush1.msra.mxu0 %v2474
        %2991 = vmatprep.subr.mxu0 0.0
        %2992 = vmatpush1.msra.mxu0 %v2473
        %2993 = vmatprep.subr.mxu0 0.0
        %2994 = vmatpush1.msra.mxu0 %v2472
        %2995 = vmatprep.subr.mxu0 0.0
        %2996 = vmatpush1.msra.mxu0 %v2471
        %2997 = vmatprep.subr.mxu0 0.0
        %2998 = vmatpush1.msra.mxu0 %v2470
        %2999 = vmatprep.subr.mxu0 0.0
        %3000 = vmatpush1.msra.mxu0 %v2469
        %3001 = vmatprep.subr.mxu0 0.0
        %3002 = vmatpush1.msra.mxu0 %v2468
        %3003 = vmatprep.subr.mxu0 0.0
        %3004 = vmatpush1.msra.mxu0 %v2467
        %3005 = vmatprep.subr.mxu0 0.0
        %3006 = vmatpush1.msra.mxu0 %v2466
        %3007 = vmatprep.subr.mxu0 0.0
        %3008 = vmatpush1.msra.mxu0 %v2465
        %3009 = vmatprep.subr.mxu0 0.0
        %3010 = vmatpush1.msra.mxu0 %v2464
        %3011 = vmatprep.subr.mxu0 0.0
        %3012 = vmatpush1.msra.mxu0 %v2463
        %3013 = vmatprep.subr.mxu0 0.0
        %3014 = vmatpush1.msra.mxu0 %v2462
        %3015 = vmatprep.subr.mxu0 0.0
        %3016 = vmatpush1.msra.mxu0 %v2461
        %3017 = vmatprep.subr.mxu0 0.0
        %3018 = vmatpush1.msra.mxu0 %v2460
        %3019 = vmatprep.subr.mxu0 0.0
        %3020 = vmatpush1.msra.mxu0 %v2459
        %3021 = vmatprep.subr.mxu0 0.0
        %3022 = vmatpush2.msra.mxu0 %v2490
        %3023 = vmatprep.subr.mxu0 0.0
        %3024 = vmatpush2.msra.mxu0 %v2489
        %3025 = vmatprep.subr.mxu0 0.0
        %3026 = vmatpush2.msra.mxu0 %v2488
        %3027 = vmatprep.subr.mxu0 0.0
        %3028 = vmatpush2.msra.mxu0 %v2487
        %3029 = vmatprep.subr.mxu0 0.0
        %3030 = vmatpush2.msra.mxu0 %v2486
        %3031 = vmatprep.subr.mxu0 0.0
        %3032 = vmatpush2.msra.mxu0 %v2485
        %3033 = vmatprep.subr.mxu0 0.0
        %3034 = vmatpush2.msra.mxu0 %v2484
        %3035 = vmatprep.subr.mxu0 0.0
        %3036 = vmatpush2.msra.mxu0 %v2483
        %3037 = vmatprep.subr.mxu0 0.0
        %3038 = vmatpush2.msra.mxu0 %v2482
        %3039 = vmatprep.subr.mxu0 0.0
        %3040 = vmatpush2.msra.mxu0 %v2481
        %3041 = vmatprep.subr.mxu0 0.0
        %3042 = vmatpush2.msra.mxu0 %v2480
        %3043 = vmatprep.subr.mxu0 0.0
        %3044 = vmatpush2.msra.mxu0 %v2479
        %3045 = vmatprep.subr.mxu0 0.0
        %3046 = vmatpush2.msra.mxu0 %v2478
        %3047 = vmatprep.subr.mxu0 0.0
        %3048 = vmatpush2.msra.mxu0 %v2477
        %3049 = vmatprep.subr.mxu0 0.0
        %3050 = vmatpush2.msra.mxu0 %v2476
        %3051 = vmatprep.subr.mxu0 0.0
        %3052 = vmatpush2.msra.mxu0 %v2475
        %3053 = vmatprep.mubr.f32.mxu0 %v2256
        %3054 = vmatmul.mubr.f32.gmra.mxu0 %v2144
        %v3055 = vpop.f32.mrf.mxu0
        %v3056 = vadd.f32 %v2831, %v3055
        %v3057 = vpop.f32.mrf.mxu0
        %3058 = vmatprep.mubr.f32.mxu0 %v2258
        %3059 = vmatmul.mubr.f32.gmra.mxu0 %v2146
        %v3060 = vpop.f32.mrf.mxu0
        %v3061 = vadd.f32 %v2836, %v3060
        %v3062 = vpop.f32.mrf.mxu0
        %3063 = vmatprep.mubr.f32.mxu0 %v2261
        %3064 = vmatmul.mubr.f32.gmra.mxu0 %v2149
        %v3065 = vpop.f32.mrf.mxu0
        %v3066 = vadd.f32 %v2841, %v3065
        %v3067 = vpop.f32.mrf.mxu0
        %3068 = vmatprep.mubr.f32.mxu0 %v2263
        %3069 = vmatmul.mubr.f32.gmra.mxu0 %v2151
        %v3070 = vpop.f32.mrf.mxu0
        %v3071 = vadd.f32 %v2846, %v3070
        %v3072 = vpop.f32.mrf.mxu0
        %3073 = vmatprep.mubr.f32.mxu0 %v2266
        %3074 = vmatmul.mubr.f32.gmra.mxu0 %v2154
        %v3075 = vpop.f32.mrf.mxu0
        %v3076 = vadd.f32 %v2851, %v3075
        %v3077 = vpop.f32.mrf.mxu0
        %3078 = vmatprep.mubr.f32.mxu0 %v2268
        %3079 = vmatmul.mubr.f32.gmra.mxu0 %v2156
        %v3080 = vpop.f32.mrf.mxu0
        %v3081 = vadd.f32 %v2856, %v3080
        %v3082 = vpop.f32.mrf.mxu0
        %3083 = vmatprep.mubr.f32.mxu0 %v2271
        %3084 = vmatmul.mubr.f32.gmra.mxu0 %v2159
        %v3085 = vpop.f32.mrf.mxu0
        %v3086 = vadd.f32 %v2861, %v3085
        %v3087 = vpop.f32.mrf.mxu0
        %3088 = vmatprep.mubr.f32.mxu0 %v2273
        %3089 = vmatmul.mubr.f32.gmra.mxu0 %v2161
        %v3090 = vpop.f32.mrf.mxu0
        %v3091 = vadd.f32 %v2866, %v3090
        %v3092 = vpop.f32.mrf.mxu0
        %3093 = vmatprep.mubr.f32.mxu0 %v2276
        %3094 = vmatmul.mubr.f32.gmra.mxu0 %v2164
        %v3095 = vpop.f32.mrf.mxu0
        %v3096 = vadd.f32 %v2871, %v3095
        %v3097 = vpop.f32.mrf.mxu0
        %3098 = vmatprep.mubr.f32.mxu0 %v2278
        %3099 = vmatmul.mubr.f32.gmra.mxu0 %v2166
        %v3100 = vpop.f32.mrf.mxu0
        %v3101 = vadd.f32 %v2876, %v3100
        %v3102 = vpop.f32.mrf.mxu0
        %3103 = vmatprep.mubr.f32.mxu0 %v2281
        %3104 = vmatmul.mubr.f32.gmra.mxu0 %v2169
        %v3105 = vpop.f32.mrf.mxu0
        %v3106 = vadd.f32 %v2881, %v3105
        %v3107 = vpop.f32.mrf.mxu0
        %3108 = vmatprep.mubr.f32.mxu0 %v2283
        %3109 = vmatmul.mubr.f32.gmra.mxu0 %v2171
        %v3110 = vpop.f32.mrf.mxu0
        %v3111 = vadd.f32 %v2886, %v3110
        %v3112 = vpop.f32.mrf.mxu0
        %3113 = vmatprep.mubr.f32.mxu0 %v2286
        %3114 = vmatmul.mubr.f32.gmra.mxu0 %v2174
        %v3115 = vpop.f32.mrf.mxu0
        %v3116 = vadd.f32 %v2891, %v3115
        %v3117 = vpop.f32.mrf.mxu0
        %3118 = vmatprep.mubr.f32.mxu0 %v2288
        %3119 = vmatmul.mubr.f32.gmra.mxu0 %v2176
        %v3120 = vpop.f32.mrf.mxu0
        %v3121 = vadd.f32 %v2896, %v3120
        %v3122 = vpop.f32.mrf.mxu0
        %3123 = vmatprep.mubr.f32.mxu0 %v2291
        %3124 = vmatmul.mubr.f32.gmra.mxu0 %v2179
        %v3125 = vpop.f32.mrf.mxu0
        %v3126 = vadd.f32 %v2901, %v3125
        %v3127 = vpop.f32.mrf.mxu0
        %3128 = vmatprep.mubr.f32.mxu0 %v2293
        %3129 = vmatmul.mubr.f32.gmra.mxu0 %v2181
        %v3130 = vpop.f32.mrf.mxu0
        %v3131 = vadd.f32 %v2906, %v3130
        %v3132 = vpop.f32.mrf.mxu0
        %3133 = vmatprep.mubr.f32.mxu0 %v2296
        %3134 = vmatmul.mubr.f32.gmra.mxu0 %v2184
        %v3135 = vpop.f32.mrf.mxu0
        %v3136 = vadd.f32 %v2911, %v3135
        %v3137 = vpop.f32.mrf.mxu0
        %3138 = vmatprep.mubr.f32.mxu0 %v2298
        %3139 = vmatmul.mubr.f32.gmra.mxu0 %v2186
        %v3140 = vpop.f32.mrf.mxu0
        %v3141 = vadd.f32 %v2916, %v3140
        %v3142 = vpop.f32.mrf.mxu0
        %3143 = vmatprep.mubr.f32.mxu0 %v2301
        %3144 = vmatmul.mubr.f32.gmra.mxu0 %v2189
        %v3145 = vpop.f32.mrf.mxu0
        %v3146 = vadd.f32 %v2921, %v3145
        %v3147 = vpop.f32.mrf.mxu0
        %3148 = vmatprep.mubr.f32.mxu0 %v2303
        %3149 = vmatmul.mubr.f32.gmra.mxu0 %v2191
        %v3150 = vpop.f32.mrf.mxu0
        %v3151 = vadd.f32 %v2926, %v3150
        %v3152 = vpop.f32.mrf.mxu0
        %3153 = vmatprep.mubr.f32.mxu0 %v2306
        %3154 = vmatmul.mubr.f32.gmra.mxu0 %v2194
        %v3155 = vpop.f32.mrf.mxu0
        %v3156 = vadd.f32 %v2931, %v3155
        %v3157 = vpop.f32.mrf.mxu0
        %3158 = vmatprep.mubr.f32.mxu0 %v2308
        %3159 = vmatmul.mubr.f32.gmra.mxu0 %v2196
        %v3160 = vpop.f32.mrf.mxu0
        %v3161 = vadd.f32 %v2936, %v3160
        %v3162 = vpop.f32.mrf.mxu0
        %3163 = vmatprep.mubr.f32.mxu0 %v2311
        %3164 = vmatmul.mubr.f32.gmra.mxu0 %v2199
        %v3165 = vpop.f32.mrf.mxu0
        %v3166 = vadd.f32 %v2941, %v3165
        %v3167 = vpop.f32.mrf.mxu0
        %3168 = vmatprep.mubr.f32.mxu0 %v2313
        %3169 = vmatmul.mubr.f32.gmra.mxu0 %v2201
        %v3170 = vpop.f32.mrf.mxu0
        %v3171 = vadd.f32 %v2946, %v3170
        %v3172 = vpop.f32.mrf.mxu0
        %3173 = vmatprep.mubr.f32.mxu0 %v2316
        %3174 = vmatmul.mubr.f32.gmra.mxu0 %v2204
        %v3175 = vpop.f32.mrf.mxu0
        %v3176 = vadd.f32 %v2951, %v3175
        %v3177 = vpop.f32.mrf.mxu0
        %3178 = vmatprep.mubr.f32.mxu0 %v2318
        %3179 = vmatmul.mubr.f32.gmra.mxu0 %v2206
        %v3180 = vpop.f32.mrf.mxu0
        %v3181 = vadd.f32 %v2956, %v3180
        %v3182 = vpop.f32.mrf.mxu0
        %3183 = vmatprep.mubr.f32.mxu0 %v2321
        %3184 = vmatmul.mubr.f32.gmra.mxu0 %v2209
        %v3185 = vpop.f32.mrf.mxu0
        %v3186 = vadd.f32 %v2961, %v3185
        %v3187 = vpop.f32.mrf.mxu0
        %3188 = vmatprep.mubr.f32.mxu0 %v2323
        %3189 = vmatmul.mubr.f32.gmra.mxu0 %v2211
        %v3190 = vpop.f32.mrf.mxu0
        %v3191 = vadd.f32 %v2966, %v3190
        %v3192 = vpop.f32.mrf.mxu0
        %3193 = vmatprep.mubr.f32.mxu0 %v2326
        %3194 = vmatmul.mubr.f32.gmra.mxu0 %v2214
        %v3195 = vpop.f32.mrf.mxu0
        %v3196 = vadd.f32 %v2971, %v3195
        %v3197 = vpop.f32.mrf.mxu0
        %3198 = vmatprep.mubr.f32.mxu0 %v2328
        %3199 = vmatmul.mubr.f32.gmra.mxu0 %v2216
        %v3200 = vpop.f32.mrf.mxu0
        %v3201 = vadd.f32 %v2976, %v3200
        %v3202 = vpop.f32.mrf.mxu0
        %3203 = vmatprep.mubr.f32.mxu0 %v2373
        %3204 = vmatmul.mubr.f32.gmra.mxu0 %v2366
        %v3205 = vpop.f32.mrf.mxu0
        %v3206 = vadd.f32 %v2981, %v3205
        %v3207 = vpop.f32.mrf.mxu0
        %3208 = vmatprep.mubr.f32.mxu0 %v2375
        %3209 = vmatmul.mubr.f32.gmra.mxu0 %v2368
        %v3210 = vpop.f32.mrf.mxu0
        %v3211 = vadd.f32 %v2986, %v3210
        %v3212 = vpop.f32.mrf.mxu0
        %3213 = vdwg.mxu0
        %3214 = vmatprep.subr.mxu0 0.0
        %3215 = vmatpush1.msra.mxu0 %v2506
        %3216 = vmatprep.subr.mxu0 0.0
        %3217 = vmatpush1.msra.mxu0 %v2505
        %3218 = vmatprep.subr.mxu0 0.0
        %3219 = vmatpush1.msra.mxu0 %v2504
        %3220 = vmatprep.subr.mxu0 0.0
        %3221 = vmatpush1.msra.mxu0 %v2503
        %3222 = vmatprep.subr.mxu0 0.0
        %3223 = vmatpush1.msra.mxu0 %v2502
        %3224 = vmatprep.subr.mxu0 0.0
        %3225 = vmatpush1.msra.mxu0 %v2501
        %3226 = vmatprep.subr.mxu0 0.0
        %3227 = vmatpush1.msra.mxu0 %v2500
        %3228 = vmatprep.subr.mxu0 0.0
        %3229 = vmatpush1.msra.mxu0 %v2499
        %3230 = vmatprep.subr.mxu0 0.0
        %3231 = vmatpush1.msra.mxu0 %v2498
        %3232 = vmatprep.subr.mxu0 0.0
        %3233 = vmatpush1.msra.mxu0 %v2497
        %3234 = vmatprep.subr.mxu0 0.0
        %3235 = vmatpush1.msra.mxu0 %v2496
        %3236 = vmatprep.subr.mxu0 0.0
        %3237 = vmatpush1.msra.mxu0 %v2495
        %3238 = vmatprep.subr.mxu0 0.0
        %3239 = vmatpush1.msra.mxu0 %v2494
        %3240 = vmatprep.subr.mxu0 0.0
        %3241 = vmatpush1.msra.mxu0 %v2493
        %3242 = vmatprep.subr.mxu0 0.0
        %3243 = vmatpush1.msra.mxu0 %v2492
        %3244 = vmatprep.subr.mxu0 0.0
        %3245 = vmatpush1.msra.mxu0 %v2491
        %3246 = vmatprep.subr.mxu0 0.0
        %3247 = vmatpush2.msra.mxu0 %v2522
        %3248 = vmatprep.subr.mxu0 0.0
        %3249 = vmatpush2.msra.mxu0 %v2521
        %3250 = vmatprep.subr.mxu0 0.0
        %3251 = vmatpush2.msra.mxu0 %v2520
        %3252 = vmatprep.subr.mxu0 0.0
        %3253 = vmatpush2.msra.mxu0 %v2519
        %3254 = vmatprep.subr.mxu0 0.0
        %3255 = vmatpush2.msra.mxu0 %v2518
        %3256 = vmatprep.subr.mxu0 0.0
        %3257 = vmatpush2.msra.mxu0 %v2517
        %3258 = vmatprep.subr.mxu0 0.0
        %3259 = vmatpush2.msra.mxu0 %v2516
        %3260 = vmatprep.subr.mxu0 0.0
        %3261 = vmatpush2.msra.mxu0 %v2515
        %3262 = vmatprep.subr.mxu0 0.0
        %3263 = vmatpush2.msra.mxu0 %v2514
        %3264 = vmatprep.subr.mxu0 0.0
        %3265 = vmatpush2.msra.mxu0 %v2513
        %3266 = vmatprep.subr.mxu0 0.0
        %3267 = vmatpush2.msra.mxu0 %v2512
        %3268 = vmatprep.subr.mxu0 0.0
        %3269 = vmatpush2.msra.mxu0 %v2511
        %3270 = vmatprep.subr.mxu0 0.0
        %3271 = vmatpush2.msra.mxu0 %v2510
        %3272 = vmatprep.subr.mxu0 0.0
        %3273 = vmatpush2.msra.mxu0 %v2509
        %3274 = vmatprep.subr.mxu0 0.0
        %3275 = vmatpush2.msra.mxu0 %v2508
        %3276 = vmatprep.subr.mxu0 0.0
        %3277 = vmatpush2.msra.mxu0 %v2507
        %3278 = vmatprep.mubr.f32.mxu0 %v2149
        %3279 = vmatmul.mubr.f32.gmra.mxu0 %v2041
        %v3280 = vpop.f32.mrf.mxu0
        %v3281 = vadd.f32 %v3056, %v3280
        %v3282 = vpop.f32.mrf.mxu0
        %3283 = vmatprep.mubr.f32.mxu0 %v2151
        %3284 = vmatmul.mubr.f32.gmra.mxu0 %v2042
        %v3285 = vpop.f32.mrf.mxu0
        %v3286 = vadd.f32 %v3061, %v3285
        %v3287 = vpop.f32.mrf.mxu0
        %3288 = vmatprep.mubr.f32.mxu0 %v2154
        %3289 = vmatmul.mubr.f32.gmra.mxu0 %v2044
        %v3290 = vpop.f32.mrf.mxu0
        %v3291 = vadd.f32 %v3066, %v3290
        %v3292 = vpop.f32.mrf.mxu0
        %3293 = vmatprep.mubr.f32.mxu0 %v2156
        %3294 = vmatmul.mubr.f32.gmra.mxu0 %v2045
        %v3295 = vpop.f32.mrf.mxu0
        %v3296 = vadd.f32 %v3071, %v3295
        %v3297 = vpop.f32.mrf.mxu0
        %3298 = vmatprep.mubr.f32.mxu0 %v2159
        %3299 = vmatmul.mubr.f32.gmra.mxu0 %v2047
        %v3300 = vpop.f32.mrf.mxu0
        %v3301 = vadd.f32 %v3076, %v3300
        %v3302 = vpop.f32.mrf.mxu0
        %3303 = vmatprep.mubr.f32.mxu0 %v2161
        %3304 = vmatmul.mubr.f32.gmra.mxu0 %v2048
        %v3305 = vpop.f32.mrf.mxu0
        %v3306 = vadd.f32 %v3081, %v3305
        %v3307 = vpop.f32.mrf.mxu0
        %3308 = vmatprep.mubr.f32.mxu0 %v2164
        %3309 = vmatmul.mubr.f32.gmra.mxu0 %v2050
        %v3310 = vpop.f32.mrf.mxu0
        %v3311 = vadd.f32 %v3086, %v3310
        %v3312 = vpop.f32.mrf.mxu0
        %3313 = vmatprep.mubr.f32.mxu0 %v2166
        %3314 = vmatmul.mubr.f32.gmra.mxu0 %v2051
        %v3315 = vpop.f32.mrf.mxu0
        %v3316 = vadd.f32 %v3091, %v3315
        %v3317 = vpop.f32.mrf.mxu0
        %3318 = vmatprep.mubr.f32.mxu0 %v2169
        %3319 = vmatmul.mubr.f32.gmra.mxu0 %v2053
        %v3320 = vpop.f32.mrf.mxu0
        %v3321 = vadd.f32 %v3096, %v3320
        %v3322 = vpop.f32.mrf.mxu0
        %3323 = vmatprep.mubr.f32.mxu0 %v2171
        %3324 = vmatmul.mubr.f32.gmra.mxu0 %v2054
        %v3325 = vpop.f32.mrf.mxu0
        %v3326 = vadd.f32 %v3101, %v3325
        %v3327 = vpop.f32.mrf.mxu0
        %3328 = vmatprep.mubr.f32.mxu0 %v2174
        %3329 = vmatmul.mubr.f32.gmra.mxu0 %v2056
        %v3330 = vpop.f32.mrf.mxu0
        %v3331 = vadd.f32 %v3106, %v3330
        %v3332 = vpop.f32.mrf.mxu0
        %3333 = vmatprep.mubr.f32.mxu0 %v2176
        %3334 = vmatmul.mubr.f32.gmra.mxu0 %v2057
        %v3335 = vpop.f32.mrf.mxu0
        %v3336 = vadd.f32 %v3111, %v3335
        %v3337 = vpop.f32.mrf.mxu0
        %3338 = vmatprep.mubr.f32.mxu0 %v2179
        %3339 = vmatmul.mubr.f32.gmra.mxu0 %v2059
        %v3340 = vpop.f32.mrf.mxu0
        %v3341 = vadd.f32 %v3116, %v3340
        %v3342 = vpop.f32.mrf.mxu0
        %3343 = vmatprep.mubr.f32.mxu0 %v2181
        %3344 = vmatmul.mubr.f32.gmra.mxu0 %v2060
        %v3345 = vpop.f32.mrf.mxu0
        %v3346 = vadd.f32 %v3121, %v3345
        %v3347 = vpop.f32.mrf.mxu0
        %3348 = vmatprep.mubr.f32.mxu0 %v2184
        %3349 = vmatmul.mubr.f32.gmra.mxu0 %v2062
        %v3350 = vpop.f32.mrf.mxu0
        %v3351 = vadd.f32 %v3126, %v3350
        %v3352 = vpop.f32.mrf.mxu0
        %3353 = vmatprep.mubr.f32.mxu0 %v2186
        %3354 = vmatmul.mubr.f32.gmra.mxu0 %v2063
        %v3355 = vpop.f32.mrf.mxu0
        %v3356 = vadd.f32 %v3131, %v3355
        %v3357 = vpop.f32.mrf.mxu0
        %3358 = vmatprep.mubr.f32.mxu0 %v2189
        %3359 = vmatmul.mubr.f32.gmra.mxu0 %v2065
        %v3360 = vpop.f32.mrf.mxu0
        %v3361 = vadd.f32 %v3136, %v3360
        %v3362 = vpop.f32.mrf.mxu0
        %3363 = vmatprep.mubr.f32.mxu0 %v2191
        %3364 = vmatmul.mubr.f32.gmra.mxu0 %v2066
        %v3365 = vpop.f32.mrf.mxu0
        %v3366 = vadd.f32 %v3141, %v3365
        %v3367 = vpop.f32.mrf.mxu0
        %3368 = vmatprep.mubr.f32.mxu0 %v2194
        %3369 = vmatmul.mubr.f32.gmra.mxu0 %v2068
        %v3370 = vpop.f32.mrf.mxu0
        %v3371 = vadd.f32 %v3146, %v3370
        %v3372 = vpop.f32.mrf.mxu0
        %3373 = vmatprep.mubr.f32.mxu0 %v2196
        %3374 = vmatmul.mubr.f32.gmra.mxu0 %v2069
        %v3375 = vpop.f32.mrf.mxu0
        %v3376 = vadd.f32 %v3151, %v3375
        %v3377 = vpop.f32.mrf.mxu0
        %3378 = vmatprep.mubr.f32.mxu0 %v2199
        %3379 = vmatmul.mubr.f32.gmra.mxu0 %v2071
        %v3380 = vpop.f32.mrf.mxu0
        %v3381 = vadd.f32 %v3156, %v3380
        %v3382 = vpop.f32.mrf.mxu0
        %3383 = vmatprep.mubr.f32.mxu0 %v2201
        %3384 = vmatmul.mubr.f32.gmra.mxu0 %v2072
        %v3385 = vpop.f32.mrf.mxu0
        %v3386 = vadd.f32 %v3161, %v3385
        %v3387 = vpop.f32.mrf.mxu0
        %3388 = vmatprep.mubr.f32.mxu0 %v2204
        %3389 = vmatmul.mubr.f32.gmra.mxu0 %v2074
        %v3390 = vpop.f32.mrf.mxu0
        %v3391 = vadd.f32 %v3166, %v3390
        %v3392 = vpop.f32.mrf.mxu0
        %3393 = vmatprep.mubr.f32.mxu0 %v2206
        %3394 = vmatmul.mubr.f32.gmra.mxu0 %v2075
        %v3395 = vpop.f32.mrf.mxu0
        %v3396 = vadd.f32 %v3171, %v3395
        %v3397 = vpop.f32.mrf.mxu0
        %3398 = vmatprep.mubr.f32.mxu0 %v2209
        %3399 = vmatmul.mubr.f32.gmra.mxu0 %v2077
        %v3400 = vpop.f32.mrf.mxu0
        %v3401 = vadd.f32 %v3176, %v3400
        %v3402 = vpop.f32.mrf.mxu0
        %3403 = vmatprep.mubr.f32.mxu0 %v2211
        %3404 = vmatmul.mubr.f32.gmra.mxu0 %v2078
        %v3405 = vpop.f32.mrf.mxu0
        %v3406 = vadd.f32 %v3181, %v3405
        %v3407 = vpop.f32.mrf.mxu0
        %3408 = vmatprep.mubr.f32.mxu0 %v2214
        %3409 = vmatmul.mubr.f32.gmra.mxu0 %v2080
        %v3410 = vpop.f32.mrf.mxu0
        %v3411 = vadd.f32 %v3186, %v3410
        %v3412 = vpop.f32.mrf.mxu0
        %3413 = vmatprep.mubr.f32.mxu0 %v2216
        %3414 = vmatmul.mubr.f32.gmra.mxu0 %v2081
        %v3415 = vpop.f32.mrf.mxu0
        %v3416 = vadd.f32 %v3191, %v3415
        %v3417 = vpop.f32.mrf.mxu0
        %3418 = vmatprep.mubr.f32.mxu0 %v2366
        %3419 = vmatmul.mubr.f32.gmra.mxu0 %v2083
        %v3420 = vpop.f32.mrf.mxu0
        %v3421 = vadd.f32 %v3196, %v3420
        %v3422 = vpop.f32.mrf.mxu0
        %3423 = vmatprep.mubr.f32.mxu0 %v2368
        %3424 = vmatmul.mubr.f32.gmra.mxu0 %v2084
        %v3425 = vpop.f32.mrf.mxu0
        %v3426 = vadd.f32 %v3201, %v3425
        %v3427 = vpop.f32.mrf.mxu0
        %3428 = vmatprep.mubr.f32.mxu0 %v2383
        %3429 = vmatmul.mubr.f32.gmra.mxu0 %v2086
        %v3430 = vpop.f32.mrf.mxu0
        %v3431 = vadd.f32 %v3206, %v3430
        %v3432 = vpop.f32.mrf.mxu0
        %3433 = vmatprep.mubr.f32.mxu0 %v2385
        %3434 = vmatmul.mubr.f32.gmra.mxu0 %v2087
        %v3435 = vpop.f32.mrf.mxu0
        %v3436 = vadd.f32 %v3211, %v3435
        %v3437 = vpop.f32.mrf.mxu0
        %3438 = vdwg.mxu0
        %3439 = vmatprep.subr.mxu0 0.0
        %3440 = vmatpush1.msra.mxu0 %v2538
        %3441 = vmatprep.subr.mxu0 0.0
        %3442 = vmatpush1.msra.mxu0 %v2537
        %3443 = vmatprep.subr.mxu0 0.0
        %3444 = vmatpush1.msra.mxu0 %v2536
        %3445 = vmatprep.subr.mxu0 0.0
        %3446 = vmatpush1.msra.mxu0 %v2535
        %3447 = vmatprep.subr.mxu0 0.0
        %3448 = vmatpush1.msra.mxu0 %v2534
        %3449 = vmatprep.subr.mxu0 0.0
        %3450 = vmatpush1.msra.mxu0 %v2533
        %3451 = vmatprep.subr.mxu0 0.0
        %3452 = vmatpush1.msra.mxu0 %v2532
        %3453 = vmatprep.subr.mxu0 0.0
        %3454 = vmatpush1.msra.mxu0 %v2531
        %3455 = vmatprep.subr.mxu0 0.0
        %3456 = vmatpush1.msra.mxu0 %v2530
        %3457 = vmatprep.subr.mxu0 0.0
        %3458 = vmatpush1.msra.mxu0 %v2529
        %3459 = vmatprep.subr.mxu0 0.0
        %3460 = vmatpush1.msra.mxu0 %v2528
        %3461 = vmatprep.subr.mxu0 0.0
        %3462 = vmatpush1.msra.mxu0 %v2527
        %3463 = vmatprep.subr.mxu0 0.0
        %3464 = vmatpush1.msra.mxu0 %v2526
        %3465 = vmatprep.subr.mxu0 0.0
        %3466 = vmatpush1.msra.mxu0 %v2525
        %3467 = vmatprep.subr.mxu0 0.0
        %3468 = vmatpush1.msra.mxu0 %v2524
        %3469 = vmatprep.subr.mxu0 0.0
        %3470 = vmatpush1.msra.mxu0 %v2523
        %3471 = vmatprep.subr.mxu0 0.0
        %3472 = vmatpush2.msra.mxu0 0.0
        %3473 = vmatprep.subr.mxu0 0.0
        %3474 = vmatpush2.msra.mxu0 0.0
        %3475 = vmatprep.subr.mxu0 0.0
        %3476 = vmatpush2.msra.mxu0 0.0
        %3477 = vmatprep.subr.mxu0 0.0
        %3478 = vmatpush2.msra.mxu0 0.0
        %3479 = vmatprep.subr.mxu0 0.0
        %3480 = vmatpush2.msra.mxu0 0.0
        %3481 = vmatprep.subr.mxu0 0.0
        %3482 = vmatpush2.msra.mxu0 0.0
        %3483 = vmatprep.subr.mxu0 0.0
        %3484 = vmatpush2.msra.mxu0 0.0
        %3485 = vmatprep.subr.mxu0 0.0
        %3486 = vmatpush2.msra.mxu0 0.0
        %3487 = vmatprep.subr.mxu0 0.0
        %3488 = vmatpush2.msra.mxu0 0.0
        %3489 = vmatprep.subr.mxu0 0.0
        %3490 = vmatpush2.msra.mxu0 0.0
        %3491 = vmatprep.subr.mxu0 0.0
        %3492 = vmatpush2.msra.mxu0 0.0
        %3493 = vmatprep.subr.mxu0 0.0
        %3494 = vmatpush2.msra.mxu0 0.0
        %3495 = vmatprep.subr.mxu0 0.0
        %3496 = vmatpush2.msra.mxu0 0.0
        %3497 = vmatprep.subr.mxu0 0.0
        %3498 = vmatpush2.msra.mxu0 0.0
        %3499 = vmatprep.subr.mxu0 0.0
        %3500 = vmatpush2.msra.mxu0 0.0
        %3501 = vmatprep.subr.mxu0 0.0
        %3502 = vmatpush2.msra.mxu0 0.0
        %3503 = vmatprep.mubr.f32.mxu0 0.0
        %3504 = vmatmul.mubr.f32.gmra.mxu0 %v2261
        %v3505 = vpop.f32.mrf.mxu0
        %v3506 = vadd.f32 %v3281, %v3505
        %v3507 = vpop.f32.mrf.mxu0
        %3508 = vmatprep.mubr.f32.mxu0 0.0
        %3509 = vmatmul.mubr.f32.gmra.mxu0 %v2263
        %v3510 = vpop.f32.mrf.mxu0
        %v3511 = vadd.f32 %v3286, %v3510
        %v3512 = vpop.f32.mrf.mxu0
        %3513 = vmatprep.mubr.f32.mxu0 0.0
        %3514 = vmatmul.mubr.f32.gmra.mxu0 %v2266
        %v3515 = vpop.f32.mrf.mxu0
        %v3516 = vadd.f32 %v3291, %v3515
        %v3517 = vpop.f32.mrf.mxu0
        %3518 = vmatprep.mubr.f32.mxu0 0.0
        %3519 = vmatmul.mubr.f32.gmra.mxu0 %v2268
        %v3520 = vpop.f32.mrf.mxu0
        %v3521 = vadd.f32 %v3296, %v3520
        %v3522 = vpop.f32.mrf.mxu0
        %3523 = vmatprep.mubr.f32.mxu0 0.0
        %3524 = vmatmul.mubr.f32.gmra.mxu0 %v2271
        %v3525 = vpop.f32.mrf.mxu0
        %v3526 = vadd.f32 %v3301, %v3525
        %v3527 = vpop.f32.mrf.mxu0
        %3528 = vmatprep.mubr.f32.mxu0 0.0
        %3529 = vmatmul.mubr.f32.gmra.mxu0 %v2273
        %v3530 = vpop.f32.mrf.mxu0
        %v3531 = vadd.f32 %v3306, %v3530
        %v3532 = vpop.f32.mrf.mxu0
        %3533 = vmatprep.mubr.f32.mxu0 0.0
        %3534 = vmatmul.mubr.f32.gmra.mxu0 %v2276
        %v3535 = vpop.f32.mrf.mxu0
        %v3536 = vadd.f32 %v3311, %v3535
        %v3537 = vpop.f32.mrf.mxu0
        %3538 = vmatprep.mubr.f32.mxu0 0.0
        %3539 = vmatmul.mubr.f32.gmra.mxu0 %v2278
        %v3540 = vpop.f32.mrf.mxu0
        %v3541 = vadd.f32 %v3316, %v3540
        %v3542 = vpop.f32.mrf.mxu0
        %3543 = vmatprep.mubr.f32.mxu0 0.0
        %3544 = vmatmul.mubr.f32.gmra.mxu0 %v2281
        %v3545 = vpop.f32.mrf.mxu0
        %v3546 = vadd.f32 %v3321, %v3545
        %v3547 = vpop.f32.mrf.mxu0
        %3548 = vmatprep.mubr.f32.mxu0 0.0
        %3549 = vmatmul.mubr.f32.gmra.mxu0 %v2283
        %v3550 = vpop.f32.mrf.mxu0
        %v3551 = vadd.f32 %v3326, %v3550
        %v3552 = vpop.f32.mrf.mxu0
        %3553 = vmatprep.mubr.f32.mxu0 0.0
        %3554 = vmatmul.mubr.f32.gmra.mxu0 %v2286
        %v3555 = vpop.f32.mrf.mxu0
        %v3556 = vadd.f32 %v3331, %v3555
        %v3557 = vpop.f32.mrf.mxu0
        %3558 = vmatprep.mubr.f32.mxu0 0.0
        %3559 = vmatmul.mubr.f32.gmra.mxu0 %v2288
        %v3560 = vpop.f32.mrf.mxu0
        %v3561 = vadd.f32 %v3336, %v3560
        %v3562 = vpop.f32.mrf.mxu0
        %3563 = vmatprep.mubr.f32.mxu0 0.0
        %3564 = vmatmul.mubr.f32.gmra.mxu0 %v2291
        %v3565 = vpop.f32.mrf.mxu0
        %v3566 = vadd.f32 %v3341, %v3565
        %v3567 = vpop.f32.mrf.mxu0
        %3568 = vmatprep.mubr.f32.mxu0 0.0
        %3569 = vmatmul.mubr.f32.gmra.mxu0 %v2293
        %v3570 = vpop.f32.mrf.mxu0
        %v3571 = vadd.f32 %v3346, %v3570
        %v3572 = vpop.f32.mrf.mxu0
        %3573 = vmatprep.mubr.f32.mxu0 0.0
        %3574 = vmatmul.mubr.f32.gmra.mxu0 %v2296
        %v3575 = vpop.f32.mrf.mxu0
        %v3576 = vadd.f32 %v3351, %v3575
        %v3577 = vpop.f32.mrf.mxu0
        %3578 = vmatprep.mubr.f32.mxu0 0.0
        %3579 = vmatmul.mubr.f32.gmra.mxu0 %v2298
        %v3580 = vpop.f32.mrf.mxu0
        %v3581 = vadd.f32 %v3356, %v3580
        %v3582 = vpop.f32.mrf.mxu0
        %3583 = vmatprep.mubr.f32.mxu0 0.0
        %3584 = vmatmul.mubr.f32.gmra.mxu0 %v2301
        %v3585 = vpop.f32.mrf.mxu0
        %v3586 = vadd.f32 %v3361, %v3585
        %v3587 = vpop.f32.mrf.mxu0
        %3588 = vmatprep.mubr.f32.mxu0 0.0
        %3589 = vmatmul.mubr.f32.gmra.mxu0 %v2303
        %v3590 = vpop.f32.mrf.mxu0
        %v3591 = vadd.f32 %v3366, %v3590
        %v3592 = vpop.f32.mrf.mxu0
        %3593 = vmatprep.mubr.f32.mxu0 0.0
        %3594 = vmatmul.mubr.f32.gmra.mxu0 %v2306
        %v3595 = vpop.f32.mrf.mxu0
        %v3596 = vadd.f32 %v3371, %v3595
        %v3597 = vpop.f32.mrf.mxu0
        %3598 = vmatprep.mubr.f32.mxu0 0.0
        %3599 = vmatmul.mubr.f32.gmra.mxu0 %v2308
        %v3600 = vpop.f32.mrf.mxu0
        %v3601 = vadd.f32 %v3376, %v3600
        %v3602 = vpop.f32.mrf.mxu0
        %3603 = vmatprep.mubr.f32.mxu0 0.0
        %3604 = vmatmul.mubr.f32.gmra.mxu0 %v2311
        %v3605 = vpop.f32.mrf.mxu0
        %v3606 = vadd.f32 %v3381, %v3605
        %v3607 = vpop.f32.mrf.mxu0
        %3608 = vmatprep.mubr.f32.mxu0 0.0
        %3609 = vmatmul.mubr.f32.gmra.mxu0 %v2313
        %v3610 = vpop.f32.mrf.mxu0
        %v3611 = vadd.f32 %v3386, %v3610
        %v3612 = vpop.f32.mrf.mxu0
        %3613 = vmatprep.mubr.f32.mxu0 0.0
        %3614 = vmatmul.mubr.f32.gmra.mxu0 %v2316
        %v3615 = vpop.f32.mrf.mxu0
        %v3616 = vadd.f32 %v3391, %v3615
        %v3617 = vpop.f32.mrf.mxu0
        %3618 = vmatprep.mubr.f32.mxu0 0.0
        %3619 = vmatmul.mubr.f32.gmra.mxu0 %v2318
        %v3620 = vpop.f32.mrf.mxu0
        %v3621 = vadd.f32 %v3396, %v3620
        %v3622 = vpop.f32.mrf.mxu0
        %3623 = vmatprep.mubr.f32.mxu0 0.0
        %3624 = vmatmul.mubr.f32.gmra.mxu0 %v2321
        %v3625 = vpop.f32.mrf.mxu0
        %v3626 = vadd.f32 %v3401, %v3625
        %v3627 = vpop.f32.mrf.mxu0
        %3628 = vmatprep.mubr.f32.mxu0 0.0
        %3629 = vmatmul.mubr.f32.gmra.mxu0 %v2323
        %v3630 = vpop.f32.mrf.mxu0
        %v3631 = vadd.f32 %v3406, %v3630
        %v3632 = vpop.f32.mrf.mxu0
        %3633 = vmatprep.mubr.f32.mxu0 0.0
        %3634 = vmatmul.mubr.f32.gmra.mxu0 %v2326
        %v3635 = vpop.f32.mrf.mxu0
        %v3636 = vadd.f32 %v3411, %v3635
        %v3637 = vpop.f32.mrf.mxu0
        %3638 = vmatprep.mubr.f32.mxu0 0.0
        %3639 = vmatmul.mubr.f32.gmra.mxu0 %v2328
        %v3640 = vpop.f32.mrf.mxu0
        %v3641 = vadd.f32 %v3416, %v3640
        %v3642 = vpop.f32.mrf.mxu0
        %3643 = vmatprep.mubr.f32.mxu0 0.0
        %3644 = vmatmul.mubr.f32.gmra.mxu0 %v2373
        %v3645 = vpop.f32.mrf.mxu0
        %v3646 = vadd.f32 %v3421, %v3645
        %v3647 = vpop.f32.mrf.mxu0
        %3648 = vmatprep.mubr.f32.mxu0 0.0
        %3649 = vmatmul.mubr.f32.gmra.mxu0 %v2375
        %v3650 = vpop.f32.mrf.mxu0
        %v3651 = vadd.f32 %v3426, %v3650
        %v3652 = vpop.f32.mrf.mxu0
        %3653 = vmatprep.mubr.f32.mxu0 0.0
        %3654 = vmatmul.mubr.f32.gmra.mxu0 %v2390
        %v3655 = vpop.f32.mrf.mxu0
        %v3656 = vadd.f32 %v3431, %v3655
        %v3657 = vpop.f32.mrf.mxu0
        %3658 = vmatprep.mubr.f32.mxu0 0.0
        %3659 = vmatmul.mubr.f32.gmra.mxu0 %v2392
        %v3660 = vpop.f32.mrf.mxu0
        %v3661 = vadd.f32 %v3436, %v3660
        %v3662 = vpop.f32.mrf.mxu0
        %3663 = vdwg.mxu0
        %v3664 = vld [vmem:[%s3 + $0x2] sm:$0x1]
        %v3665 = vlaneseq
        %v3666 = vshrl.u32 %v3665, 7
        %v3667 = vsub.s32 0, %v3666
        %v3668 = vrot.slane %v3664, %v3667
        %v3669 = vmul.f32 %v3506, %v3668
        %v3670 = vmul.f32 %v3511, %v3668
        %v3671 = vmul.f32 %v3516, %v3668
        %v3672 = vmul.f32 %v3521, %v3668
        %v3673 = vmul.f32 %v3526, %v3668
        %v3674 = vmul.f32 %v3531, %v3668
        %v3675 = vmul.f32 %v3536, %v3668
        %v3676 = vmul.f32 %v3541, %v3668
        %v3677 = vmul.f32 %v3546, %v3668
        %v3678 = vmul.f32 %v3551, %v3668
        %v3679 = vmul.f32 %v3556, %v3668
        %v3680 = vmul.f32 %v3561, %v3668
        %v3681 = vmul.f32 %v3566, %v3668
        %v3682 = vmul.f32 %v3571, %v3668
        %v3683 = vmul.f32 %v3576, %v3668
        %v3684 = vmul.f32 %v3581, %v3668
        %v3685 = vmul.f32 %v3586, %v3668
        %v3686 = vmul.f32 %v3591, %v3668
        %v3687 = vmul.f32 %v3596, %v3668
        %v3688 = vmul.f32 %v3601, %v3668
        %v3689 = vmul.f32 %v3606, %v3668
        %v3690 = vmul.f32 %v3611, %v3668
        %v3691 = vmul.f32 %v3616, %v3668
        %v3692 = vmul.f32 %v3621, %v3668
        %v3693 = vmul.f32 %v3626, %v3668
        %v3694 = vmul.f32 %v3631, %v3668
        %v3695 = vmul.f32 %v3636, %v3668
        %v3696 = vmul.f32 %v3641, %v3668
        %v3697 = vmul.f32 %v3646, %v3668
        %v3698 = vmul.f32 %v3651, %v3668
        %v3699 = vmul.f32 %v3656, %v3668
        %v3700 = vmul.f32 %v3661, %v3668
        %v3701 = vld [vmem:[%s3 + $0x3] sm:$0x1]
        %v3702 = vlaneseq
        %v3703 = vshrl.u32 %v3702, 7
        %v3704 = vsub.s32 0, %v3703
        %v3705 = vrot.slane %v3701, %v3704
        %v3706 = vadd.f32 %v3669, %v3705
        %v3707 = vadd.f32 %v3670, %v3705
        %v3708 = vadd.f32 %v3671, %v3705
        %v3709 = vadd.f32 %v3672, %v3705
        %v3710 = vadd.f32 %v3673, %v3705
        %v3711 = vadd.f32 %v3674, %v3705
        %v3712 = vadd.f32 %v3675, %v3705
        %v3713 = vadd.f32 %v3676, %v3705
        %v3714 = vadd.f32 %v3677, %v3705
        %v3715 = vadd.f32 %v3678, %v3705
        %v3716 = vadd.f32 %v3679, %v3705
        %v3717 = vadd.f32 %v3680, %v3705
        %v3718 = vadd.f32 %v3681, %v3705
        %v3719 = vadd.f32 %v3682, %v3705
        %v3720 = vadd.f32 %v3683, %v3705
        %v3721 = vadd.f32 %v3684, %v3705
        %v3722 = vadd.f32 %v3685, %v3705
        %v3723 = vadd.f32 %v3686, %v3705
        %v3724 = vadd.f32 %v3687, %v3705
        %v3725 = vadd.f32 %v3688, %v3705
        %v3726 = vadd.f32 %v3689, %v3705
        %v3727 = vadd.f32 %v3690, %v3705
        %v3728 = vadd.f32 %v3691, %v3705
        %v3729 = vadd.f32 %v3692, %v3705
        %v3730 = vadd.f32 %v3693, %v3705
        %v3731 = vadd.f32 %v3694, %v3705
        %v3732 = vadd.f32 %v3695, %v3705
        %v3733 = vadd.f32 %v3696, %v3705
        %v3734 = vadd.f32 %v3697, %v3705
        %v3735 = vadd.f32 %v3698, %v3705
        %v3736 = vadd.f32 %v3699, %v3705
        %v3737 = vadd.f32 %v3700, %v3705
        %v3738 = vmax.f32 %v3706, 0.0
        %v3739 = vmax.f32 %v3707, 0.0
        %v3740 = vmax.f32 %v3708, 0.0
        %v3741 = vmax.f32 %v3709, 0.0
        %v3742 = vmax.f32 %v3710, 0.0
        %v3743 = vmax.f32 %v3711, 0.0
        %v3744 = vmax.f32 %v3712, 0.0
        %v3745 = vmax.f32 %v3713, 0.0
        %v3746 = vmax.f32 %v3714, 0.0
        %v3747 = vmax.f32 %v3715, 0.0
        %v3748 = vmax.f32 %v3716, 0.0
        %v3749 = vmax.f32 %v3717, 0.0
        %v3750 = vmax.f32 %v3718, 0.0
        %v3751 = vmax.f32 %v3719, 0.0
        %v3752 = vmax.f32 %v3720, 0.0
        %v3753 = vmax.f32 %v3721, 0.0
        %v3754 = vmax.f32 %v3722, 0.0
        %v3755 = vmax.f32 %v3723, 0.0
        %v3756 = vmax.f32 %v3724, 0.0
        %v3757 = vmax.f32 %v3725, 0.0
        %v3758 = vmax.f32 %v3726, 0.0
        %v3759 = vmax.f32 %v3727, 0.0
        %v3760 = vmax.f32 %v3728, 0.0
        %v3761 = vmax.f32 %v3729, 0.0
        %v3762 = vmax.f32 %v3730, 0.0
        %v3763 = vmax.f32 %v3731, 0.0
        %v3764 = vmax.f32 %v3732, 0.0
        %v3765 = vmax.f32 %v3733, 0.0
        %v3766 = vmax.f32 %v3734, 0.0
        %v3767 = vmax.f32 %v3735, 0.0
        %v3768 = vmax.f32 %v3736, 0.0
        %v3769 = vmax.f32 %v3737, 0.0
        %v3770 = vadd.f32 %v3738, %v321
        %v3771 = vadd.f32 %v3739, %v323
        %v3772 = vadd.f32 %v3740, %v326
        %v3773 = vadd.f32 %v3741, %v328
        %v3774 = vadd.f32 %v3742, %v331
        %v3775 = vadd.f32 %v3743, %v333
        %v3776 = vadd.f32 %v3744, %v336
        %v3777 = vadd.f32 %v3745, %v338
        %v3778 = vadd.f32 %v3746, %v341
        %v3779 = vadd.f32 %v3747, %v343
        %v3780 = vadd.f32 %v3748, %v346
        %v3781 = vadd.f32 %v3749, %v348
        %v3782 = vadd.f32 %v3750, %v351
        %v3783 = vadd.f32 %v3751, %v353
        %v3784 = vadd.f32 %v3752, %v356
        %v3785 = vadd.f32 %v3753, %v358
        %v3786 = vadd.f32 %v3754, %v361
        %v3787 = vadd.f32 %v3755, %v363
        %v3788 = vadd.f32 %v3756, %v366
        %v3789 = vadd.f32 %v3757, %v368
        %v3790 = vadd.f32 %v3758, %v371
        %v3791 = vadd.f32 %v3759, %v373
        %v3792 = vadd.f32 %v3760, %v376
        %v3793 = vadd.f32 %v3761, %v378
        %v3794 = vadd.f32 %v3762, %v381
        %v3795 = vadd.f32 %v3763, %v383
        %v3796 = vadd.f32 %v3764, %v386
        %v3797 = vadd.f32 %v3765, %v388
        %v3798 = vadd.f32 %v3766, %v391
        %v3799 = vadd.f32 %v3767, %v393
        %v3800 = vadd.f32 %v3768, %v544
        %v3801 = vadd.f32 %v3769, %v546
        %v3802 = vmax.f32 %v3770, 0.0
        %v3803 = vmax.f32 %v3771, 0.0
        %v3804 = vmax.f32 %v3772, 0.0
        %v3805 = vmax.f32 %v3773, 0.0
        %v3806 = vmax.f32 %v3774, 0.0
        %v3807 = vmax.f32 %v3775, 0.0
        %v3808 = vmax.f32 %v3776, 0.0
        %v3809 = vmax.f32 %v3777, 0.0
        %v3810 = vmax.f32 %v3778, 0.0
        %v3811 = vmax.f32 %v3779, 0.0
        %v3812 = vmax.f32 %v3780, 0.0
        %v3813 = vmax.f32 %v3781, 0.0
        %v3814 = vmax.f32 %v3782, 0.0
        %v3815 = vmax.f32 %v3783, 0.0
        %v3816 = vmax.f32 %v3784, 0.0
        %v3817 = vmax.f32 %v3785, 0.0
        %v3818 = vmax.f32 %v3786, 0.0
        %v3819 = vmax.f32 %v3787, 0.0
        %v3820 = vmax.f32 %v3788, 0.0
        %v3821 = vmax.f32 %v3789, 0.0
        %v3822 = vmax.f32 %v3790, 0.0
        %v3823 = vmax.f32 %v3791, 0.0
        %v3824 = vmax.f32 %v3792, 0.0
        %v3825 = vmax.f32 %v3793, 0.0
        %v3826 = vmax.f32 %v3794, 0.0
        %v3827 = vmax.f32 %v3795, 0.0
        %v3828 = vmax.f32 %v3796, 0.0
        %v3829 = vmax.f32 %v3797, 0.0
        %v3830 = vmax.f32 %v3798, 0.0
        %v3831 = vmax.f32 %v3799, 0.0
        %v3832 = vmax.f32 %v3800, 0.0
        %v3833 = vmax.f32 %v3801, 0.0
        %3834 = vst [vmem:[%s205] sm:$0xff] %v3802
        %3835 = vst [vmem:[%s205 + $0x8] sm:$0xff] %v3803
        %3836 = vst [vmem:[%s205 + $0x10] sm:$0xff] %v3804
        %3837 = vst [vmem:[%s205 + $0x18] sm:$0xff] %v3805
        %3838 = vst [vmem:[%s205 + $0x20] sm:$0xff] %v3806
        %3839 = vst [vmem:[%s205 + $0x28] sm:$0xff] %v3807
        %3840 = vst [vmem:[%s205 + $0x30] sm:$0xff] %v3808
        %3841 = vst [vmem:[%s205 + $0x38] sm:$0xff] %v3809
        %3842 = vst [vmem:[%s205 + $0x40] sm:$0xff] %v3810
        %3843 = vst [vmem:[%s205 + $0x48] sm:$0xff] %v3811
        %3844 = vst [vmem:[%s205 + $0x50] sm:$0xff] %v3812
        %3845 = vst [vmem:[%s205 + $0x58] sm:$0xff] %v3813
        %3846 = vst [vmem:[%s205 + $0x60] sm:$0xff] %v3814
        %3847 = vst [vmem:[%s205 + $0x68] sm:$0xff] %v3815
        %3848 = vst [vmem:[%s205 + $0x70] sm:$0xff] %v3816
        %3849 = vst [vmem:[%s205 + $0x78] sm:$0xff] %v3817
        %3850 = vst [vmem:[%s205 + $0x80] sm:$0xff] %v3818
        %3851 = vst [vmem:[%s205 + $0x88] sm:$0xff] %v3819
        %3852 = vst [vmem:[%s205 + $0x90] sm:$0xff] %v3820
        %3853 = vst [vmem:[%s205 + $0x98] sm:$0xff] %v3821
        %3854 = vst [vmem:[%s205 + $0xa0] sm:$0xff] %v3822
        %3855 = vst [vmem:[%s205 + $0xa8] sm:$0xff] %v3823
        %3856 = vst [vmem:[%s205 + $0xb0] sm:$0xff] %v3824
        %3857 = vst [vmem:[%s205 + $0xb8] sm:$0xff] %v3825
        %3858 = vst [vmem:[%s205 + $0xc0] sm:$0xff] %v3826
        %3859 = vst [vmem:[%s205 + $0xc8] sm:$0xff] %v3827
        %3860 = vst [vmem:[%s205 + $0xd0] sm:$0xff] %v3828
        %3861 = vst [vmem:[%s205 + $0xd8] sm:$0xff] %v3829
        %3862 = vst [vmem:[%s205 + $0xe0] sm:$0xff] %v3830
        %3863 = vst [vmem:[%s205 + $0xe8] sm:$0xff] %v3831
        %3864 = vst [vmem:[%s205 + $0xf0] sm:$0xff] %v3832
        %3865 = vst [vmem:[%s205 + $0xf8] sm:$0xff] %v3833
        %s3866 = sand.u32 %s116, 1
        %s3867 = scalar_lea.sflag [#allocation5], %s3866
        %s3868 = sand.u32 %s116, 1
        %s3869 = smul.addr %s3868, 256
        %s3870 = scalar_lea.vmem [#allocation6], %s3869
        // Predicated region
        $region41: #{tpu_custom_call.1} parent=35 // pred_check
          %p3871 = pneg %p126
        $region42: #{tpu_custom_call.1} parent=35 // pred_check_branch
          %3873 = sbr.rel (%p3871) target = $region44
        $region43: #{tpu_custom_call.1} parent=35 // pred_region
          %s3875 = ssub.s32 4096, 4096
          %3876 = vsyncadd %s3867, %s3875
          %s3877 = smul.addr %s19, 32
          %s3878 = smul.addr %s3877, 128
          %s3879 = scalar_lea.hbm %s4, %s3878
          %s3880 = sshll.u32 %s3870, 4
          %s3881 = int_to_ptr.vmem [resolvable:$true] %s3880
          %3886 = dma.vmem_to_hbm [thread:$0]  %s3881, 4096, %s3879, %s3867, 128, 128, 8
        $region44: #{tpu_custom_call.1} parent=35 // pred_fallthru
          _
      $region36: #{tpu_custom_call.1} parent=5 // pred_fallthru
        _
      %p3887 = scmp.le.s32.totalorder 2, %s14
      // Predicated region
      $region45: #{tpu_custom_call.1} parent=5 // pred_check
        %p3888 = pneg %p3887
      $region46: #{tpu_custom_call.1} parent=5 // pred_check_branch
        %3890 = sbr.rel (%p3888) target = $region48
      $region47: #{tpu_custom_call.1} parent=5 // pred_region
        %s3891 = ssub.s32 %s14, 2
        // Predicated region
        $region49: #{tpu_custom_call.1} parent=47 // pred_check
          %p3892 = pneg %p132
        $region50: #{tpu_custom_call.1} parent=47 // pred_check_branch
          %3894 = sbr.rel (%p3892) target = $region52
        $region51: #{tpu_custom_call.1} parent=47 // pred_region
          %s3895 = sand.u32 %s117, 1
          %s3896 = scalar_lea.sflag [#allocation5], %s3895
          %s3897 = sand.u32 %s117, 1
          %s3898 = smul.addr %s3897, 256
          %s3899 = scalar_lea.vmem [#allocation6], %s3898
          %3900 = dma.done %s3896, 4096
        $region52: #{tpu_custom_call.1} parent=47 // pred_fallthru
          _
      $region48: #{tpu_custom_call.1} parent=5 // pred_fallthru
        _
    $region6: #{tpu_custom_call.1} parent=1 // loop_footer
      %s18 = sadd.s32 1, %s14
    $region7: #{tpu_custom_call.1} parent=1 // loop_footer_branch
      %13 = sbr.rel target = $region3
    $region8: #{tpu_custom_call.1} parent=1 // loop_exit
      _
    %3901 = vsyncpa [#allocation4], 1
    %s3902 = scalar_lea.sflag [#allocation4], 1
    %3903 = vsyncpa %s3902, 1
    %3904 = vsyncpa [#allocation5], 1
    %s3905 = scalar_lea.sflag [#allocation5], 1
    %3906 = vsyncpa %s3905, 1

</llo_original>
